<compile_context>
chip_gen: v7x
topology: tpu7x:2x2x1
jax: 0.10.0
libtpu: 0.0.40
codegen_flags: <defaults>
</compile_context>

<pallas_src>
import math
import functools

import jax
import jax.numpy as jnp
from jax.experimental import pallas as pl
from jax.experimental.pallas import tpu as pltpu


# ----------------------------- fused kernel --------------------------------

def _fused_forward_kernel(x_ref, emb_w_ref, emb_b_ref, pe_ref,
                          wqkv_ref, bqkv_ref, wo_ref, bo_ref,
                          ln1g_ref, ln1b_ref, w1_ref, b1_ref,
                          w2_ref, b2_ref, ln2g_ref, ln2b_ref,
                          wh_ref, bh_ref,
                          o_ref, attn_sc, *, nhead, eps):
    S, D = pe_ref.shape
    BS = x_ref.shape[0]
    B = BS // S
    L = wqkv_ref.shape[0]
    Dh = D // nhead
    scale = 1.0 / math.sqrt(Dh)

    # --- embedding linear (batch folded into rows) + positional encoding ---
    x = x_ref[...].astype(jnp.float32)                       # (B*S, Din)
    h = jnp.dot(x, emb_w_ref[...], preferred_element_type=jnp.float32) + emb_b_ref[...]
    pe = pe_ref[...].astype(jnp.float32)                      # (S, D)
    h = h + jnp.concatenate([pe] * B, axis=0)                 # tile PE over folded batch

    # --- encoder layers: static unroll over the stacked layer axis ---
    for l in range(L):
        # fused QKV projection over all B*S rows: one (D, 3D) MXU pass
        qkv = jnp.dot(h, wqkv_ref[l], preferred_element_type=jnp.float32) + bqkv_ref[l]
        q = qkv[:, 0 * D:1 * D] * scale        # fold 1/sqrt(Dh) into q
        k = qkv[:, 1 * D:2 * D]
        v = qkv[:, 2 * D:3 * D]

        # per-(batch, head) attention; each head's output is stored straight
        # into its lane slot of the VMEM scratch instead of concatenating.
        # TODO(synk): for non-toy head_dim, fold (batch, head) onto the sublane
        # axis and use a single block-masked score matmul (2 MXU pushes total)
        # instead of this static per-(b, h) unroll of tiny matmuls.
        for b in range(B):
            r0 = b * S
            for hd in range(nhead):
                c0 = hd * Dh
                qh = q[r0:r0 + S, c0:c0 + Dh]                 # (S, Dh)
                kh = k[r0:r0 + S, c0:c0 + Dh]
                vh = v[r0:r0 + S, c0:c0 + Dh]
                s_mat = jnp.dot(qh, kh.T, preferred_element_type=jnp.float32)  # (S, S)
                m = jnp.max(s_mat, axis=-1, keepdims=True)
                p = jnp.exp(s_mat - m)
                denom = jnp.sum(p, axis=-1, keepdims=True)
                oh = jnp.dot(p, vh, preferred_element_type=jnp.float32)        # (S, Dh)
                # deferred normalization; approx reciprocal -> EUP slot
                attn_sc[pl.ds(r0, S), pl.ds(c0, Dh)] = oh * pl.reciprocal(denom, approx=True)
        attn = attn_sc[...]                                    # (B*S, D)

        attn_out = jnp.dot(attn, wo_ref[l], preferred_element_type=jnp.float32) + bo_ref[l]

        # residual + LayerNorm 1 (post-LN)
        z = h + attn_out
        mu = jnp.mean(z, axis=-1, keepdims=True)
        var = jnp.mean((z - mu) * (z - mu), axis=-1, keepdims=True)
        h1 = (z - mu) * jax.lax.rsqrt(var + eps) * ln1g_ref[l] + ln1b_ref[l]

        # FFN (relu) + residual + LayerNorm 2
        ff = jnp.dot(h1, w1_ref[l], preferred_element_type=jnp.float32) + b1_ref[l]
        ff = jnp.maximum(ff, 0.0)
        ff = jnp.dot(ff, w2_ref[l], preferred_element_type=jnp.float32) + b2_ref[l]
        z2 = h1 + ff
        mu2 = jnp.mean(z2, axis=-1, keepdims=True)
        var2 = jnp.mean((z2 - mu2) * (z2 - mu2), axis=-1, keepdims=True)
        h = (z2 - mu2) * jax.lax.rsqrt(var2 + eps) * ln2g_ref[l] + ln2b_ref[l]

    # --- final head: reshape-free (B, S*D) flatten via static slices/concats,
    #     then ONE lane-dense matmul against the pre-padded head weight ---
    blocks = []
    for s in range(S):
        rows_s = jnp.concatenate(
            [h[b * S + s:b * S + s + 1, :] for b in range(B)], axis=0)   # (B, D)
        blocks.append(rows_s)
    flat = jnp.concatenate(blocks, axis=1)                                # (B, S*D)
    out = jnp.dot(flat, wh_ref[...], preferred_element_type=jnp.float32) + bh_ref[...]
    o_ref[...] = out.astype(o_ref.dtype)


def fused_forward_pallas(x2d, params, *, nhead, eps=1e-5):
    BS, Din = x2d.shape
    S, D = params["pe"].shape
    B = BS // S
    L = params["wqkv"].shape[0]
    F = params["w1"].shape[2]
    SD, Np = params["out_w"].shape

    kern = functools.partial(_fused_forward_kernel, nhead=nhead, eps=eps)

    def full(shape):
        nd = len(shape)
        return pl.BlockSpec(shape, lambda i, _nd=nd: (0,) * _nd)

    # TODO(synk): at realistic d_model/dim_ff, K/N-tile the matmuls
    # (pltpu.emit_pipeline), single-buffer the constant weight blocks
    # (pipeline_mode=pl.Buffered(1)), cast weights to bf16 on v6e/v7x, set
    # vmem_limit_bytes, and split the batch over a parallel grid axis for
    # v7x's two TensorCores. At this toy config everything fits in <1 MiB
    # of VMEM, so a single grid step is fastest.
    return pl.pallas_call(
        kern,
        out_shape=jax.ShapeDtypeStruct((B, Np), x2d.dtype),
        grid=(1,),
        in_specs=[
            full((BS, Din)),
            full((Din, D)), full((1, D)), full((S, D)),
            full((L, D, 3 * D)), full((L, 1, 3 * D)),
            full((L, D, D)), full((L, 1, D)),
            full((L, 1, D)), full((L, 1, D)),
            full((L, D, F)), full((L, 1, F)),
            full((L, F, D)), full((L, 1, D)),
            full((L, 1, D)), full((L, 1, D)),
            full((SD, Np)), full((1, Np)),
        ],
        out_specs=full((B, Np)),
        scratch_shapes=[pltpu.VMEM((BS, D), jnp.float32)],
        compiler_params=pltpu.CompilerParams(dimension_semantics=("arbitrary",)),
    )(x2d, params["emb_w"], params["emb_b"], params["pe"],
      params["wqkv"], params["bqkv"], params["wo"], params["bo"],
      params["ln1_g"], params["ln1_b"], params["w1"], params["b1"],
      params["w2"], params["b2"], params["ln2_g"], params["ln2_b"],
      params["out_w"], params["out_b"])


# ------------------------------ model glue ---------------------------------

def sinusoidal_pe(seq_len, d_model):
    pos = jnp.arange(seq_len, dtype=jnp.float32)[:, None]
    i = jnp.arange(0, d_model, 2, dtype=jnp.float32)
    div = jnp.exp(-math.log(10000.0) * i / d_model)
    pe = jnp.zeros((seq_len, d_model), jnp.float32)
    pe = pe.at[:, 0::2].set(jnp.sin(pos * div))
    pe = pe.at[:, 1::2].set(jnp.cos(pos * div))
    return pe


def _init_linear(key, fan_in, fan_out):
    # PyTorch nn.Linear default init: U(-1/sqrt(fan_in), 1/sqrt(fan_in)); bias kept 2-D.
    kw, kb = jax.random.split(key)
    bound = 1.0 / math.sqrt(fan_in)
    w = jax.random.uniform(kw, (fan_in, fan_out), jnp.float32, -bound, bound)
    b = jax.random.uniform(kb, (1, fan_out), jnp.float32, -bound, bound)
    return w, b


def init_params(key, *, input_dim, d_model, nhead, dim_ff, num_layers,
                seq_len, new_output_dim):
    keys = jax.random.split(key, 2 + num_layers)
    params = {}
    params["emb_w"], params["emb_b"] = _init_linear(keys[0], input_dim, d_model)
    params["pe"] = sinusoidal_pe(seq_len, d_model)

    names = ("wqkv", "bqkv", "wo", "bo", "ln1_g", "ln1_b",
             "w1", "b1", "w2", "b2", "ln2_g", "ln2_b")
    stacks = {n: [] for n in names}
    for l in range(num_layers):
        lk = jax.random.split(keys[2 + l], 6)
        wq, bq = _init_linear(lk[0], d_model, d_model)
        wk, bk = _init_linear(lk[1], d_model, d_model)
        wv, bv = _init_linear(lk[2], d_model, d_model)
        wo, bo = _init_linear(lk[3], d_model, d_model)
        w1, b1 = _init_linear(lk[4], d_model, dim_ff)
        w2, b2 = _init_linear(lk[5], dim_ff, d_model)
        stacks["wqkv"].append(jnp.concatenate([wq, wk, wv], axis=1))   # (D, 3D)
        stacks["bqkv"].append(jnp.concatenate([bq, bk, bv], axis=1))   # (1, 3D)
        stacks["wo"].append(wo); stacks["bo"].append(bo)
        stacks["w1"].append(w1); stacks["b1"].append(b1)
        stacks["w2"].append(w2); stacks["b2"].append(b2)
        stacks["ln1_g"].append(jnp.ones((1, d_model), jnp.float32))
        stacks["ln1_b"].append(jnp.zeros((1, d_model), jnp.float32))
        stacks["ln2_g"].append(jnp.ones((1, d_model), jnp.float32))
        stacks["ln2_b"].append(jnp.zeros((1, d_model), jnp.float32))
    for n in names:
        params[n] = jnp.stack(stacks[n], axis=0)   # leading layer axis

    # Final head, zero-padded ONCE at init to a lane-dense 128-column width.
    w, b = _init_linear(keys[1], seq_len * d_model, new_output_dim)
    n_pad = max(128, ((new_output_dim + 127) // 128) * 128)
    params["out_w"] = jnp.zeros((seq_len * d_model, n_pad), jnp.float32).at[:, :new_output_dim].set(w)
    params["out_b"] = jnp.zeros((1, n_pad), jnp.float32).at[:, :new_output_dim].set(b)
    return params


def finetune_forward(params, x, *, nhead, new_output_dim):
    # Mirrors FineTuneModel.forward (eval mode: dropout is a no-op).
    B, S, Din = x.shape
    x2 = x.reshape(B * S, Din)                 # batch folded into matmul rows
    out_padded = fused_forward_pallas(x2, params, nhead=nhead)
    return out_padded[:, :new_output_dim]


# --------------------------------- main -------------------------------------

if __name__ == "__main__":
    batch = 2
    seq_len = 8
    input_dim = 16
    d_model = 32
    nhead = 4
    dim_ff = 64
    num_layers = 2
    new_output_dim = 10

    key = jax.random.PRNGKey(0)
    pkey, xkey = jax.random.split(key)

    params = init_params(
        pkey,
        input_dim=input_dim, d_model=d_model, nhead=nhead, dim_ff=dim_ff,
        num_layers=num_layers, seq_len=seq_len, new_output_dim=new_output_dim,
    )
    x = jax.random.normal(xkey, (batch, seq_len, input_dim), jnp.float32)

    fwd = jax.jit(functools.partial(
        finetune_forward, nhead=nhead, new_output_dim=new_output_dim))
    out = fwd(params, x)
    out = jax.block_until_ready(out)
    assert out.shape == (batch, new_output_dim), out.shape
    assert bool(jnp.all(jnp.isfinite(out)))
    print("KERNEL_OK")
</pallas_src>

<mosaic_0001>
module attributes {stable_mosaic.version = 11 : i64} {
  func.func @_fused_forward_kernel(%arg0: i32, %arg1: memref<16x16xf32, #tpu.memory_space<vmem>>, %arg2: memref<16x32xf32, #tpu.memory_space<vmem>>, %arg3: memref<1x32xf32, #tpu.memory_space<vmem>>, %arg4: memref<8x32xf32, #tpu.memory_space<vmem>>, %arg5: memref<2x32x96xf32, #tpu.memory_space<vmem>>, %arg6: memref<2x1x96xf32, #tpu.memory_space<vmem>>, %arg7: memref<2x32x32xf32, #tpu.memory_space<vmem>>, %arg8: memref<2x1x32xf32, #tpu.memory_space<vmem>>, %arg9: memref<2x1x32xf32, #tpu.memory_space<vmem>>, %arg10: memref<2x1x32xf32, #tpu.memory_space<vmem>>, %arg11: memref<2x32x64xf32, #tpu.memory_space<vmem>>, %arg12: memref<2x1x64xf32, #tpu.memory_space<vmem>>, %arg13: memref<2x64x32xf32, #tpu.memory_space<vmem>>, %arg14: memref<2x1x32xf32, #tpu.memory_space<vmem>>, %arg15: memref<2x1x32xf32, #tpu.memory_space<vmem>>, %arg16: memref<2x1x32xf32, #tpu.memory_space<vmem>>, %arg17: memref<256x128xf32, #tpu.memory_space<vmem>>, %arg18: memref<1x128xf32, #tpu.memory_space<vmem>>, %arg19: memref<2x128xf32, #tpu.memory_space<vmem>>, %arg20: memref<16x32xf32, #tpu.memory_space<vmem>>) attributes {dimension_semantics = [#tpu.dimension_semantics<arbitrary>], iteration_bounds = array<i64: 1>, scalar_prefetch = 0 : i64, scratch_operands = 1 : i64, tpu.core_type = #tpu.core_type<tc>, window_params = [{pipeline_mode = #tpu.pipeline_mode<synchronous>, transform_indices = @transform_0, window_bounds = array<i64: 16, 16>}, {pipeline_mode = #tpu.pipeline_mode<synchronous>, transform_indices = @transform_1, window_bounds = array<i64: 16, 32>}, {pipeline_mode = #tpu.pipeline_mode<synchronous>, transform_indices = @transform_2, window_bounds = array<i64: 1, 32>}, {pipeline_mode = #tpu.pipeline_mode<synchronous>, transform_indices = @transform_3, window_bounds = array<i64: 8, 32>}, {pipeline_mode = #tpu.pipeline_mode<synchronous>, transform_indices = @transform_4, window_bounds = array<i64: 2, 32, 96>}, {pipeline_mode = #tpu.pipeline_mode<synchronous>, transform_indices = @transform_5, window_bounds = array<i64: 2, 1, 96>}, {pipeline_mode = #tpu.pipeline_mode<synchronous>, transform_indices = @transform_6, window_bounds = array<i64: 2, 32, 32>}, {pipeline_mode = #tpu.pipeline_mode<synchronous>, transform_indices = @transform_7, window_bounds = array<i64: 2, 1, 32>}, {pipeline_mode = #tpu.pipeline_mode<synchronous>, transform_indices = @transform_8, window_bounds = array<i64: 2, 1, 32>}, {pipeline_mode = #tpu.pipeline_mode<synchronous>, transform_indices = @transform_9, window_bounds = array<i64: 2, 1, 32>}, {pipeline_mode = #tpu.pipeline_mode<synchronous>, transform_indices = @transform_10, window_bounds = array<i64: 2, 32, 64>}, {pipeline_mode = #tpu.pipeline_mode<synchronous>, transform_indices = @transform_11, window_bounds = array<i64: 2, 1, 64>}, {pipeline_mode = #tpu.pipeline_mode<synchronous>, transform_indices = @transform_12, window_bounds = array<i64: 2, 64, 32>}, {pipeline_mode = #tpu.pipeline_mode<synchronous>, transform_indices = @transform_13, window_bounds = array<i64: 2, 1, 32>}, {pipeline_mode = #tpu.pipeline_mode<synchronous>, transform_indices = @transform_14, window_bounds = array<i64: 2, 1, 32>}, {pipeline_mode = #tpu.pipeline_mode<synchronous>, transform_indices = @transform_15, window_bounds = array<i64: 2, 1, 32>}, {pipeline_mode = #tpu.pipeline_mode<synchronous>, transform_indices = @transform_16, window_bounds = array<i64: 256, 128>}, {pipeline_mode = #tpu.pipeline_mode<synchronous>, transform_indices = @transform_17, window_bounds = array<i64: 1, 128>}, {pipeline_mode = #tpu.pipeline_mode<synchronous>, transform_indices = @transform_18, window_bounds = array<i64: 2, 128>}]} {
    %c0 = arith.constant 0 : index
    %c0_0 = arith.constant 0 : index
    %0 = vector.load %arg1[%c0, %c0_0] : memref<16x16xf32, #tpu.memory_space<vmem>>, vector<16x16xf32>
    %c0_1 = arith.constant 0 : index
    %c0_2 = arith.constant 0 : index
    %1 = vector.load %arg2[%c0_1, %c0_2] : memref<16x32xf32, #tpu.memory_space<vmem>>, vector<16x32xf32>
    %cst = arith.constant dense<0.000000e+00> : vector<16x32xf32>
    %2 = tpu.matmul %0, %1, %cst {dimension_numbers = #tpu.dot_dimension_numbers<[1], [0], [0], [1], [0, 0, 1, 1], [], []>} : vector<16x16xf32>, vector<16x32xf32>, vector<16x32xf32> -> vector<16x32xf32>
    %c0_3 = arith.constant 0 : index
    %c0_4 = arith.constant 0 : index
    %3 = vector.load %arg3[%c0_3, %c0_4] : memref<1x32xf32, #tpu.memory_space<vmem>>, vector<1x32xf32>
    %4 = vector.broadcast %3 : vector<1x32xf32> to vector<16x32xf32>
    %5 = arith.addf %2, %4 : vector<16x32xf32>
    %c0_5 = arith.constant 0 : index
    %c0_6 = arith.constant 0 : index
    %6 = vector.load %arg4[%c0_5, %c0_6] : memref<8x32xf32, #tpu.memory_space<vmem>>, vector<8x32xf32>
    %7 = tpu.concatenate %6, %6 in 0 : vector<8x32xf32>, vector<8x32xf32> -> vector<16x32xf32>
    %8 = arith.addf %5, %7 : vector<16x32xf32>
    %c0_7 = arith.constant 0 : index
    %c0_8 = arith.constant 0 : index
    %c0_9 = arith.constant 0 : index
    %9 = vector.load %arg5[%c0_7, %c0_8, %c0_9] : memref<2x32x96xf32, #tpu.memory_space<vmem>>, vector<1x32x96xf32>
    %10 = vector.shape_cast %9 : vector<1x32x96xf32> to vector<32x96xf32>
    %cst_10 = arith.constant dense<0.000000e+00> : vector<16x96xf32>
    %11 = tpu.matmul %8, %10, %cst_10 {dimension_numbers = #tpu.dot_dimension_numbers<[1], [0], [0], [1], [0, 0, 1, 1], [], []>} : vector<16x32xf32>, vector<32x96xf32>, vector<16x96xf32> -> vector<16x96xf32>
    %c0_11 = arith.constant 0 : index
    %c0_12 = arith.constant 0 : index
    %c0_13 = arith.constant 0 : index
    %12 = vector.load %arg6[%c0_11, %c0_12, %c0_13] : memref<2x1x96xf32, #tpu.memory_space<vmem>>, vector<1x1x96xf32>
    %13 = vector.shape_cast %12 : vector<1x1x96xf32> to vector<1x96xf32>
    %14 = vector.broadcast %13 : vector<1x96xf32> to vector<16x96xf32>
    %15 = arith.addf %11, %14 : vector<16x96xf32>
    %16 = vector.extract_strided_slice %15 {offsets = [0, 0], sizes = [16, 32], strides = [1, 1]} : vector<16x96xf32> to vector<16x32xf32>
    %cst_14 = arith.constant 0.353553385 : f32
    %17 = vector.broadcast %cst_14 : f32 to vector<16x32xf32>
    %18 = arith.mulf %16, %17 : vector<16x32xf32>
    %19 = vector.extract_strided_slice %15 {offsets = [0, 32], sizes = [16, 32], strides = [1, 1]} : vector<16x96xf32> to vector<16x32xf32>
    %20 = vector.extract_strided_slice %15 {offsets = [0, 64], sizes = [16, 32], strides = [1, 1]} : vector<16x96xf32> to vector<16x32xf32>
    %21 = vector.extract_strided_slice %18 {offsets = [0, 0], sizes = [8, 8], strides = [1, 1]} : vector<16x32xf32> to vector<8x8xf32>
    %22 = vector.extract_strided_slice %19 {offsets = [0, 0], sizes = [8, 8], strides = [1, 1]} : vector<16x32xf32> to vector<8x8xf32>
    %23 = vector.extract_strided_slice %20 {offsets = [0, 0], sizes = [8, 8], strides = [1, 1]} : vector<16x32xf32> to vector<8x8xf32>
    %24 = tpu.transpose %22, [1, 0] : vector<8x8xf32> -> vector<8x8xf32>
    %cst_15 = arith.constant dense<0.000000e+00> : vector<8x8xf32>
    %25 = tpu.matmul %21, %24, %cst_15 {dimension_numbers = #tpu.dot_dimension_numbers<[1], [0], [0], [1], [0, 0, 1, 1], [], []>} : vector<8x8xf32>, vector<8x8xf32>, vector<8x8xf32> -> vector<8x8xf32>
    %cst_16 = arith.constant dense<0xFF800000> : vector<8xf32>
    %26 = vector.multi_reduction <maximumf>, %25, %cst_16 [1] : vector<8x8xf32> to vector<8xf32>
    %27 = vector.shape_cast %26 : vector<8xf32> to vector<8x1xf32>
    %28 = vector.broadcast %27 : vector<8x1xf32> to vector<8x8xf32>
    %29 = arith.subf %25, %28 : vector<8x8xf32>
    %30 = math.exp %29 : vector<8x8xf32>
    %cst_17 = arith.constant dense<0.000000e+00> : vector<8xf32>
    %31 = vector.multi_reduction <add>, %30, %cst_17 [1] : vector<8x8xf32> to vector<8xf32>
    %32 = vector.shape_cast %31 : vector<8xf32> to vector<8x1xf32>
    %cst_18 = arith.constant dense<0.000000e+00> : vector<8x8xf32>
    %33 = tpu.matmul %30, %23, %cst_18 {dimension_numbers = #tpu.dot_dimension_numbers<[1], [0], [0], [1], [0, 0, 1, 1], [], []>} : vector<8x8xf32>, vector<8x8xf32>, vector<8x8xf32> -> vector<8x8xf32>
    %34 = tpu.reciprocal %32 {approx = true} : vector<8x1xf32> -> vector<8x1xf32>
    %35 = vector.broadcast %34 : vector<8x1xf32> to vector<8x8xf32>
    %36 = arith.mulf %33, %35 : vector<8x8xf32>
    %c0_19 = arith.constant 0 : index
    %c0_20 = arith.constant 0 : index
    %37 = vector.load %arg20[%c0_19, %c0_20] : memref<16x32xf32, #tpu.memory_space<vmem>>, vector<8x8xf32>
    tpu.vector_store %arg20[%c0_19, %c0_20], %36 {strides = array<i32>} : memref<16x32xf32, #tpu.memory_space<vmem>>, vector<8x8xf32>,
    %38 = vector.extract_strided_slice %18 {offsets = [0, 8], sizes = [8, 8], strides = [1, 1]} : vector<16x32xf32> to vector<8x8xf32>
    %39 = vector.extract_strided_slice %19 {offsets = [0, 8], sizes = [8, 8], strides = [1, 1]} : vector<16x32xf32> to vector<8x8xf32>
    %40 = vector.extract_strided_slice %20 {offsets = [0, 8], sizes = [8, 8], strides = [1, 1]} : vector<16x32xf32> to vector<8x8xf32>
    %41 = tpu.transpose %39, [1, 0] : vector<8x8xf32> -> vector<8x8xf32>
    %cst_21 = arith.constant dense<0.000000e+00> : vector<8x8xf32>
    %42 = tpu.matmul %38, %41, %cst_21 {dimension_numbers = #tpu.dot_dimension_numbers<[1], [0], [0], [1], [0, 0, 1, 1], [], []>} : vector<8x8xf32>, vector<8x8xf32>, vector<8x8xf32> -> vector<8x8xf32>
    %cst_22 = arith.constant dense<0xFF800000> : vector<8xf32>
    %43 = vector.multi_reduction <maximumf>, %42, %cst_22 [1] : vector<8x8xf32> to vector<8xf32>
    %44 = vector.shape_cast %43 : vector<8xf32> to vector<8x1xf32>
    %45 = vector.broadcast %44 : vector<8x1xf32> to vector<8x8xf32>
    %46 = arith.subf %42, %45 : vector<8x8xf32>
    %47 = math.exp %46 : vector<8x8xf32>
    %cst_23 = arith.constant dense<0.000000e+00> : vector<8xf32>
    %48 = vector.multi_reduction <add>, %47, %cst_23 [1] : vector<8x8xf32> to vector<8xf32>
    %49 = vector.shape_cast %48 : vector<8xf32> to vector<8x1xf32>
    %cst_24 = arith.constant dense<0.000000e+00> : vector<8x8xf32>
    %50 = tpu.matmul %47, %40, %cst_24 {dimension_numbers = #tpu.dot_dimension_numbers<[1], [0], [0], [1], [0, 0, 1, 1], [], []>} : vector<8x8xf32>, vector<8x8xf32>, vector<8x8xf32> -> vector<8x8xf32>
    %51 = tpu.reciprocal %49 {approx = true} : vector<8x1xf32> -> vector<8x1xf32>
    %52 = vector.broadcast %51 : vector<8x1xf32> to vector<8x8xf32>
    %53 = arith.mulf %50, %52 : vector<8x8xf32>
    %c0_25 = arith.constant 0 : index
    %c8 = arith.constant 8 : index
    %54 = vector.load %arg20[%c0_25, %c8] : memref<16x32xf32, #tpu.memory_space<vmem>>, vector<8x8xf32>
    tpu.vector_store %arg20[%c0_25, %c8], %53 {strides = array<i32>} : memref<16x32xf32, #tpu.memory_space<vmem>>, vector<8x8xf32>,
    %55 = vector.extract_strided_slice %18 {offsets = [0, 16], sizes = [8, 8], strides = [1, 1]} : vector<16x32xf32> to vector<8x8xf32>
    %56 = vector.extract_strided_slice %19 {offsets = [0, 16], sizes = [8, 8], strides = [1, 1]} : vector<16x32xf32> to vector<8x8xf32>
    %57 = vector.extract_strided_slice %20 {offsets = [0, 16], sizes = [8, 8], strides = [1, 1]} : vector<16x32xf32> to vector<8x8xf32>
    %58 = tpu.transpose %56, [1, 0] : vector<8x8xf32> -> vector<8x8xf32>
    %cst_26 = arith.constant dense<0.000000e+00> : vector<8x8xf32>
    %59 = tpu.matmul %55, %58, %cst_26 {dimension_numbers = #tpu.dot_dimension_numbers<[1], [0], [0], [1], [0, 0, 1, 1], [], []>} : vector<8x8xf32>, vector<8x8xf32>, vector<8x8xf32> -> vector<8x8xf32>
    %cst_27 = arith.constant dense<0xFF800000> : vector<8xf32>
    %60 = vector.multi_reduction <maximumf>, %59, %cst_27 [1] : vector<8x8xf32> to vector<8xf32>
    %61 = vector.shape_cast %60 : vector<8xf32> to vector<8x1xf32>
    %62 = vector.broadcast %61 : vector<8x1xf32> to vector<8x8xf32>
    %63 = arith.subf %59, %62 : vector<8x8xf32>
    %64 = math.exp %63 : vector<8x8xf32>
    %cst_28 = arith.constant dense<0.000000e+00> : vector<8xf32>
    %65 = vector.multi_reduction <add>, %64, %cst_28 [1] : vector<8x8xf32> to vector<8xf32>
    %66 = vector.shape_cast %65 : vector<8xf32> to vector<8x1xf32>
    %cst_29 = arith.constant dense<0.000000e+00> : vector<8x8xf32>
    %67 = tpu.matmul %64, %57, %cst_29 {dimension_numbers = #tpu.dot_dimension_numbers<[1], [0], [0], [1], [0, 0, 1, 1], [], []>} : vector<8x8xf32>, vector<8x8xf32>, vector<8x8xf32> -> vector<8x8xf32>
    %68 = tpu.reciprocal %66 {approx = true} : vector<8x1xf32> -> vector<8x1xf32>
    %69 = vector.broadcast %68 : vector<8x1xf32> to vector<8x8xf32>
    %70 = arith.mulf %67, %69 : vector<8x8xf32>
    %c0_30 = arith.constant 0 : index
    %c16 = arith.constant 16 : index
    %71 = vector.load %arg20[%c0_30, %c16] : memref<16x32xf32, #tpu.memory_space<vmem>>, vector<8x8xf32>
    tpu.vector_store %arg20[%c0_30, %c16], %70 {strides = array<i32>} : memref<16x32xf32, #tpu.memory_space<vmem>>, vector<8x8xf32>,
    %72 = vector.extract_strided_slice %18 {offsets = [0, 24], sizes = [8, 8], strides = [1, 1]} : vector<16x32xf32> to vector<8x8xf32>
    %73 = vector.extract_strided_slice %19 {offsets = [0, 24], sizes = [8, 8], strides = [1, 1]} : vector<16x32xf32> to vector<8x8xf32>
    %74 = vector.extract_strided_slice %20 {offsets = [0, 24], sizes = [8, 8], strides = [1, 1]} : vector<16x32xf32> to vector<8x8xf32>
    %75 = tpu.transpose %73, [1, 0] : vector<8x8xf32> -> vector<8x8xf32>
    %cst_31 = arith.constant dense<0.000000e+00> : vector<8x8xf32>
    %76 = tpu.matmul %72, %75, %cst_31 {dimension_numbers = #tpu.dot_dimension_numbers<[1], [0], [0], [1], [0, 0, 1, 1], [], []>} : vector<8x8xf32>, vector<8x8xf32>, vector<8x8xf32> -> vector<8x8xf32>
    %cst_32 = arith.constant dense<0xFF800000> : vector<8xf32>
    %77 = vector.multi_reduction <maximumf>, %76, %cst_32 [1] : vector<8x8xf32> to vector<8xf32>
    %78 = vector.shape_cast %77 : vector<8xf32> to vector<8x1xf32>
    %79 = vector.broadcast %78 : vector<8x1xf32> to vector<8x8xf32>
    %80 = arith.subf %76, %79 : vector<8x8xf32>
    %81 = math.exp %80 : vector<8x8xf32>
    %cst_33 = arith.constant dense<0.000000e+00> : vector<8xf32>
    %82 = vector.multi_reduction <add>, %81, %cst_33 [1] : vector<8x8xf32> to vector<8xf32>
    %83 = vector.shape_cast %82 : vector<8xf32> to vector<8x1xf32>
    %cst_34 = arith.constant dense<0.000000e+00> : vector<8x8xf32>
    %84 = tpu.matmul %81, %74, %cst_34 {dimension_numbers = #tpu.dot_dimension_numbers<[1], [0], [0], [1], [0, 0, 1, 1], [], []>} : vector<8x8xf32>, vector<8x8xf32>, vector<8x8xf32> -> vector<8x8xf32>
    %85 = tpu.reciprocal %83 {approx = true} : vector<8x1xf32> -> vector<8x1xf32>
    %86 = vector.broadcast %85 : vector<8x1xf32> to vector<8x8xf32>
    %87 = arith.mulf %84, %86 : vector<8x8xf32>
    %c0_35 = arith.constant 0 : index
    %c24 = arith.constant 24 : index
    %88 = vector.load %arg20[%c0_35, %c24] : memref<16x32xf32, #tpu.memory_space<vmem>>, vector<8x8xf32>
    tpu.vector_store %arg20[%c0_35, %c24], %87 {strides = array<i32>} : memref<16x32xf32, #tpu.memory_space<vmem>>, vector<8x8xf32>,
    %89 = vector.extract_strided_slice %18 {offsets = [8, 0], sizes = [8, 8], strides = [1, 1]} : vector<16x32xf32> to vector<8x8xf32>
    %90 = vector.extract_strided_slice %19 {offsets = [8, 0], sizes = [8, 8], strides = [1, 1]} : vector<16x32xf32> to vector<8x8xf32>
    %91 = vector.extract_strided_slice %20 {offsets = [8, 0], sizes = [8, 8], strides = [1, 1]} : vector<16x32xf32> to vector<8x8xf32>
    %92 = tpu.transpose %90, [1, 0] : vector<8x8xf32> -> vector<8x8xf32>
    %cst_36 = arith.constant dense<0.000000e+00> : vector<8x8xf32>
    %93 = tpu.matmul %89, %92, %cst_36 {dimension_numbers = #tpu.dot_dimension_numbers<[1], [0], [0], [1], [0, 0, 1, 1], [], []>} : vector<8x8xf32>, vector<8x8xf32>, vector<8x8xf32> -> vector<8x8xf32>
    %cst_37 = arith.constant dense<0xFF800000> : vector<8xf32>
    %94 = vector.multi_reduction <maximumf>, %93, %cst_37 [1] : vector<8x8xf32> to vector<8xf32>
    %95 = vector.shape_cast %94 : vector<8xf32> to vector<8x1xf32>
    %96 = vector.broadcast %95 : vector<8x1xf32> to vector<8x8xf32>
    %97 = arith.subf %93, %96 : vector<8x8xf32>
    %98 = math.exp %97 : vector<8x8xf32>
    %cst_38 = arith.constant dense<0.000000e+00> : vector<8xf32>
    %99 = vector.multi_reduction <add>, %98, %cst_38 [1] : vector<8x8xf32> to vector<8xf32>
    %100 = vector.shape_cast %99 : vector<8xf32> to vector<8x1xf32>
    %cst_39 = arith.constant dense<0.000000e+00> : vector<8x8xf32>
    %101 = tpu.matmul %98, %91, %cst_39 {dimension_numbers = #tpu.dot_dimension_numbers<[1], [0], [0], [1], [0, 0, 1, 1], [], []>} : vector<8x8xf32>, vector<8x8xf32>, vector<8x8xf32> -> vector<8x8xf32>
    %102 = tpu.reciprocal %100 {approx = true} : vector<8x1xf32> -> vector<8x1xf32>
    %103 = vector.broadcast %102 : vector<8x1xf32> to vector<8x8xf32>
    %104 = arith.mulf %101, %103 : vector<8x8xf32>
    %c8_40 = arith.constant 8 : index
    %c0_41 = arith.constant 0 : index
    %105 = vector.load %arg20[%c8_40, %c0_41] : memref<16x32xf32, #tpu.memory_space<vmem>>, vector<8x8xf32>
    tpu.vector_store %arg20[%c8_40, %c0_41], %104 {strides = array<i32>} : memref<16x32xf32, #tpu.memory_space<vmem>>, vector<8x8xf32>,
    %106 = vector.extract_strided_slice %18 {offsets = [8, 8], sizes = [8, 8], strides = [1, 1]} : vector<16x32xf32> to vector<8x8xf32>
    %107 = vector.extract_strided_slice %19 {offsets = [8, 8], sizes = [8, 8], strides = [1, 1]} : vector<16x32xf32> to vector<8x8xf32>
    %108 = vector.extract_strided_slice %20 {offsets = [8, 8], sizes = [8, 8], strides = [1, 1]} : vector<16x32xf32> to vector<8x8xf32>
    %109 = tpu.transpose %107, [1, 0] : vector<8x8xf32> -> vector<8x8xf32>
    %cst_42 = arith.constant dense<0.000000e+00> : vector<8x8xf32>
    %110 = tpu.matmul %106, %109, %cst_42 {dimension_numbers = #tpu.dot_dimension_numbers<[1], [0], [0], [1], [0, 0, 1, 1], [], []>} : vector<8x8xf32>, vector<8x8xf32>, vector<8x8xf32> -> vector<8x8xf32>
    %cst_43 = arith.constant dense<0xFF800000> : vector<8xf32>
    %111 = vector.multi_reduction <maximumf>, %110, %cst_43 [1] : vector<8x8xf32> to vector<8xf32>
    %112 = vector.shape_cast %111 : vector<8xf32> to vector<8x1xf32>
    %113 = vector.broadcast %112 : vector<8x1xf32> to vector<8x8xf32>
    %114 = arith.subf %110, %113 : vector<8x8xf32>
    %115 = math.exp %114 : vector<8x8xf32>
    %cst_44 = arith.constant dense<0.000000e+00> : vector<8xf32>
    %116 = vector.multi_reduction <add>, %115, %cst_44 [1] : vector<8x8xf32> to vector<8xf32>
    %117 = vector.shape_cast %116 : vector<8xf32> to vector<8x1xf32>
    %cst_45 = arith.constant dense<0.000000e+00> : vector<8x8xf32>
    %118 = tpu.matmul %115, %108, %cst_45 {dimension_numbers = #tpu.dot_dimension_numbers<[1], [0], [0], [1], [0, 0, 1, 1], [], []>} : vector<8x8xf32>, vector<8x8xf32>, vector<8x8xf32> -> vector<8x8xf32>
    %119 = tpu.reciprocal %117 {approx = true} : vector<8x1xf32> -> vector<8x1xf32>
    %120 = vector.broadcast %119 : vector<8x1xf32> to vector<8x8xf32>
    %121 = arith.mulf %118, %120 : vector<8x8xf32>
    %c8_46 = arith.constant 8 : index
    %c8_47 = arith.constant 8 : index
    %122 = vector.load %arg20[%c8_46, %c8_47] : memref<16x32xf32, #tpu.memory_space<vmem>>, vector<8x8xf32>
    tpu.vector_store %arg20[%c8_46, %c8_47], %121 {strides = array<i32>} : memref<16x32xf32, #tpu.memory_space<vmem>>, vector<8x8xf32>,
    %123 = vector.extract_strided_slice %18 {offsets = [8, 16], sizes = [8, 8], strides = [1, 1]} : vector<16x32xf32> to vector<8x8xf32>
    %124 = vector.extract_strided_slice %19 {offsets = [8, 16], sizes = [8, 8], strides = [1, 1]} : vector<16x32xf32> to vector<8x8xf32>
    %125 = vector.extract_strided_slice %20 {offsets = [8, 16], sizes = [8, 8], strides = [1, 1]} : vector<16x32xf32> to vector<8x8xf32>
    %126 = tpu.transpose %124, [1, 0] : vector<8x8xf32> -> vector<8x8xf32>
    %cst_48 = arith.constant dense<0.000000e+00> : vector<8x8xf32>
    %127 = tpu.matmul %123, %126, %cst_48 {dimension_numbers = #tpu.dot_dimension_numbers<[1], [0], [0], [1], [0, 0, 1, 1], [], []>} : vector<8x8xf32>, vector<8x8xf32>, vector<8x8xf32> -> vector<8x8xf32>
    %cst_49 = arith.constant dense<0xFF800000> : vector<8xf32>
    %128 = vector.multi_reduction <maximumf>, %127, %cst_49 [1] : vector<8x8xf32> to vector<8xf32>
    %129 = vector.shape_cast %128 : vector<8xf32> to vector<8x1xf32>
    %130 = vector.broadcast %129 : vector<8x1xf32> to vector<8x8xf32>
    %131 = arith.subf %127, %130 : vector<8x8xf32>
    %132 = math.exp %131 : vector<8x8xf32>
    %cst_50 = arith.constant dense<0.000000e+00> : vector<8xf32>
    %133 = vector.multi_reduction <add>, %132, %cst_50 [1] : vector<8x8xf32> to vector<8xf32>
    %134 = vector.shape_cast %133 : vector<8xf32> to vector<8x1xf32>
    %cst_51 = arith.constant dense<0.000000e+00> : vector<8x8xf32>
    %135 = tpu.matmul %132, %125, %cst_51 {dimension_numbers = #tpu.dot_dimension_numbers<[1], [0], [0], [1], [0, 0, 1, 1], [], []>} : vector<8x8xf32>, vector<8x8xf32>, vector<8x8xf32> -> vector<8x8xf32>
    %136 = tpu.reciprocal %134 {approx = true} : vector<8x1xf32> -> vector<8x1xf32>
    %137 = vector.broadcast %136 : vector<8x1xf32> to vector<8x8xf32>
    %138 = arith.mulf %135, %137 : vector<8x8xf32>
    %c8_52 = arith.constant 8 : index
    %c16_53 = arith.constant 16 : index
    %139 = vector.load %arg20[%c8_52, %c16_53] : memref<16x32xf32, #tpu.memory_space<vmem>>, vector<8x8xf32>
    tpu.vector_store %arg20[%c8_52, %c16_53], %138 {strides = array<i32>} : memref<16x32xf32, #tpu.memory_space<vmem>>, vector<8x8xf32>,
    %140 = vector.extract_strided_slice %18 {offsets = [8, 24], sizes = [8, 8], strides = [1, 1]} : vector<16x32xf32> to vector<8x8xf32>
    %141 = vector.extract_strided_slice %19 {offsets = [8, 24], sizes = [8, 8], strides = [1, 1]} : vector<16x32xf32> to vector<8x8xf32>
    %142 = vector.extract_strided_slice %20 {offsets = [8, 24], sizes = [8, 8], strides = [1, 1]} : vector<16x32xf32> to vector<8x8xf32>
    %143 = tpu.transpose %141, [1, 0] : vector<8x8xf32> -> vector<8x8xf32>
    %cst_54 = arith.constant dense<0.000000e+00> : vector<8x8xf32>
    %144 = tpu.matmul %140, %143, %cst_54 {dimension_numbers = #tpu.dot_dimension_numbers<[1], [0], [0], [1], [0, 0, 1, 1], [], []>} : vector<8x8xf32>, vector<8x8xf32>, vector<8x8xf32> -> vector<8x8xf32>
    %cst_55 = arith.constant dense<0xFF800000> : vector<8xf32>
    %145 = vector.multi_reduction <maximumf>, %144, %cst_55 [1] : vector<8x8xf32> to vector<8xf32>
    %146 = vector.shape_cast %145 : vector<8xf32> to vector<8x1xf32>
    %147 = vector.broadcast %146 : vector<8x1xf32> to vector<8x8xf32>
    %148 = arith.subf %144, %147 : vector<8x8xf32>
    %149 = math.exp %148 : vector<8x8xf32>
    %cst_56 = arith.constant dense<0.000000e+00> : vector<8xf32>
    %150 = vector.multi_reduction <add>, %149, %cst_56 [1] : vector<8x8xf32> to vector<8xf32>
    %151 = vector.shape_cast %150 : vector<8xf32> to vector<8x1xf32>
    %cst_57 = arith.constant dense<0.000000e+00> : vector<8x8xf32>
    %152 = tpu.matmul %149, %142, %cst_57 {dimension_numbers = #tpu.dot_dimension_numbers<[1], [0], [0], [1], [0, 0, 1, 1], [], []>} : vector<8x8xf32>, vector<8x8xf32>, vector<8x8xf32> -> vector<8x8xf32>
    %153 = tpu.reciprocal %151 {approx = true} : vector<8x1xf32> -> vector<8x1xf32>
    %154 = vector.broadcast %153 : vector<8x1xf32> to vector<8x8xf32>
    %155 = arith.mulf %152, %154 : vector<8x8xf32>
    %c8_58 = arith.constant 8 : index
    %c24_59 = arith.constant 24 : index
    %156 = vector.load %arg20[%c8_58, %c24_59] : memref<16x32xf32, #tpu.memory_space<vmem>>, vector<8x8xf32>
    tpu.vector_store %arg20[%c8_58, %c24_59], %155 {strides = array<i32>} : memref<16x32xf32, #tpu.memory_space<vmem>>, vector<8x8xf32>,
    %c0_60 = arith.constant 0 : index
    %c0_61 = arith.constant 0 : index
    %157 = vector.load %arg20[%c0_60, %c0_61] : memref<16x32xf32, #tpu.memory_space<vmem>>, vector<16x32xf32>
    %c0_62 = arith.constant 0 : index
    %c0_63 = arith.constant 0 : index
    %c0_64 = arith.constant 0 : index
    %158 = vector.load %arg7[%c0_62, %c0_63, %c0_64] : memref<2x32x32xf32, #tpu.memory_space<vmem>>, vector<1x32x32xf32>
    %159 = vector.shape_cast %158 : vector<1x32x32xf32> to vector<32x32xf32>
    %cst_65 = arith.constant dense<0.000000e+00> : vector<16x32xf32>
    %160 = tpu.matmul %157, %159, %cst_65 {dimension_numbers = #tpu.dot_dimension_numbers<[1], [0], [0], [1], [0, 0, 1, 1], [], []>} : vector<16x32xf32>, vector<32x32xf32>, vector<16x32xf32> -> vector<16x32xf32>
    %c0_66 = arith.constant 0 : index
    %c0_67 = arith.constant 0 : index
    %c0_68 = arith.constant 0 : index
    %161 = vector.load %arg8[%c0_66, %c0_67, %c0_68] : memref<2x1x32xf32, #tpu.memory_space<vmem>>, vector<1x1x32xf32>
    %162 = vector.shape_cast %161 : vector<1x1x32xf32> to vector<1x32xf32>
    %163 = vector.broadcast %162 : vector<1x32xf32> to vector<16x32xf32>
    %164 = arith.addf %160, %163 : vector<16x32xf32>
    %165 = arith.addf %8, %164 : vector<16x32xf32>
    %cst_69 = arith.constant dense<0.000000e+00> : vector<16xf32>
    %166 = vector.multi_reduction <add>, %165, %cst_69 [1] : vector<16x32xf32> to vector<16xf32>
    %167 = vector.shape_cast %166 : vector<16xf32> to vector<16x1xf32>
    %cst_70 = arith.constant 3.200000e+01 : f32
    %168 = vector.broadcast %cst_70 : f32 to vector<16x1xf32>
    %169 = arith.divf %167, %168 : vector<16x1xf32>
    %170 = vector.broadcast %169 : vector<16x1xf32> to vector<16x32xf32>
    %171 = arith.subf %165, %170 : vector<16x32xf32>
    %172 = vector.broadcast %169 : vector<16x1xf32> to vector<16x32xf32>
    %173 = arith.subf %165, %172 : vector<16x32xf32>
    %174 = arith.mulf %171, %173 : vector<16x32xf32>
    %cst_71 = arith.constant dense<0.000000e+00> : vector<16xf32>
    %175 = vector.multi_reduction <add>, %174, %cst_71 [1] : vector<16x32xf32> to vector<16xf32>
    %176 = vector.shape_cast %175 : vector<16xf32> to vector<16x1xf32>
    %cst_72 = arith.constant 3.200000e+01 : f32
    %177 = vector.broadcast %cst_72 : f32 to vector<16x1xf32>
    %178 = arith.divf %176, %177 : vector<16x1xf32>
    %179 = vector.broadcast %169 : vector<16x1xf32> to vector<16x32xf32>
    %180 = arith.subf %165, %179 : vector<16x32xf32>
    %cst_73 = arith.constant 9.99999974E-6 : f32
    %181 = vector.broadcast %cst_73 : f32 to vector<16x1xf32>
    %182 = arith.addf %178, %181 : vector<16x1xf32>
    %183 = math.rsqrt %182 : vector<16x1xf32>
    %184 = vector.broadcast %183 : vector<16x1xf32> to vector<16x32xf32>
    %185 = arith.mulf %180, %184 : vector<16x32xf32>
    %c0_74 = arith.constant 0 : index
    %c0_75 = arith.constant 0 : index
    %c0_76 = arith.constant 0 : index
    %186 = vector.load %arg9[%c0_74, %c0_75, %c0_76] : memref<2x1x32xf32, #tpu.memory_space<vmem>>, vector<1x1x32xf32>
    %187 = vector.shape_cast %186 : vector<1x1x32xf32> to vector<1x32xf32>
    %188 = vector.broadcast %187 : vector<1x32xf32> to vector<16x32xf32>
    %189 = arith.mulf %185, %188 : vector<16x32xf32>
    %c0_77 = arith.constant 0 : index
    %c0_78 = arith.constant 0 : index
    %c0_79 = arith.constant 0 : index
    %190 = vector.load %arg10[%c0_77, %c0_78, %c0_79] : memref<2x1x32xf32, #tpu.memory_space<vmem>>, vector<1x1x32xf32>
    %191 = vector.shape_cast %190 : vector<1x1x32xf32> to vector<1x32xf32>
    %192 = vector.broadcast %191 : vector<1x32xf32> to vector<16x32xf32>
    %193 = arith.addf %189, %192 : vector<16x32xf32>
    %c0_80 = arith.constant 0 : index
    %c0_81 = arith.constant 0 : index
    %c0_82 = arith.constant 0 : index
    %194 = vector.load %arg11[%c0_80, %c0_81, %c0_82] : memref<2x32x64xf32, #tpu.memory_space<vmem>>, vector<1x32x64xf32>
    %195 = vector.shape_cast %194 : vector<1x32x64xf32> to vector<32x64xf32>
    %cst_83 = arith.constant dense<0.000000e+00> : vector<16x64xf32>
    %196 = tpu.matmul %193, %195, %cst_83 {dimension_numbers = #tpu.dot_dimension_numbers<[1], [0], [0], [1], [0, 0, 1, 1], [], []>} : vector<16x32xf32>, vector<32x64xf32>, vector<16x64xf32> -> vector<16x64xf32>
    %c0_84 = arith.constant 0 : index
    %c0_85 = arith.constant 0 : index
    %c0_86 = arith.constant 0 : index
    %197 = vector.load %arg12[%c0_84, %c0_85, %c0_86] : memref<2x1x64xf32, #tpu.memory_space<vmem>>, vector<1x1x64xf32>
    %198 = vector.shape_cast %197 : vector<1x1x64xf32> to vector<1x64xf32>
    %199 = vector.broadcast %198 : vector<1x64xf32> to vector<16x64xf32>
    %200 = arith.addf %196, %199 : vector<16x64xf32>
    %cst_87 = arith.constant 0.000000e+00 : f32
    %201 = vector.broadcast %cst_87 : f32 to vector<16x64xf32>
    %202 = arith.maximumf %200, %201 : vector<16x64xf32>
    %c0_88 = arith.constant 0 : index
    %c0_89 = arith.constant 0 : index
    %c0_90 = arith.constant 0 : index
    %203 = vector.load %arg13[%c0_88, %c0_89, %c0_90] : memref<2x64x32xf32, #tpu.memory_space<vmem>>, vector<1x64x32xf32>
    %204 = vector.shape_cast %203 : vector<1x64x32xf32> to vector<64x32xf32>
    %cst_91 = arith.constant dense<0.000000e+00> : vector<16x32xf32>
    %205 = tpu.matmul %202, %204, %cst_91 {dimension_numbers = #tpu.dot_dimension_numbers<[1], [0], [0], [1], [0, 0, 1, 1], [], []>} : vector<16x64xf32>, vector<64x32xf32>, vector<16x32xf32> -> vector<16x32xf32>
    %c0_92 = arith.constant 0 : index
    %c0_93 = arith.constant 0 : index
    %c0_94 = arith.constant 0 : index
    %206 = vector.load %arg14[%c0_92, %c0_93, %c0_94] : memref<2x1x32xf32, #tpu.memory_space<vmem>>, vector<1x1x32xf32>
    %207 = vector.shape_cast %206 : vector<1x1x32xf32> to vector<1x32xf32>
    %208 = vector.broadcast %207 : vector<1x32xf32> to vector<16x32xf32>
    %209 = arith.addf %205, %208 : vector<16x32xf32>
    %210 = arith.addf %193, %209 : vector<16x32xf32>
    %cst_95 = arith.constant dense<0.000000e+00> : vector<16xf32>
    %211 = vector.multi_reduction <add>, %210, %cst_95 [1] : vector<16x32xf32> to vector<16xf32>
    %212 = vector.shape_cast %211 : vector<16xf32> to vector<16x1xf32>
    %cst_96 = arith.constant 3.200000e+01 : f32
    %213 = vector.broadcast %cst_96 : f32 to vector<16x1xf32>
    %214 = arith.divf %212, %213 : vector<16x1xf32>
    %215 = vector.broadcast %214 : vector<16x1xf32> to vector<16x32xf32>
    %216 = arith.subf %210, %215 : vector<16x32xf32>
    %217 = vector.broadcast %214 : vector<16x1xf32> to vector<16x32xf32>
    %218 = arith.subf %210, %217 : vector<16x32xf32>
    %219 = arith.mulf %216, %218 : vector<16x32xf32>
    %cst_97 = arith.constant dense<0.000000e+00> : vector<16xf32>
    %220 = vector.multi_reduction <add>, %219, %cst_97 [1] : vector<16x32xf32> to vector<16xf32>
    %221 = vector.shape_cast %220 : vector<16xf32> to vector<16x1xf32>
    %cst_98 = arith.constant 3.200000e+01 : f32
    %222 = vector.broadcast %cst_98 : f32 to vector<16x1xf32>
    %223 = arith.divf %221, %222 : vector<16x1xf32>
    %224 = vector.broadcast %214 : vector<16x1xf32> to vector<16x32xf32>
    %225 = arith.subf %210, %224 : vector<16x32xf32>
    %cst_99 = arith.constant 9.99999974E-6 : f32
    %226 = vector.broadcast %cst_99 : f32 to vector<16x1xf32>
    %227 = arith.addf %223, %226 : vector<16x1xf32>
    %228 = math.rsqrt %227 : vector<16x1xf32>
    %229 = vector.broadcast %228 : vector<16x1xf32> to vector<16x32xf32>
    %230 = arith.mulf %225, %229 : vector<16x32xf32>
    %c0_100 = arith.constant 0 : index
    %c0_101 = arith.constant 0 : index
    %c0_102 = arith.constant 0 : index
    %231 = vector.load %arg15[%c0_100, %c0_101, %c0_102] : memref<2x1x32xf32, #tpu.memory_space<vmem>>, vector<1x1x32xf32>
    %232 = vector.shape_cast %231 : vector<1x1x32xf32> to vector<1x32xf32>
    %233 = vector.broadcast %232 : vector<1x32xf32> to vector<16x32xf32>
    %234 = arith.mulf %230, %233 : vector<16x32xf32>
    %c0_103 = arith.constant 0 : index
    %c0_104 = arith.constant 0 : index
    %c0_105 = arith.constant 0 : index
    %235 = vector.load %arg16[%c0_103, %c0_104, %c0_105] : memref<2x1x32xf32, #tpu.memory_space<vmem>>, vector<1x1x32xf32>
    %236 = vector.shape_cast %235 : vector<1x1x32xf32> to vector<1x32xf32>
    %237 = vector.broadcast %236 : vector<1x32xf32> to vector<16x32xf32>
    %238 = arith.addf %234, %237 : vector<16x32xf32>
    %c1 = arith.constant 1 : index
    %c0_106 = arith.constant 0 : index
    %c0_107 = arith.constant 0 : index
    %239 = vector.load %arg5[%c1, %c0_106, %c0_107] : memref<2x32x96xf32, #tpu.memory_space<vmem>>, vector<1x32x96xf32>
    %240 = vector.shape_cast %239 : vector<1x32x96xf32> to vector<32x96xf32>
    %cst_108 = arith.constant dense<0.000000e+00> : vector<16x96xf32>
    %241 = tpu.matmul %238, %240, %cst_108 {dimension_numbers = #tpu.dot_dimension_numbers<[1], [0], [0], [1], [0, 0, 1, 1], [], []>} : vector<16x32xf32>, vector<32x96xf32>, vector<16x96xf32> -> vector<16x96xf32>
    %c1_109 = arith.constant 1 : index
    %c0_110 = arith.constant 0 : index
    %c0_111 = arith.constant 0 : index
    %242 = vector.load %arg6[%c1_109, %c0_110, %c0_111] : memref<2x1x96xf32, #tpu.memory_space<vmem>>, vector<1x1x96xf32>
    %243 = vector.shape_cast %242 : vector<1x1x96xf32> to vector<1x96xf32>
    %244 = vector.broadcast %243 : vector<1x96xf32> to vector<16x96xf32>
    %245 = arith.addf %241, %244 : vector<16x96xf32>
    %246 = vector.extract_strided_slice %245 {offsets = [0, 0], sizes = [16, 32], strides = [1, 1]} : vector<16x96xf32> to vector<16x32xf32>
    %cst_112 = arith.constant 0.353553385 : f32
    %247 = vector.broadcast %cst_112 : f32 to vector<16x32xf32>
    %248 = arith.mulf %246, %247 : vector<16x32xf32>
    %249 = vector.extract_strided_slice %245 {offsets = [0, 32], sizes = [16, 32], strides = [1, 1]} : vector<16x96xf32> to vector<16x32xf32>
    %250 = vector.extract_strided_slice %245 {offsets = [0, 64], sizes = [16, 32], strides = [1, 1]} : vector<16x96xf32> to vector<16x32xf32>
    %251 = vector.extract_strided_slice %248 {offsets = [0, 0], sizes = [8, 8], strides = [1, 1]} : vector<16x32xf32> to vector<8x8xf32>
    %252 = vector.extract_strided_slice %249 {offsets = [0, 0], sizes = [8, 8], strides = [1, 1]} : vector<16x32xf32> to vector<8x8xf32>
    %253 = vector.extract_strided_slice %250 {offsets = [0, 0], sizes = [8, 8], strides = [1, 1]} : vector<16x32xf32> to vector<8x8xf32>
    %254 = tpu.transpose %252, [1, 0] : vector<8x8xf32> -> vector<8x8xf32>
    %cst_113 = arith.constant dense<0.000000e+00> : vector<8x8xf32>
    %255 = tpu.matmul %251, %254, %cst_113 {dimension_numbers = #tpu.dot_dimension_numbers<[1], [0], [0], [1], [0, 0, 1, 1], [], []>} : vector<8x8xf32>, vector<8x8xf32>, vector<8x8xf32> -> vector<8x8xf32>
    %cst_114 = arith.constant dense<0xFF800000> : vector<8xf32>
    %256 = vector.multi_reduction <maximumf>, %255, %cst_114 [1] : vector<8x8xf32> to vector<8xf32>
    %257 = vector.shape_cast %256 : vector<8xf32> to vector<8x1xf32>
    %258 = vector.broadcast %257 : vector<8x1xf32> to vector<8x8xf32>
    %259 = arith.subf %255, %258 : vector<8x8xf32>
    %260 = math.exp %259 : vector<8x8xf32>
    %cst_115 = arith.constant dense<0.000000e+00> : vector<8xf32>
    %261 = vector.multi_reduction <add>, %260, %cst_115 [1] : vector<8x8xf32> to vector<8xf32>
    %262 = vector.shape_cast %261 : vector<8xf32> to vector<8x1xf32>
    %cst_116 = arith.constant dense<0.000000e+00> : vector<8x8xf32>
    %263 = tpu.matmul %260, %253, %cst_116 {dimension_numbers = #tpu.dot_dimension_numbers<[1], [0], [0], [1], [0, 0, 1, 1], [], []>} : vector<8x8xf32>, vector<8x8xf32>, vector<8x8xf32> -> vector<8x8xf32>
    %264 = tpu.reciprocal %262 {approx = true} : vector<8x1xf32> -> vector<8x1xf32>
    %265 = vector.broadcast %264 : vector<8x1xf32> to vector<8x8xf32>
    %266 = arith.mulf %263, %265 : vector<8x8xf32>
    %c0_117 = arith.constant 0 : index
    %c0_118 = arith.constant 0 : index
    %267 = vector.load %arg20[%c0_117, %c0_118] : memref<16x32xf32, #tpu.memory_space<vmem>>, vector<8x8xf32>
    tpu.vector_store %arg20[%c0_117, %c0_118], %266 {strides = array<i32>} : memref<16x32xf32, #tpu.memory_space<vmem>>, vector<8x8xf32>,
    %268 = vector.extract_strided_slice %248 {offsets = [0, 8], sizes = [8, 8], strides = [1, 1]} : vector<16x32xf32> to vector<8x8xf32>
    %269 = vector.extract_strided_slice %249 {offsets = [0, 8], sizes = [8, 8], strides = [1, 1]} : vector<16x32xf32> to vector<8x8xf32>
    %270 = vector.extract_strided_slice %250 {offsets = [0, 8], sizes = [8, 8], strides = [1, 1]} : vector<16x32xf32> to vector<8x8xf32>
    %271 = tpu.transpose %269, [1, 0] : vector<8x8xf32> -> vector<8x8xf32>
    %cst_119 = arith.constant dense<0.000000e+00> : vector<8x8xf32>
    %272 = tpu.matmul %268, %271, %cst_119 {dimension_numbers = #tpu.dot_dimension_numbers<[1], [0], [0], [1], [0, 0, 1, 1], [], []>} : vector<8x8xf32>, vector<8x8xf32>, vector<8x8xf32> -> vector<8x8xf32>
    %cst_120 = arith.constant dense<0xFF800000> : vector<8xf32>
    %273 = vector.multi_reduction <maximumf>, %272, %cst_120 [1] : vector<8x8xf32> to vector<8xf32>
    %274 = vector.shape_cast %273 : vector<8xf32> to vector<8x1xf32>
    %275 = vector.broadcast %274 : vector<8x1xf32> to vector<8x8xf32>
    %276 = arith.subf %272, %275 : vector<8x8xf32>
    %277 = math.exp %276 : vector<8x8xf32>
    %cst_121 = arith.constant dense<0.000000e+00> : vector<8xf32>
    %278 = vector.multi_reduction <add>, %277, %cst_121 [1] : vector<8x8xf32> to vector<8xf32>
    %279 = vector.shape_cast %278 : vector<8xf32> to vector<8x1xf32>
    %cst_122 = arith.constant dense<0.000000e+00> : vector<8x8xf32>
    %280 = tpu.matmul %277, %270, %cst_122 {dimension_numbers = #tpu.dot_dimension_numbers<[1], [0], [0], [1], [0, 0, 1, 1], [], []>} : vector<8x8xf32>, vector<8x8xf32>, vector<8x8xf32> -> vector<8x8xf32>
    %281 = tpu.reciprocal %279 {approx = true} : vector<8x1xf32> -> vector<8x1xf32>
    %282 = vector.broadcast %281 : vector<8x1xf32> to vector<8x8xf32>
    %283 = arith.mulf %280, %282 : vector<8x8xf32>
    %c0_123 = arith.constant 0 : index
    %c8_124 = arith.constant 8 : index
    %284 = vector.load %arg20[%c0_123, %c8_124] : memref<16x32xf32, #tpu.memory_space<vmem>>, vector<8x8xf32>
    tpu.vector_store %arg20[%c0_123, %c8_124], %283 {strides = array<i32>} : memref<16x32xf32, #tpu.memory_space<vmem>>, vector<8x8xf32>,
    %285 = vector.extract_strided_slice %248 {offsets = [0, 16], sizes = [8, 8], strides = [1, 1]} : vector<16x32xf32> to vector<8x8xf32>
    %286 = vector.extract_strided_slice %249 {offsets = [0, 16], sizes = [8, 8], strides = [1, 1]} : vector<16x32xf32> to vector<8x8xf32>
    %287 = vector.extract_strided_slice %250 {offsets = [0, 16], sizes = [8, 8], strides = [1, 1]} : vector<16x32xf32> to vector<8x8xf32>
    %288 = tpu.transpose %286, [1, 0] : vector<8x8xf32> -> vector<8x8xf32>
    %cst_125 = arith.constant dense<0.000000e+00> : vector<8x8xf32>
    %289 = tpu.matmul %285, %288, %cst_125 {dimension_numbers = #tpu.dot_dimension_numbers<[1], [0], [0], [1], [0, 0, 1, 1], [], []>} : vector<8x8xf32>, vector<8x8xf32>, vector<8x8xf32> -> vector<8x8xf32>
    %cst_126 = arith.constant dense<0xFF800000> : vector<8xf32>
    %290 = vector.multi_reduction <maximumf>, %289, %cst_126 [1] : vector<8x8xf32> to vector<8xf32>
    %291 = vector.shape_cast %290 : vector<8xf32> to vector<8x1xf32>
    %292 = vector.broadcast %291 : vector<8x1xf32> to vector<8x8xf32>
    %293 = arith.subf %289, %292 : vector<8x8xf32>
    %294 = math.exp %293 : vector<8x8xf32>
    %cst_127 = arith.constant dense<0.000000e+00> : vector<8xf32>
    %295 = vector.multi_reduction <add>, %294, %cst_127 [1] : vector<8x8xf32> to vector<8xf32>
    %296 = vector.shape_cast %295 : vector<8xf32> to vector<8x1xf32>
    %cst_128 = arith.constant dense<0.000000e+00> : vector<8x8xf32>
    %297 = tpu.matmul %294, %287, %cst_128 {dimension_numbers = #tpu.dot_dimension_numbers<[1], [0], [0], [1], [0, 0, 1, 1], [], []>} : vector<8x8xf32>, vector<8x8xf32>, vector<8x8xf32> -> vector<8x8xf32>
    %298 = tpu.reciprocal %296 {approx = true} : vector<8x1xf32> -> vector<8x1xf32>
    %299 = vector.broadcast %298 : vector<8x1xf32> to vector<8x8xf32>
    %300 = arith.mulf %297, %299 : vector<8x8xf32>
    %c0_129 = arith.constant 0 : index
    %c16_130 = arith.constant 16 : index
    %301 = vector.load %arg20[%c0_129, %c16_130] : memref<16x32xf32, #tpu.memory_space<vmem>>, vector<8x8xf32>
    tpu.vector_store %arg20[%c0_129, %c16_130], %300 {strides = array<i32>} : memref<16x32xf32, #tpu.memory_space<vmem>>, vector<8x8xf32>,
    %302 = vector.extract_strided_slice %248 {offsets = [0, 24], sizes = [8, 8], strides = [1, 1]} : vector<16x32xf32> to vector<8x8xf32>
    %303 = vector.extract_strided_slice %249 {offsets = [0, 24], sizes = [8, 8], strides = [1, 1]} : vector<16x32xf32> to vector<8x8xf32>
    %304 = vector.extract_strided_slice %250 {offsets = [0, 24], sizes = [8, 8], strides = [1, 1]} : vector<16x32xf32> to vector<8x8xf32>
    %305 = tpu.transpose %303, [1, 0] : vector<8x8xf32> -> vector<8x8xf32>
    %cst_131 = arith.constant dense<0.000000e+00> : vector<8x8xf32>
    %306 = tpu.matmul %302, %305, %cst_131 {dimension_numbers = #tpu.dot_dimension_numbers<[1], [0], [0], [1], [0, 0, 1, 1], [], []>} : vector<8x8xf32>, vector<8x8xf32>, vector<8x8xf32> -> vector<8x8xf32>
    %cst_132 = arith.constant dense<0xFF800000> : vector<8xf32>
    %307 = vector.multi_reduction <maximumf>, %306, %cst_132 [1] : vector<8x8xf32> to vector<8xf32>
    %308 = vector.shape_cast %307 : vector<8xf32> to vector<8x1xf32>
    %309 = vector.broadcast %308 : vector<8x1xf32> to vector<8x8xf32>
    %310 = arith.subf %306, %309 : vector<8x8xf32>
    %311 = math.exp %310 : vector<8x8xf32>
    %cst_133 = arith.constant dense<0.000000e+00> : vector<8xf32>
    %312 = vector.multi_reduction <add>, %311, %cst_133 [1] : vector<8x8xf32> to vector<8xf32>
    %313 = vector.shape_cast %312 : vector<8xf32> to vector<8x1xf32>
    %cst_134 = arith.constant dense<0.000000e+00> : vector<8x8xf32>
    %314 = tpu.matmul %311, %304, %cst_134 {dimension_numbers = #tpu.dot_dimension_numbers<[1], [0], [0], [1], [0, 0, 1, 1], [], []>} : vector<8x8xf32>, vector<8x8xf32>, vector<8x8xf32> -> vector<8x8xf32>
    %315 = tpu.reciprocal %313 {approx = true} : vector<8x1xf32> -> vector<8x1xf32>
    %316 = vector.broadcast %315 : vector<8x1xf32> to vector<8x8xf32>
    %317 = arith.mulf %314, %316 : vector<8x8xf32>
    %c0_135 = arith.constant 0 : index
    %c24_136 = arith.constant 24 : index
    %318 = vector.load %arg20[%c0_135, %c24_136] : memref<16x32xf32, #tpu.memory_space<vmem>>, vector<8x8xf32>
    tpu.vector_store %arg20[%c0_135, %c24_136], %317 {strides = array<i32>} : memref<16x32xf32, #tpu.memory_space<vmem>>, vector<8x8xf32>,
    %319 = vector.extract_strided_slice %248 {offsets = [8, 0], sizes = [8, 8], strides = [1, 1]} : vector<16x32xf32> to vector<8x8xf32>
    %320 = vector.extract_strided_slice %249 {offsets = [8, 0], sizes = [8, 8], strides = [1, 1]} : vector<16x32xf32> to vector<8x8xf32>
    %321 = vector.extract_strided_slice %250 {offsets = [8, 0], sizes = [8, 8], strides = [1, 1]} : vector<16x32xf32> to vector<8x8xf32>
    %322 = tpu.transpose %320, [1, 0] : vector<8x8xf32> -> vector<8x8xf32>
    %cst_137 = arith.constant dense<0.000000e+00> : vector<8x8xf32>
    %323 = tpu.matmul %319, %322, %cst_137 {dimension_numbers = #tpu.dot_dimension_numbers<[1], [0], [0], [1], [0, 0, 1, 1], [], []>} : vector<8x8xf32>, vector<8x8xf32>, vector<8x8xf32> -> vector<8x8xf32>
    %cst_138 = arith.constant dense<0xFF800000> : vector<8xf32>
    %324 = vector.multi_reduction <maximumf>, %323, %cst_138 [1] : vector<8x8xf32> to vector<8xf32>
    %325 = vector.shape_cast %324 : vector<8xf32> to vector<8x1xf32>
    %326 = vector.broadcast %325 : vector<8x1xf32> to vector<8x8xf32>
    %327 = arith.subf %323, %326 : vector<8x8xf32>
    %328 = math.exp %327 : vector<8x8xf32>
    %cst_139 = arith.constant dense<0.000000e+00> : vector<8xf32>
    %329 = vector.multi_reduction <add>, %328, %cst_139 [1] : vector<8x8xf32> to vector<8xf32>
    %330 = vector.shape_cast %329 : vector<8xf32> to vector<8x1xf32>
    %cst_140 = arith.constant dense<0.000000e+00> : vector<8x8xf32>
    %331 = tpu.matmul %328, %321, %cst_140 {dimension_numbers = #tpu.dot_dimension_numbers<[1], [0], [0], [1], [0, 0, 1, 1], [], []>} : vector<8x8xf32>, vector<8x8xf32>, vector<8x8xf32> -> vector<8x8xf32>
    %332 = tpu.reciprocal %330 {approx = true} : vector<8x1xf32> -> vector<8x1xf32>
    %333 = vector.broadcast %332 : vector<8x1xf32> to vector<8x8xf32>
    %334 = arith.mulf %331, %333 : vector<8x8xf32>
    %c8_141 = arith.constant 8 : index
    %c0_142 = arith.constant 0 : index
    %335 = vector.load %arg20[%c8_141, %c0_142] : memref<16x32xf32, #tpu.memory_space<vmem>>, vector<8x8xf32>
    tpu.vector_store %arg20[%c8_141, %c0_142], %334 {strides = array<i32>} : memref<16x32xf32, #tpu.memory_space<vmem>>, vector<8x8xf32>,
    %336 = vector.extract_strided_slice %248 {offsets = [8, 8], sizes = [8, 8], strides = [1, 1]} : vector<16x32xf32> to vector<8x8xf32>
    %337 = vector.extract_strided_slice %249 {offsets = [8, 8], sizes = [8, 8], strides = [1, 1]} : vector<16x32xf32> to vector<8x8xf32>
    %338 = vector.extract_strided_slice %250 {offsets = [8, 8], sizes = [8, 8], strides = [1, 1]} : vector<16x32xf32> to vector<8x8xf32>
    %339 = tpu.transpose %337, [1, 0] : vector<8x8xf32> -> vector<8x8xf32>
    %cst_143 = arith.constant dense<0.000000e+00> : vector<8x8xf32>
    %340 = tpu.matmul %336, %339, %cst_143 {dimension_numbers = #tpu.dot_dimension_numbers<[1], [0], [0], [1], [0, 0, 1, 1], [], []>} : vector<8x8xf32>, vector<8x8xf32>, vector<8x8xf32> -> vector<8x8xf32>
    %cst_144 = arith.constant dense<0xFF800000> : vector<8xf32>
    %341 = vector.multi_reduction <maximumf>, %340, %cst_144 [1] : vector<8x8xf32> to vector<8xf32>
    %342 = vector.shape_cast %341 : vector<8xf32> to vector<8x1xf32>
    %343 = vector.broadcast %342 : vector<8x1xf32> to vector<8x8xf32>
    %344 = arith.subf %340, %343 : vector<8x8xf32>
    %345 = math.exp %344 : vector<8x8xf32>
    %cst_145 = arith.constant dense<0.000000e+00> : vector<8xf32>
    %346 = vector.multi_reduction <add>, %345, %cst_145 [1] : vector<8x8xf32> to vector<8xf32>
    %347 = vector.shape_cast %346 : vector<8xf32> to vector<8x1xf32>
    %cst_146 = arith.constant dense<0.000000e+00> : vector<8x8xf32>
    %348 = tpu.matmul %345, %338, %cst_146 {dimension_numbers = #tpu.dot_dimension_numbers<[1], [0], [0], [1], [0, 0, 1, 1], [], []>} : vector<8x8xf32>, vector<8x8xf32>, vector<8x8xf32> -> vector<8x8xf32>
    %349 = tpu.reciprocal %347 {approx = true} : vector<8x1xf32> -> vector<8x1xf32>
    %350 = vector.broadcast %349 : vector<8x1xf32> to vector<8x8xf32>
    %351 = arith.mulf %348, %350 : vector<8x8xf32>
    %c8_147 = arith.constant 8 : index
    %c8_148 = arith.constant 8 : index
    %352 = vector.load %arg20[%c8_147, %c8_148] : memref<16x32xf32, #tpu.memory_space<vmem>>, vector<8x8xf32>
    tpu.vector_store %arg20[%c8_147, %c8_148], %351 {strides = array<i32>} : memref<16x32xf32, #tpu.memory_space<vmem>>, vector<8x8xf32>,
    %353 = vector.extract_strided_slice %248 {offsets = [8, 16], sizes = [8, 8], strides = [1, 1]} : vector<16x32xf32> to vector<8x8xf32>
    %354 = vector.extract_strided_slice %249 {offsets = [8, 16], sizes = [8, 8], strides = [1, 1]} : vector<16x32xf32> to vector<8x8xf32>
    %355 = vector.extract_strided_slice %250 {offsets = [8, 16], sizes = [8, 8], strides = [1, 1]} : vector<16x32xf32> to vector<8x8xf32>
    %356 = tpu.transpose %354, [1, 0] : vector<8x8xf32> -> vector<8x8xf32>
    %cst_149 = arith.constant dense<0.000000e+00> : vector<8x8xf32>
    %357 = tpu.matmul %353, %356, %cst_149 {dimension_numbers = #tpu.dot_dimension_numbers<[1], [0], [0], [1], [0, 0, 1, 1], [], []>} : vector<8x8xf32>, vector<8x8xf32>, vector<8x8xf32> -> vector<8x8xf32>
    %cst_150 = arith.constant dense<0xFF800000> : vector<8xf32>
    %358 = vector.multi_reduction <maximumf>, %357, %cst_150 [1] : vector<8x8xf32> to vector<8xf32>
    %359 = vector.shape_cast %358 : vector<8xf32> to vector<8x1xf32>
    %360 = vector.broadcast %359 : vector<8x1xf32> to vector<8x8xf32>
    %361 = arith.subf %357, %360 : vector<8x8xf32>
    %362 = math.exp %361 : vector<8x8xf32>
    %cst_151 = arith.constant dense<0.000000e+00> : vector<8xf32>
    %363 = vector.multi_reduction <add>, %362, %cst_151 [1] : vector<8x8xf32> to vector<8xf32>
    %364 = vector.shape_cast %363 : vector<8xf32> to vector<8x1xf32>
    %cst_152 = arith.constant dense<0.000000e+00> : vector<8x8xf32>
    %365 = tpu.matmul %362, %355, %cst_152 {dimension_numbers = #tpu.dot_dimension_numbers<[1], [0], [0], [1], [0, 0, 1, 1], [], []>} : vector<8x8xf32>, vector<8x8xf32>, vector<8x8xf32> -> vector<8x8xf32>
    %366 = tpu.reciprocal %364 {approx = true} : vector<8x1xf32> -> vector<8x1xf32>
    %367 = vector.broadcast %366 : vector<8x1xf32> to vector<8x8xf32>
    %368 = arith.mulf %365, %367 : vector<8x8xf32>
    %c8_153 = arith.constant 8 : index
    %c16_154 = arith.constant 16 : index
    %369 = vector.load %arg20[%c8_153, %c16_154] : memref<16x32xf32, #tpu.memory_space<vmem>>, vector<8x8xf32>
    tpu.vector_store %arg20[%c8_153, %c16_154], %368 {strides = array<i32>} : memref<16x32xf32, #tpu.memory_space<vmem>>, vector<8x8xf32>,
    %370 = vector.extract_strided_slice %248 {offsets = [8, 24], sizes = [8, 8], strides = [1, 1]} : vector<16x32xf32> to vector<8x8xf32>
    %371 = vector.extract_strided_slice %249 {offsets = [8, 24], sizes = [8, 8], strides = [1, 1]} : vector<16x32xf32> to vector<8x8xf32>
    %372 = vector.extract_strided_slice %250 {offsets = [8, 24], sizes = [8, 8], strides = [1, 1]} : vector<16x32xf32> to vector<8x8xf32>
    %373 = tpu.transpose %371, [1, 0] : vector<8x8xf32> -> vector<8x8xf32>
    %cst_155 = arith.constant dense<0.000000e+00> : vector<8x8xf32>
    %374 = tpu.matmul %370, %373, %cst_155 {dimension_numbers = #tpu.dot_dimension_numbers<[1], [0], [0], [1], [0, 0, 1, 1], [], []>} : vector<8x8xf32>, vector<8x8xf32>, vector<8x8xf32> -> vector<8x8xf32>
    %cst_156 = arith.constant dense<0xFF800000> : vector<8xf32>
    %375 = vector.multi_reduction <maximumf>, %374, %cst_156 [1] : vector<8x8xf32> to vector<8xf32>
    %376 = vector.shape_cast %375 : vector<8xf32> to vector<8x1xf32>
    %377 = vector.broadcast %376 : vector<8x1xf32> to vector<8x8xf32>
    %378 = arith.subf %374, %377 : vector<8x8xf32>
    %379 = math.exp %378 : vector<8x8xf32>
    %cst_157 = arith.constant dense<0.000000e+00> : vector<8xf32>
    %380 = vector.multi_reduction <add>, %379, %cst_157 [1] : vector<8x8xf32> to vector<8xf32>
    %381 = vector.shape_cast %380 : vector<8xf32> to vector<8x1xf32>
    %cst_158 = arith.constant dense<0.000000e+00> : vector<8x8xf32>
    %382 = tpu.matmul %379, %372, %cst_158 {dimension_numbers = #tpu.dot_dimension_numbers<[1], [0], [0], [1], [0, 0, 1, 1], [], []>} : vector<8x8xf32>, vector<8x8xf32>, vector<8x8xf32> -> vector<8x8xf32>
    %383 = tpu.reciprocal %381 {approx = true} : vector<8x1xf32> -> vector<8x1xf32>
    %384 = vector.broadcast %383 : vector<8x1xf32> to vector<8x8xf32>
    %385 = arith.mulf %382, %384 : vector<8x8xf32>
    %c8_159 = arith.constant 8 : index
    %c24_160 = arith.constant 24 : index
    %386 = vector.load %arg20[%c8_159, %c24_160] : memref<16x32xf32, #tpu.memory_space<vmem>>, vector<8x8xf32>
    tpu.vector_store %arg20[%c8_159, %c24_160], %385 {strides = array<i32>} : memref<16x32xf32, #tpu.memory_space<vmem>>, vector<8x8xf32>,
    %c0_161 = arith.constant 0 : index
    %c0_162 = arith.constant 0 : index
    %387 = vector.load %arg20[%c0_161, %c0_162] : memref<16x32xf32, #tpu.memory_space<vmem>>, vector<16x32xf32>
    %c1_163 = arith.constant 1 : index
    %c0_164 = arith.constant 0 : index
    %c0_165 = arith.constant 0 : index
    %388 = vector.load %arg7[%c1_163, %c0_164, %c0_165] : memref<2x32x32xf32, #tpu.memory_space<vmem>>, vector<1x32x32xf32>
    %389 = vector.shape_cast %388 : vector<1x32x32xf32> to vector<32x32xf32>
    %cst_166 = arith.constant dense<0.000000e+00> : vector<16x32xf32>
    %390 = tpu.matmul %387, %389, %cst_166 {dimension_numbers = #tpu.dot_dimension_numbers<[1], [0], [0], [1], [0, 0, 1, 1], [], []>} : vector<16x32xf32>, vector<32x32xf32>, vector<16x32xf32> -> vector<16x32xf32>
    %c1_167 = arith.constant 1 : index
    %c0_168 = arith.constant 0 : index
    %c0_169 = arith.constant 0 : index
    %391 = vector.load %arg8[%c1_167, %c0_168, %c0_169] : memref<2x1x32xf32, #tpu.memory_space<vmem>>, vector<1x1x32xf32>
    %392 = vector.shape_cast %391 : vector<1x1x32xf32> to vector<1x32xf32>
    %393 = vector.broadcast %392 : vector<1x32xf32> to vector<16x32xf32>
    %394 = arith.addf %390, %393 : vector<16x32xf32>
    %395 = arith.addf %238, %394 : vector<16x32xf32>
    %cst_170 = arith.constant dense<0.000000e+00> : vector<16xf32>
    %396 = vector.multi_reduction <add>, %395, %cst_170 [1] : vector<16x32xf32> to vector<16xf32>
    %397 = vector.shape_cast %396 : vector<16xf32> to vector<16x1xf32>
    %cst_171 = arith.constant 3.200000e+01 : f32
    %398 = vector.broadcast %cst_171 : f32 to vector<16x1xf32>
    %399 = arith.divf %397, %398 : vector<16x1xf32>
    %400 = vector.broadcast %399 : vector<16x1xf32> to vector<16x32xf32>
    %401 = arith.subf %395, %400 : vector<16x32xf32>
    %402 = vector.broadcast %399 : vector<16x1xf32> to vector<16x32xf32>
    %403 = arith.subf %395, %402 : vector<16x32xf32>
    %404 = arith.mulf %401, %403 : vector<16x32xf32>
    %cst_172 = arith.constant dense<0.000000e+00> : vector<16xf32>
    %405 = vector.multi_reduction <add>, %404, %cst_172 [1] : vector<16x32xf32> to vector<16xf32>
    %406 = vector.shape_cast %405 : vector<16xf32> to vector<16x1xf32>
    %cst_173 = arith.constant 3.200000e+01 : f32
    %407 = vector.broadcast %cst_173 : f32 to vector<16x1xf32>
    %408 = arith.divf %406, %407 : vector<16x1xf32>
    %409 = vector.broadcast %399 : vector<16x1xf32> to vector<16x32xf32>
    %410 = arith.subf %395, %409 : vector<16x32xf32>
    %cst_174 = arith.constant 9.99999974E-6 : f32
    %411 = vector.broadcast %cst_174 : f32 to vector<16x1xf32>
    %412 = arith.addf %408, %411 : vector<16x1xf32>
    %413 = math.rsqrt %412 : vector<16x1xf32>
    %414 = vector.broadcast %413 : vector<16x1xf32> to vector<16x32xf32>
    %415 = arith.mulf %410, %414 : vector<16x32xf32>
    %c1_175 = arith.constant 1 : index
    %c0_176 = arith.constant 0 : index
    %c0_177 = arith.constant 0 : index
    %416 = vector.load %arg9[%c1_175, %c0_176, %c0_177] : memref<2x1x32xf32, #tpu.memory_space<vmem>>, vector<1x1x32xf32>
    %417 = vector.shape_cast %416 : vector<1x1x32xf32> to vector<1x32xf32>
    %418 = vector.broadcast %417 : vector<1x32xf32> to vector<16x32xf32>
    %419 = arith.mulf %415, %418 : vector<16x32xf32>
    %c1_178 = arith.constant 1 : index
    %c0_179 = arith.constant 0 : index
    %c0_180 = arith.constant 0 : index
    %420 = vector.load %arg10[%c1_178, %c0_179, %c0_180] : memref<2x1x32xf32, #tpu.memory_space<vmem>>, vector<1x1x32xf32>
    %421 = vector.shape_cast %420 : vector<1x1x32xf32> to vector<1x32xf32>
    %422 = vector.broadcast %421 : vector<1x32xf32> to vector<16x32xf32>
    %423 = arith.addf %419, %422 : vector<16x32xf32>
    %c1_181 = arith.constant 1 : index
    %c0_182 = arith.constant 0 : index
    %c0_183 = arith.constant 0 : index
    %424 = vector.load %arg11[%c1_181, %c0_182, %c0_183] : memref<2x32x64xf32, #tpu.memory_space<vmem>>, vector<1x32x64xf32>
    %425 = vector.shape_cast %424 : vector<1x32x64xf32> to vector<32x64xf32>
    %cst_184 = arith.constant dense<0.000000e+00> : vector<16x64xf32>
    %426 = tpu.matmul %423, %425, %cst_184 {dimension_numbers = #tpu.dot_dimension_numbers<[1], [0], [0], [1], [0, 0, 1, 1], [], []>} : vector<16x32xf32>, vector<32x64xf32>, vector<16x64xf32> -> vector<16x64xf32>
    %c1_185 = arith.constant 1 : index
    %c0_186 = arith.constant 0 : index
    %c0_187 = arith.constant 0 : index
    %427 = vector.load %arg12[%c1_185, %c0_186, %c0_187] : memref<2x1x64xf32, #tpu.memory_space<vmem>>, vector<1x1x64xf32>
    %428 = vector.shape_cast %427 : vector<1x1x64xf32> to vector<1x64xf32>
    %429 = vector.broadcast %428 : vector<1x64xf32> to vector<16x64xf32>
    %430 = arith.addf %426, %429 : vector<16x64xf32>
    %cst_188 = arith.constant 0.000000e+00 : f32
    %431 = vector.broadcast %cst_188 : f32 to vector<16x64xf32>
    %432 = arith.maximumf %430, %431 : vector<16x64xf32>
    %c1_189 = arith.constant 1 : index
    %c0_190 = arith.constant 0 : index
    %c0_191 = arith.constant 0 : index
    %433 = vector.load %arg13[%c1_189, %c0_190, %c0_191] : memref<2x64x32xf32, #tpu.memory_space<vmem>>, vector<1x64x32xf32>
    %434 = vector.shape_cast %433 : vector<1x64x32xf32> to vector<64x32xf32>
    %cst_192 = arith.constant dense<0.000000e+00> : vector<16x32xf32>
    %435 = tpu.matmul %432, %434, %cst_192 {dimension_numbers = #tpu.dot_dimension_numbers<[1], [0], [0], [1], [0, 0, 1, 1], [], []>} : vector<16x64xf32>, vector<64x32xf32>, vector<16x32xf32> -> vector<16x32xf32>
    %c1_193 = arith.constant 1 : index
    %c0_194 = arith.constant 0 : index
    %c0_195 = arith.constant 0 : index
    %436 = vector.load %arg14[%c1_193, %c0_194, %c0_195] : memref<2x1x32xf32, #tpu.memory_space<vmem>>, vector<1x1x32xf32>
    %437 = vector.shape_cast %436 : vector<1x1x32xf32> to vector<1x32xf32>
    %438 = vector.broadcast %437 : vector<1x32xf32> to vector<16x32xf32>
    %439 = arith.addf %435, %438 : vector<16x32xf32>
    %440 = arith.addf %423, %439 : vector<16x32xf32>
    %cst_196 = arith.constant dense<0.000000e+00> : vector<16xf32>
    %441 = vector.multi_reduction <add>, %440, %cst_196 [1] : vector<16x32xf32> to vector<16xf32>
    %442 = vector.shape_cast %441 : vector<16xf32> to vector<16x1xf32>
    %cst_197 = arith.constant 3.200000e+01 : f32
    %443 = vector.broadcast %cst_197 : f32 to vector<16x1xf32>
    %444 = arith.divf %442, %443 : vector<16x1xf32>
    %445 = vector.broadcast %444 : vector<16x1xf32> to vector<16x32xf32>
    %446 = arith.subf %440, %445 : vector<16x32xf32>
    %447 = vector.broadcast %444 : vector<16x1xf32> to vector<16x32xf32>
    %448 = arith.subf %440, %447 : vector<16x32xf32>
    %449 = arith.mulf %446, %448 : vector<16x32xf32>
    %cst_198 = arith.constant dense<0.000000e+00> : vector<16xf32>
    %450 = vector.multi_reduction <add>, %449, %cst_198 [1] : vector<16x32xf32> to vector<16xf32>
    %451 = vector.shape_cast %450 : vector<16xf32> to vector<16x1xf32>
    %cst_199 = arith.constant 3.200000e+01 : f32
    %452 = vector.broadcast %cst_199 : f32 to vector<16x1xf32>
    %453 = arith.divf %451, %452 : vector<16x1xf32>
    %454 = vector.broadcast %444 : vector<16x1xf32> to vector<16x32xf32>
    %455 = arith.subf %440, %454 : vector<16x32xf32>
    %cst_200 = arith.constant 9.99999974E-6 : f32
    %456 = vector.broadcast %cst_200 : f32 to vector<16x1xf32>
    %457 = arith.addf %453, %456 : vector<16x1xf32>
    %458 = math.rsqrt %457 : vector<16x1xf32>
    %459 = vector.broadcast %458 : vector<16x1xf32> to vector<16x32xf32>
    %460 = arith.mulf %455, %459 : vector<16x32xf32>
    %c1_201 = arith.constant 1 : index
    %c0_202 = arith.constant 0 : index
    %c0_203 = arith.constant 0 : index
    %461 = vector.load %arg15[%c1_201, %c0_202, %c0_203] : memref<2x1x32xf32, #tpu.memory_space<vmem>>, vector<1x1x32xf32>
    %462 = vector.shape_cast %461 : vector<1x1x32xf32> to vector<1x32xf32>
    %463 = vector.broadcast %462 : vector<1x32xf32> to vector<16x32xf32>
    %464 = arith.mulf %460, %463 : vector<16x32xf32>
    %c1_204 = arith.constant 1 : index
    %c0_205 = arith.constant 0 : index
    %c0_206 = arith.constant 0 : index
    %465 = vector.load %arg16[%c1_204, %c0_205, %c0_206] : memref<2x1x32xf32, #tpu.memory_space<vmem>>, vector<1x1x32xf32>
    %466 = vector.shape_cast %465 : vector<1x1x32xf32> to vector<1x32xf32>
    %467 = vector.broadcast %466 : vector<1x32xf32> to vector<16x32xf32>
    %468 = arith.addf %464, %467 : vector<16x32xf32>
    %469 = vector.extract_strided_slice %468 {offsets = [0, 0], sizes = [1, 32], strides = [1, 1]} : vector<16x32xf32> to vector<1x32xf32>
    %470 = vector.extract_strided_slice %468 {offsets = [8, 0], sizes = [1, 32], strides = [1, 1]} : vector<16x32xf32> to vector<1x32xf32>
    %471 = tpu.concatenate %469, %470 in 0 : vector<1x32xf32>, vector<1x32xf32> -> vector<2x32xf32>
    %472 = vector.extract_strided_slice %468 {offsets = [1, 0], sizes = [1, 32], strides = [1, 1]} : vector<16x32xf32> to vector<1x32xf32>
    %473 = vector.extract_strided_slice %468 {offsets = [9, 0], sizes = [1, 32], strides = [1, 1]} : vector<16x32xf32> to vector<1x32xf32>
    %474 = tpu.concatenate %472, %473 in 0 : vector<1x32xf32>, vector<1x32xf32> -> vector<2x32xf32>
    %475 = vector.extract_strided_slice %468 {offsets = [2, 0], sizes = [1, 32], strides = [1, 1]} : vector<16x32xf32> to vector<1x32xf32>
    %476 = vector.extract_strided_slice %468 {offsets = [10, 0], sizes = [1, 32], strides = [1, 1]} : vector<16x32xf32> to vector<1x32xf32>
    %477 = tpu.concatenate %475, %476 in 0 : vector<1x32xf32>, vector<1x32xf32> -> vector<2x32xf32>
    %478 = vector.extract_strided_slice %468 {offsets = [3, 0], sizes = [1, 32], strides = [1, 1]} : vector<16x32xf32> to vector<1x32xf32>
    %479 = vector.extract_strided_slice %468 {offsets = [11, 0], sizes = [1, 32], strides = [1, 1]} : vector<16x32xf32> to vector<1x32xf32>
    %480 = tpu.concatenate %478, %479 in 0 : vector<1x32xf32>, vector<1x32xf32> -> vector<2x32xf32>
    %481 = vector.extract_strided_slice %468 {offsets = [4, 0], sizes = [1, 32], strides = [1, 1]} : vector<16x32xf32> to vector<1x32xf32>
    %482 = vector.extract_strided_slice %468 {offsets = [12, 0], sizes = [1, 32], strides = [1, 1]} : vector<16x32xf32> to vector<1x32xf32>
    %483 = tpu.concatenate %481, %482 in 0 : vector<1x32xf32>, vector<1x32xf32> -> vector<2x32xf32>
    %484 = vector.extract_strided_slice %468 {offsets = [5, 0], sizes = [1, 32], strides = [1, 1]} : vector<16x32xf32> to vector<1x32xf32>
    %485 = vector.extract_strided_slice %468 {offsets = [13, 0], sizes = [1, 32], strides = [1, 1]} : vector<16x32xf32> to vector<1x32xf32>
    %486 = tpu.concatenate %484, %485 in 0 : vector<1x32xf32>, vector<1x32xf32> -> vector<2x32xf32>
    %487 = vector.extract_strided_slice %468 {offsets = [6, 0], sizes = [1, 32], strides = [1, 1]} : vector<16x32xf32> to vector<1x32xf32>
    %488 = vector.extract_strided_slice %468 {offsets = [14, 0], sizes = [1, 32], strides = [1, 1]} : vector<16x32xf32> to vector<1x32xf32>
    %489 = tpu.concatenate %487, %488 in 0 : vector<1x32xf32>, vector<1x32xf32> -> vector<2x32xf32>
    %490 = vector.extract_strided_slice %468 {offsets = [7, 0], sizes = [1, 32], strides = [1, 1]} : vector<16x32xf32> to vector<1x32xf32>
    %491 = vector.extract_strided_slice %468 {offsets = [15, 0], sizes = [1, 32], strides = [1, 1]} : vector<16x32xf32> to vector<1x32xf32>
    %492 = tpu.concatenate %490, %491 in 0 : vector<1x32xf32>, vector<1x32xf32> -> vector<2x32xf32>
    %493 = tpu.concatenate %471, %474, %477, %480, %483, %486, %489, %492 in 1 : vector<2x32xf32>, vector<2x32xf32>, vector<2x32xf32>, vector<2x32xf32>, vector<2x32xf32>, vector<2x32xf32>, vector<2x32xf32>, vector<2x32xf32> -> vector<2x256xf32>
    %c0_207 = arith.constant 0 : index
    %c0_208 = arith.constant 0 : index
    %494 = vector.load %arg17[%c0_207, %c0_208] : memref<256x128xf32, #tpu.memory_space<vmem>>, vector<256x128xf32>
    %cst_209 = arith.constant dense<0.000000e+00> : vector<2x128xf32>
    %495 = tpu.matmul %493, %494, %cst_209 {dimension_numbers = #tpu.dot_dimension_numbers<[1], [0], [0], [1], [0, 0, 1, 1], [], []>} : vector<2x256xf32>, vector<256x128xf32>, vector<2x128xf32> -> vector<2x128xf32>
    %c0_210 = arith.constant 0 : index
    %c0_211 = arith.constant 0 : index
    %496 = vector.load %arg18[%c0_210, %c0_211] : memref<1x128xf32, #tpu.memory_space<vmem>>, vector<1x128xf32>
    %497 = vector.broadcast %496 : vector<1x128xf32> to vector<2x128xf32>
    %498 = arith.addf %495, %497 : vector<2x128xf32>
    %c0_212 = arith.constant 0 : index
    %c0_213 = arith.constant 0 : index
    %499 = vector.load %arg19[%c0_212, %c0_213] : memref<2x128xf32, #tpu.memory_space<vmem>>, vector<2x128xf32>
    tpu.vector_store %arg19[%c0_212, %c0_213], %498 {strides = array<i32>} : memref<2x128xf32, #tpu.memory_space<vmem>>, vector<2x128xf32>,
    return
  }
  func.func @transform_0(%arg0: i32) -> (i32, i32) {
    %c0_i32 = arith.constant 0 : i32
    %c0_i32_0 = arith.constant 0 : i32
    %c0_i32_1 = arith.constant 0 : i32
    return %c0_i32, %c0_i32_0 : i32, i32
  }
  func.func @transform_1(%arg0: i32) -> (i32, i32) {
    %c0_i32 = arith.constant 0 : i32
    %c0_i32_0 = arith.constant 0 : i32
    %c0_i32_1 = arith.constant 0 : i32
    return %c0_i32, %c0_i32_0 : i32, i32
  }
  func.func @transform_2(%arg0: i32) -> (i32, i32) {
    %c0_i32 = arith.constant 0 : i32
    %c0_i32_0 = arith.constant 0 : i32
    %c0_i32_1 = arith.constant 0 : i32
    return %c0_i32, %c0_i32_0 : i32, i32
  }
  func.func @transform_3(%arg0: i32) -> (i32, i32) {
    %c0_i32 = arith.constant 0 : i32
    %c0_i32_0 = arith.constant 0 : i32
    %c0_i32_1 = arith.constant 0 : i32
    return %c0_i32, %c0_i32_0 : i32, i32
  }
  func.func @transform_4(%arg0: i32) -> (i32, i32, i32) {
    %c0_i32 = arith.constant 0 : i32
    %c0_i32_0 = arith.constant 0 : i32
    %c0_i32_1 = arith.constant 0 : i32
    %c0_i32_2 = arith.constant 0 : i32
    return %c0_i32, %c0_i32_0, %c0_i32_1 : i32, i32, i32
  }
  func.func @transform_5(%arg0: i32) -> (i32, i32, i32) {
    %c0_i32 = arith.constant 0 : i32
    %c0_i32_0 = arith.constant 0 : i32
    %c0_i32_1 = arith.constant 0 : i32
    %c0_i32_2 = arith.constant 0 : i32
    return %c0_i32, %c0_i32_0, %c0_i32_1 : i32, i32, i32
  }
  func.func @transform_6(%arg0: i32) -> (i32, i32, i32) {
    %c0_i32 = arith.constant 0 : i32
    %c0_i32_0 = arith.constant 0 : i32
    %c0_i32_1 = arith.constant 0 : i32
    %c0_i32_2 = arith.constant 0 : i32
    return %c0_i32, %c0_i32_0, %c0_i32_1 : i32, i32, i32
  }
  func.func @transform_7(%arg0: i32) -> (i32, i32, i32) {
    %c0_i32 = arith.constant 0 : i32
    %c0_i32_0 = arith.constant 0 : i32
    %c0_i32_1 = arith.constant 0 : i32
    %c0_i32_2 = arith.constant 0 : i32
    return %c0_i32, %c0_i32_0, %c0_i32_1 : i32, i32, i32
  }
  func.func @transform_8(%arg0: i32) -> (i32, i32, i32) {
    %c0_i32 = arith.constant 0 : i32
    %c0_i32_0 = arith.constant 0 : i32
    %c0_i32_1 = arith.constant 0 : i32
    %c0_i32_2 = arith.constant 0 : i32
    return %c0_i32, %c0_i32_0, %c0_i32_1 : i32, i32, i32
  }
  func.func @transform_9(%arg0: i32) -> (i32, i32, i32) {
    %c0_i32 = arith.constant 0 : i32
    %c0_i32_0 = arith.constant 0 : i32
    %c0_i32_1 = arith.constant 0 : i32
    %c0_i32_2 = arith.constant 0 : i32
    return %c0_i32, %c0_i32_0, %c0_i32_1 : i32, i32, i32
  }
  func.func @transform_10(%arg0: i32) -> (i32, i32, i32) {
    %c0_i32 = arith.constant 0 : i32
    %c0_i32_0 = arith.constant 0 : i32
    %c0_i32_1 = arith.constant 0 : i32
    %c0_i32_2 = arith.constant 0 : i32
    return %c0_i32, %c0_i32_0, %c0_i32_1 : i32, i32, i32
  }
  func.func @transform_11(%arg0: i32) -> (i32, i32, i32) {
    %c0_i32 = arith.constant 0 : i32
    %c0_i32_0 = arith.constant 0 : i32
    %c0_i32_1 = arith.constant 0 : i32
    %c0_i32_2 = arith.constant 0 : i32
    return %c0_i32, %c0_i32_0, %c0_i32_1 : i32, i32, i32
  }
  func.func @transform_12(%arg0: i32) -> (i32, i32, i32) {
    %c0_i32 = arith.constant 0 : i32
    %c0_i32_0 = arith.constant 0 : i32
    %c0_i32_1 = arith.constant 0 : i32
    %c0_i32_2 = arith.constant 0 : i32
    return %c0_i32, %c0_i32_0, %c0_i32_1 : i32, i32, i32
  }
  func.func @transform_13(%arg0: i32) -> (i32, i32, i32) {
    %c0_i32 = arith.constant 0 : i32
    %c0_i32_0 = arith.constant 0 : i32
    %c0_i32_1 = arith.constant 0 : i32
    %c0_i32_2 = arith.constant 0 : i32
    return %c0_i32, %c0_i32_0, %c0_i32_1 : i32, i32, i32
  }
  func.func @transform_14(%arg0: i32) -> (i32, i32, i32) {
    %c0_i32 = arith.constant 0 : i32
    %c0_i32_0 = arith.constant 0 : i32
    %c0_i32_1 = arith.constant 0 : i32
    %c0_i32_2 = arith.constant 0 : i32
    return %c0_i32, %c0_i32_0, %c0_i32_1 : i32, i32, i32
  }
  func.func @transform_15(%arg0: i32) -> (i32, i32, i32) {
    %c0_i32 = arith.constant 0 : i32
    %c0_i32_0 = arith.constant 0 : i32
    %c0_i32_1 = arith.constant 0 : i32
    %c0_i32_2 = arith.constant 0 : i32
    return %c0_i32, %c0_i32_0, %c0_i32_1 : i32, i32, i32
  }
  func.func @transform_16(%arg0: i32) -> (i32, i32) {
    %c0_i32 = arith.constant 0 : i32
    %c0_i32_0 = arith.constant 0 : i32
    %c0_i32_1 = arith.constant 0 : i32
    return %c0_i32, %c0_i32_0 : i32, i32
  }
  func.func @transform_17(%arg0: i32) -> (i32, i32) {
    %c0_i32 = arith.constant 0 : i32
    %c0_i32_0 = arith.constant 0 : i32
    %c0_i32_1 = arith.constant 0 : i32
    return %c0_i32, %c0_i32_0 : i32, i32
  }
  func.func @transform_18(%arg0: i32) -> (i32, i32) {
    %c0_i32 = arith.constant 0 : i32
    %c0_i32_0 = arith.constant 0 : i32
    %c0_i32_1 = arith.constant 0 : i32
    return %c0_i32, %c0_i32_0 : i32, i32
  }
}

</mosaic_0001>

<llo_original>
// kernel: finetune_forward.1
$region0: #{finetune_forward.1}
  #allocation0 [shape = 'u32[]', space=smem, size = 0x4, offset = 0x4, fixed_abs, tag = 'smem constant byte address 0x4 - core index']
  #allocation1 [shape = 'u32[144,128]{1,0:T(1,128)}', space=vmem, size = 0x12000, scoped, tag = 'internal scratch']
  #allocation2 [shape = 'f32[16,32]{1,0:T(8,128)}', space=vmem, size = 0x2000, scoped, tag = 'scratch operand']
  %s0 = inlined_call_operand.vmem [shape: f32[16,16], index: 0, kind: input, shape index: {}]
  %s1 = inlined_call_operand.hbm [shape: f32[16,32], index: 1, kind: input, shape index: {}]
  %s2 = inlined_call_operand.hbm [shape: f32[1,32], index: 2, kind: input, shape index: {}]
  %s3 = inlined_call_operand.vmem [shape: f32[8,32], index: 3, kind: input, shape index: {}]
  %s4 = inlined_call_operand.vmem [shape: f32[2,32,96], index: 4, kind: input, shape index: {}]
  %s5 = inlined_call_operand.vmem [shape: f32[2,1,96], index: 5, kind: input, shape index: {}]
  %s6 = inlined_call_operand.vmem [shape: f32[2,32,32], index: 6, kind: input, shape index: {}]
  %s7 = inlined_call_operand.hbm [shape: f32[2,1,32], index: 7, kind: input, shape index: {}]
  %s8 = inlined_call_operand.vmem [shape: f32[2,1,32], index: 8, kind: input, shape index: {}]
  %s9 = inlined_call_operand.hbm [shape: f32[2,1,32], index: 9, kind: input, shape index: {}]
  %s10 = inlined_call_operand.vmem [shape: f32[2,32,64], index: 10, kind: input, shape index: {}]
  %s11 = inlined_call_operand.hbm [shape: f32[2,1,64], index: 11, kind: input, shape index: {}]
  %s12 = inlined_call_operand.vmem [shape: f32[2,64,32], index: 12, kind: input, shape index: {}]
  %s13 = inlined_call_operand.hbm [shape: f32[2,1,32], index: 13, kind: input, shape index: {}]
  %s14 = inlined_call_operand.vmem [shape: f32[2,1,32], index: 14, kind: input, shape index: {}]
  %s15 = inlined_call_operand.vmem [shape: f32[2,1,32], index: 15, kind: input, shape index: {}]
  %s16 = inlined_call_operand.hbm [shape: f32[256,128], index: 16, kind: input, shape index: {}]
  %s17 = inlined_call_operand.vmem [shape: f32[1,128], index: 17, kind: input, shape index: {}]
  %s18 = inlined_call_operand.hbm [shape: f32[2,128], index: 18, kind: output, shape index: {}]
  %s19 = sld [smem:[#allocation0]]
  $region110: #{finetune_forward.1} parent=0
    _
  %s21 = ssub.s32 1, %s19
  %s22 = scalar_select 0, %s21, %s19
  $region1: #{finetune_forward.1} parent=0
    #allocation3 [shape = 'u8[8192]{0}', space=vmem, size = 0x2000, scoped, tag = 'input window, operand 1, single buffered']
    #allocation4 [shape = 's32[1]{0}', space=sflag, size = 0x4, scoped, tag = 'scoped memory for finetune_forward.1']
    #allocation5 [shape = 's32[1]{0}', space=sflag, size = 0x4, scoped, tag = 'scoped memory for finetune_forward.1']
    #allocation6 [shape = 'u8[512]{0}', space=vmem, size = 0x400, scoped, tag = 'input window, operand 2, single buffered']
    #allocation7 [shape = 's32[1]{0}', space=sflag, size = 0x4, scoped, tag = 'scoped memory for finetune_forward.1']
    #allocation8 [shape = 'u8[1024]{0}', space=vmem, size = 0x400, scoped, tag = 'input window, operand 7, single buffered']
    #allocation9 [shape = 'u8[1024]{0}', space=vmem, size = 0x400, scoped, tag = 'input window, operand 9, single buffered']
    #allocation10 [shape = 's32[1]{0}', space=sflag, size = 0x4, scoped, tag = 'scoped memory for finetune_forward.1']
    #allocation11 [shape = 'u8[1024]{0}', space=vmem, size = 0x400, scoped, tag = 'input window, operand 11, single buffered']
    #allocation12 [shape = 'u8[1024]{0}', space=vmem, size = 0x400, scoped, tag = 'input window, operand 13, single buffered']
    #allocation13 [shape = 's32[1]{0}', space=sflag, size = 0x4, scoped, tag = 'scoped memory for finetune_forward.1']
    #allocation14 [shape = 'u8[131072]{0}', space=vmem, size = 0x20000, scoped, tag = 'input window, operand 16, single buffered']
    #allocation15 [shape = 'u8[1024]{0}', space=vmem, size = 0x400, scoped, tag = 'output window, operand 0, single buffered']
    %23 = vsyncpa [#allocation4], 0
    %24 = vsyncpa [#allocation7], 0
    %25 = vsyncpa [#allocation10], 0
    %26 = vsyncpa [#allocation13], 0
    %27 = vsyncpa [#allocation5], 0
    // Predicated region
    $region2: #{finetune_forward.1} parent=1 // pred_check
      _
    $region3: #{finetune_forward.1} parent=1 // pred_check_branch
      %29 = sbr.rel (0) target = $region5
    $region4: #{finetune_forward.1} parent=1 // pred_region
      _
    $region5: #{finetune_forward.1} parent=1 // pred_fallthru
      _
    // Predicated region
    $region6: #{finetune_forward.1} parent=1 // pred_check
      _
    $region7: #{finetune_forward.1} parent=1 // pred_check_branch
      %31 = sbr.rel (0) target = $region9
    $region8: #{finetune_forward.1} parent=1 // pred_region
      %s33 = ssub.s32 256, 256
      %34 = vsyncadd [#allocation4], %s33
      %s35 = sshll.u32 [#allocation3], 4
      %s36 = int_to_ptr.vmem [resolvable:$true] %s35
      %41 = dma.hbm_to_vmem [thread:$0]  %s1, 256, %s36, [#allocation4], 128, 128, 8
    $region9: #{finetune_forward.1} parent=1 // pred_fallthru
      _
    // Predicated region
    $region10: #{finetune_forward.1} parent=1 // pred_check
      _
    $region11: #{finetune_forward.1} parent=1 // pred_check_branch
      %43 = sbr.rel (0) target = $region13
    $region12: #{finetune_forward.1} parent=1 // pred_region
      %s45 = ssub.s32 16, 16
      %46 = vsyncadd [#allocation7], %s45
      %s48 = sshll.u32 [#allocation6], 4
      %s49 = int_to_ptr.vmem [resolvable:$true] %s48
      %51 = dma.hbm_to_vmem [thread:$0]  %s2, 16, %s49, [#allocation7]
    $region13: #{finetune_forward.1} parent=1 // pred_fallthru
      _
    // Predicated region
    $region14: #{finetune_forward.1} parent=1 // pred_check
      _
    $region15: #{finetune_forward.1} parent=1 // pred_check_branch
      %53 = sbr.rel (0) target = $region17
    $region16: #{finetune_forward.1} parent=1 // pred_region
      _
    $region17: #{finetune_forward.1} parent=1 // pred_fallthru
      _
    // Predicated region
    $region18: #{finetune_forward.1} parent=1 // pred_check
      _
    $region19: #{finetune_forward.1} parent=1 // pred_check_branch
      %55 = sbr.rel (0) target = $region21
    $region20: #{finetune_forward.1} parent=1 // pred_region
      _
    $region21: #{finetune_forward.1} parent=1 // pred_fallthru
      _
    // Predicated region
    $region22: #{finetune_forward.1} parent=1 // pred_check
      _
    $region23: #{finetune_forward.1} parent=1 // pred_check_branch
      %57 = sbr.rel (0) target = $region25
    $region24: #{finetune_forward.1} parent=1 // pred_region
      _
    $region25: #{finetune_forward.1} parent=1 // pred_fallthru
      _
    // Predicated region
    $region26: #{finetune_forward.1} parent=1 // pred_check
      _
    $region27: #{finetune_forward.1} parent=1 // pred_check_branch
      %59 = sbr.rel (0) target = $region29
    $region28: #{finetune_forward.1} parent=1 // pred_region
      _
    $region29: #{finetune_forward.1} parent=1 // pred_fallthru
      _
    // Predicated region
    $region30: #{finetune_forward.1} parent=1 // pred_check
      _
    $region31: #{finetune_forward.1} parent=1 // pred_check_branch
      %61 = sbr.rel (0) target = $region33
    $region32: #{finetune_forward.1} parent=1 // pred_region
      %s63 = ssub.s32 32, 32
      %64 = vsyncadd [#allocation7], %s63
      %s65 = sshll.u32 [#allocation8], 4
      %s66 = int_to_ptr.vmem [resolvable:$true] %s65
      %71 = dma.hbm_to_vmem [thread:$0]  %s7, 32, %s66, [#allocation7], 16, 16, 1
    $region33: #{finetune_forward.1} parent=1 // pred_fallthru
      _
    // Predicated region
    $region34: #{finetune_forward.1} parent=1 // pred_check
      _
    $region35: #{finetune_forward.1} parent=1 // pred_check_branch
      %73 = sbr.rel (0) target = $region37
    $region36: #{finetune_forward.1} parent=1 // pred_region
      _
    $region37: #{finetune_forward.1} parent=1 // pred_fallthru
      _
    // Predicated region
    $region38: #{finetune_forward.1} parent=1 // pred_check
      _
    $region39: #{finetune_forward.1} parent=1 // pred_check_branch
      %75 = sbr.rel (0) target = $region41
    $region40: #{finetune_forward.1} parent=1 // pred_region
      %s77 = ssub.s32 32, 32
      %78 = vsyncadd [#allocation10], %s77
      %s79 = sshll.u32 [#allocation9], 4
      %s80 = int_to_ptr.vmem [resolvable:$true] %s79
      %85 = dma.hbm_to_vmem [thread:$0]  %s9, 32, %s80, [#allocation10], 16, 16, 1
    $region41: #{finetune_forward.1} parent=1 // pred_fallthru
      _
    // Predicated region
    $region42: #{finetune_forward.1} parent=1 // pred_check
      _
    $region43: #{finetune_forward.1} parent=1 // pred_check_branch
      %87 = sbr.rel (0) target = $region45
    $region44: #{finetune_forward.1} parent=1 // pred_region
      _
    $region45: #{finetune_forward.1} parent=1 // pred_fallthru
      _
    // Predicated region
    $region46: #{finetune_forward.1} parent=1 // pred_check
      _
    $region47: #{finetune_forward.1} parent=1 // pred_check_branch
      %89 = sbr.rel (0) target = $region49
    $region48: #{finetune_forward.1} parent=1 // pred_region
      %s91 = ssub.s32 32, 32
      %92 = vsyncadd [#allocation10], %s91
      %s93 = sshll.u32 [#allocation11], 4
      %s94 = int_to_ptr.vmem [resolvable:$true] %s93
      %99 = dma.hbm_to_vmem [thread:$0]  %s11, 32, %s94, [#allocation10], 16, 16, 1
    $region49: #{finetune_forward.1} parent=1 // pred_fallthru
      _
    // Predicated region
    $region50: #{finetune_forward.1} parent=1 // pred_check
      _
    $region51: #{finetune_forward.1} parent=1 // pred_check_branch
      %101 = sbr.rel (0) target = $region53
    $region52: #{finetune_forward.1} parent=1 // pred_region
      _
    $region53: #{finetune_forward.1} parent=1 // pred_fallthru
      _
    // Predicated region
    $region54: #{finetune_forward.1} parent=1 // pred_check
      _
    $region55: #{finetune_forward.1} parent=1 // pred_check_branch
      %103 = sbr.rel (0) target = $region57
    $region56: #{finetune_forward.1} parent=1 // pred_region
      %s105 = ssub.s32 32, 32
      %106 = vsyncadd [#allocation13], %s105
      %s107 = sshll.u32 [#allocation12], 4
      %s108 = int_to_ptr.vmem [resolvable:$true] %s107
      %113 = dma.hbm_to_vmem [thread:$0]  %s13, 32, %s108, [#allocation13], 16, 16, 1
    $region57: #{finetune_forward.1} parent=1 // pred_fallthru
      _
    // Predicated region
    $region58: #{finetune_forward.1} parent=1 // pred_check
      _
    $region59: #{finetune_forward.1} parent=1 // pred_check_branch
      %115 = sbr.rel (0) target = $region61
    $region60: #{finetune_forward.1} parent=1 // pred_region
      _
    $region61: #{finetune_forward.1} parent=1 // pred_fallthru
      _
    // Predicated region
    $region62: #{finetune_forward.1} parent=1 // pred_check
      _
    $region63: #{finetune_forward.1} parent=1 // pred_check_branch
      %117 = sbr.rel (0) target = $region65
    $region64: #{finetune_forward.1} parent=1 // pred_region
      _
    $region65: #{finetune_forward.1} parent=1 // pred_fallthru
      _
    // Predicated region
    $region66: #{finetune_forward.1} parent=1 // pred_check
      _
    $region67: #{finetune_forward.1} parent=1 // pred_check_branch
      %119 = sbr.rel (0) target = $region69
    $region68: #{finetune_forward.1} parent=1 // pred_region
      %s121 = ssub.s32 4096, 4096
      %122 = vsyncadd [#allocation13], %s121
      %s123 = sshll.u32 [#allocation14], 4
      %s124 = int_to_ptr.vmem [resolvable:$true] %s123
      %129 = dma.hbm_to_vmem [thread:$0]  %s16, 4096, %s124, [#allocation13], 128, 128, 8
    $region69: #{finetune_forward.1} parent=1 // pred_fallthru
      _
    // Predicated region
    $region70: #{finetune_forward.1} parent=1 // pred_check
      _
    $region71: #{finetune_forward.1} parent=1 // pred_check_branch
      %131 = sbr.rel (0) target = $region73
    $region72: #{finetune_forward.1} parent=1 // pred_region
      _
    $region73: #{finetune_forward.1} parent=1 // pred_fallthru
      _
    // Predicated region
    $region74: #{finetune_forward.1} parent=1 // pred_check
      _
    $region75: #{finetune_forward.1} parent=1 // pred_check_branch
      %133 = sbr.rel (0) target = $region77
    $region76: #{finetune_forward.1} parent=1 // pred_region
      %134 = dma.done [#allocation4], 256
    $region77: #{finetune_forward.1} parent=1 // pred_fallthru
      _
    // Predicated region
    $region78: #{finetune_forward.1} parent=1 // pred_check
      _
    $region79: #{finetune_forward.1} parent=1 // pred_check_branch
      %136 = sbr.rel (0) target = $region81
    $region80: #{finetune_forward.1} parent=1 // pred_region
      %137 = dma.done [#allocation7], 16
    $region81: #{finetune_forward.1} parent=1 // pred_fallthru
      _
    // Predicated region
    $region82: #{finetune_forward.1} parent=1 // pred_check
      _
    $region83: #{finetune_forward.1} parent=1 // pred_check_branch
      %139 = sbr.rel (0) target = $region85
    $region84: #{finetune_forward.1} parent=1 // pred_region
      %140 = dma.done [#allocation7], 32
    $region85: #{finetune_forward.1} parent=1 // pred_fallthru
      _
    // Predicated region
    $region86: #{finetune_forward.1} parent=1 // pred_check
      _
    $region87: #{finetune_forward.1} parent=1 // pred_check_branch
      %142 = sbr.rel (0) target = $region89
    $region88: #{finetune_forward.1} parent=1 // pred_region
      %143 = dma.done [#allocation10], 32
    $region89: #{finetune_forward.1} parent=1 // pred_fallthru
      _
    // Predicated region
    $region90: #{finetune_forward.1} parent=1 // pred_check
      _
    $region91: #{finetune_forward.1} parent=1 // pred_check_branch
      %145 = sbr.rel (0) target = $region93
    $region92: #{finetune_forward.1} parent=1 // pred_region
      %146 = dma.done [#allocation10], 32
    $region93: #{finetune_forward.1} parent=1 // pred_fallthru
      _
    // Predicated region
    $region94: #{finetune_forward.1} parent=1 // pred_check
      _
    $region95: #{finetune_forward.1} parent=1 // pred_check_branch
      %148 = sbr.rel (0) target = $region97
    $region96: #{finetune_forward.1} parent=1 // pred_region
      %149 = dma.done [#allocation13], 32
    $region97: #{finetune_forward.1} parent=1 // pred_fallthru
      _
    // Predicated region
    $region98: #{finetune_forward.1} parent=1 // pred_check
      _
    $region99: #{finetune_forward.1} parent=1 // pred_check_branch
      %151 = sbr.rel (0) target = $region101
    $region100: #{finetune_forward.1} parent=1 // pred_region
      %152 = dma.done [#allocation13], 4096
    $region101: #{finetune_forward.1} parent=1 // pred_fallthru
      _
    %v153 = vld [vmem:[%s0] sm:$0xff]
    %v154 = vld [vmem:[%s0 + $0x8] sm:$0xff]
    %v155 = vld [vmem:[#allocation3] sm:$0xff]
    %v156 = vld [vmem:[#allocation3 + $0x8] sm:$0xff]
    %v157 = vld [vmem:[#allocation6] sm:$0x1]
    %v159 = vlaneseq
    %v160 = vshrl.u32 %v159, 7
    %v161 = vsub.s32 0, %v160
    %v162 = vrot.slane %v157, %v161
    %vm164 = vcmask 130048
    %v166 = vsel %vm164, %v153, 0
    %v169 = vsel %vm164, %v154, 0
    %171 = vmatprep.subr.mxu0 0.0
    %172 = vmatpush1.msra.mxu0 %v155
    %173 = vmatprep.subr.mxu0 0.0
    %174 = vmatpush1.msra.mxu0 %v156
    %175 = vmatprep.subr.mxu0 0.0
    %176 = vmatpush1.msra.mxu0 0.0
    %177 = vmatprep.subr.mxu0 0.0
    %178 = vmatpush1.msra.mxu0 0.0
    %179 = vmatprep.subr.mxu0 0.0
    %180 = vmatpush1.msra.mxu0 0.0
    %181 = vmatprep.subr.mxu0 0.0
    %182 = vmatpush1.msra.mxu0 0.0
    %183 = vmatprep.subr.mxu0 0.0
    %184 = vmatpush1.msra.mxu0 0.0
    %185 = vmatprep.subr.mxu0 0.0
    %186 = vmatpush1.msra.mxu0 0.0
    %187 = vmatprep.subr.mxu0 0.0
    %188 = vmatpush1.msra.mxu0 0.0
    %189 = vmatprep.subr.mxu0 0.0
    %190 = vmatpush1.msra.mxu0 0.0
    %191 = vmatprep.subr.mxu0 0.0
    %192 = vmatpush1.msra.mxu0 0.0
    %193 = vmatprep.subr.mxu0 0.0
    %194 = vmatpush1.msra.mxu0 0.0
    %195 = vmatprep.subr.mxu0 0.0
    %196 = vmatpush1.msra.mxu0 0.0
    %197 = vmatprep.subr.mxu0 0.0
    %198 = vmatpush1.msra.mxu0 0.0
    %199 = vmatprep.subr.mxu0 0.0
    %200 = vmatpush1.msra.mxu0 0.0
    %201 = vmatprep.subr.mxu0 0.0
    %202 = vmatpush1.msra.mxu0 0.0
    %203 = vmatprep.subr.mxu0 0.0
    %204 = vmatpush1.msra.mxu0 0.0
    %205 = vmatprep.subr.mxu0 0.0
    %206 = vmatpush1.msra.mxu0 0.0
    %207 = vmatprep.subr.mxu0 0.0
    %208 = vmatpush1.msra.mxu0 0.0
    %209 = vmatprep.subr.mxu0 0.0
    %210 = vmatpush1.msra.mxu0 0.0
    %211 = vmatprep.subr.mxu0 0.0
    %212 = vmatpush1.msra.mxu0 0.0
    %213 = vmatprep.subr.mxu0 0.0
    %214 = vmatpush1.msra.mxu0 0.0
    %215 = vmatprep.subr.mxu0 0.0
    %216 = vmatpush1.msra.mxu0 0.0
    %217 = vmatprep.subr.mxu0 0.0
    %218 = vmatpush1.msra.mxu0 0.0
    %219 = vmatprep.subr.mxu0 0.0
    %220 = vmatpush1.msra.mxu0 0.0
    %221 = vmatprep.subr.mxu0 0.0
    %222 = vmatpush1.msra.mxu0 0.0
    %223 = vmatprep.subr.mxu0 0.0
    %224 = vmatpush1.msra.mxu0 0.0
    %225 = vmatprep.subr.mxu0 0.0
    %226 = vmatpush1.msra.mxu0 0.0
    %227 = vmatprep.subr.mxu0 0.0
    %228 = vmatpush1.msra.mxu0 0.0
    %229 = vmatprep.subr.mxu0 0.0
    %230 = vmatpush1.msra.mxu0 0.0
    %231 = vmatprep.subr.mxu0 0.0
    %232 = vmatpush1.msra.mxu0 0.0
    %233 = vmatprep.subr.mxu0 0.0
    %234 = vmatpush1.msra.mxu0 0.0
    %235 = vmatprep.mubr.f32.mxu0 0.0
    %236 = vmatmul.mubr.f32.gmra.mrb[0].mxu0 %v166
    %v237 = vpop.f32.mrb[0].mxu0
    %v238 = vadd.f32 %v162, %v237
    %v239 = vpop.f32.mrb[0].mxu0
    %240 = vmatprep.mubr.f32.mxu0 0.0
    %241 = vmatmul.mubr.f32.gmra.mrb[0].mxu0 %v169
    %v242 = vpop.f32.mrb[0].mxu0
    %v243 = vadd.f32 %v162, %v242
    %v244 = vpop.f32.mrb[0].mxu0
    %245 = vdwg.mxu0
    %v246 = vld [vmem:[%s3] sm:$0xff]
    %v247 = vadd.f32 %v238, %v246
    %v248 = vadd.f32 %v243, %v246
    %v249 = vld [vmem:[%s4] sm:$0xff]
    %v250 = vld [vmem:[%s4 + $0x8] sm:$0xff]
    %v251 = vld [vmem:[%s4 + $0x10] sm:$0xff]
    %v252 = vld [vmem:[%s4 + $0x18] sm:$0xff]
    %v253 = vld [vmem:[%s5] sm:$0x1]
    %v255 = vlaneseq
    %v256 = vshrl.u32 %v255, 7
    %v257 = vsub.s32 0, %v256
    %v258 = vrot.slane %v253, %v257
    %vm260 = vcmask 261120
    %v262 = vsel %vm260, %v247, 0
    %v265 = vsel %vm260, %v248, 0
    %267 = vmatprep.subr.mxu0 0.0
    %268 = vmatpush1.msra.mxu0 %v249
    %269 = vmatprep.subr.mxu0 0.0
    %270 = vmatpush1.msra.mxu0 %v250
    %271 = vmatprep.subr.mxu0 0.0
    %272 = vmatpush1.msra.mxu0 %v251
    %273 = vmatprep.subr.mxu0 0.0
    %274 = vmatpush1.msra.mxu0 %v252
    %275 = vmatprep.subr.mxu0 0.0
    %276 = vmatpush1.msra.mxu0 0.0
    %277 = vmatprep.subr.mxu0 0.0
    %278 = vmatpush1.msra.mxu0 0.0
    %279 = vmatprep.subr.mxu0 0.0
    %280 = vmatpush1.msra.mxu0 0.0
    %281 = vmatprep.subr.mxu0 0.0
    %282 = vmatpush1.msra.mxu0 0.0
    %283 = vmatprep.subr.mxu0 0.0
    %284 = vmatpush1.msra.mxu0 0.0
    %285 = vmatprep.subr.mxu0 0.0
    %286 = vmatpush1.msra.mxu0 0.0
    %287 = vmatprep.subr.mxu0 0.0
    %288 = vmatpush1.msra.mxu0 0.0
    %289 = vmatprep.subr.mxu0 0.0
    %290 = vmatpush1.msra.mxu0 0.0
    %291 = vmatprep.subr.mxu0 0.0
    %292 = vmatpush1.msra.mxu0 0.0
    %293 = vmatprep.subr.mxu0 0.0
    %294 = vmatpush1.msra.mxu0 0.0
    %295 = vmatprep.subr.mxu0 0.0
    %296 = vmatpush1.msra.mxu0 0.0
    %297 = vmatprep.subr.mxu0 0.0
    %298 = vmatpush1.msra.mxu0 0.0
    %299 = vmatprep.subr.mxu0 0.0
    %300 = vmatpush1.msra.mxu0 0.0
    %301 = vmatprep.subr.mxu0 0.0
    %302 = vmatpush1.msra.mxu0 0.0
    %303 = vmatprep.subr.mxu0 0.0
    %304 = vmatpush1.msra.mxu0 0.0
    %305 = vmatprep.subr.mxu0 0.0
    %306 = vmatpush1.msra.mxu0 0.0
    %307 = vmatprep.subr.mxu0 0.0
    %308 = vmatpush1.msra.mxu0 0.0
    %309 = vmatprep.subr.mxu0 0.0
    %310 = vmatpush1.msra.mxu0 0.0
    %311 = vmatprep.subr.mxu0 0.0
    %312 = vmatpush1.msra.mxu0 0.0
    %313 = vmatprep.subr.mxu0 0.0
    %314 = vmatpush1.msra.mxu0 0.0
    %315 = vmatprep.subr.mxu0 0.0
    %316 = vmatpush1.msra.mxu0 0.0
    %317 = vmatprep.subr.mxu0 0.0
    %318 = vmatpush1.msra.mxu0 0.0
    %319 = vmatprep.subr.mxu0 0.0
    %320 = vmatpush1.msra.mxu0 0.0
    %321 = vmatprep.subr.mxu0 0.0
    %322 = vmatpush1.msra.mxu0 0.0
    %323 = vmatprep.subr.mxu0 0.0
    %324 = vmatpush1.msra.mxu0 0.0
    %325 = vmatprep.subr.mxu0 0.0
    %326 = vmatpush1.msra.mxu0 0.0
    %327 = vmatprep.subr.mxu0 0.0
    %328 = vmatpush1.msra.mxu0 0.0
    %329 = vmatprep.subr.mxu0 0.0
    %330 = vmatpush1.msra.mxu0 0.0
    %331 = vmatprep.mubr.f32.mxu0 0.0
    %332 = vmatmul.mubr.f32.gmra.mrb[0].mxu0 %v262
    %v333 = vpop.f32.mrb[0].mxu0
    %v334 = vadd.f32 %v258, %v333
    %v335 = vpop.f32.mrb[0].mxu0
    %336 = vmatprep.mubr.f32.mxu0 0.0
    %337 = vmatmul.mubr.f32.gmra.mrb[0].mxu0 %v265
    %v338 = vpop.f32.mrb[0].mxu0
    %v339 = vadd.f32 %v258, %v338
    %v340 = vpop.f32.mrb[0].mxu0
    %341 = vdwg.mxu0
    %v342 = vmul.f32 %v334, 0.35355338
    %v343 = vmul.f32 %v339, 0.35355338
    %345 = vrot.lane.b32.xlu0 %v334, 96
    %v346 = vpop.permute.xlu0 %345
    %vm347 = vcmask 64512
    %v349 = vsel %vm347, %v342, 0
    %v351 = vsel %vm347, %v346, 0
    %353 = vmatprep.subr.mxu0 0.0
    %354 = vmatpush1.xpose.msra.mxu0 %v351
    %355 = vmatprep.subr.mxu0 0.0
    %356 = vmatpush1.xpose.msra.mxu0 0.0
    %357 = vmatprep.subr.mxu0 0.0
    %358 = vmatpush1.xpose.msra.mxu0 0.0
    %359 = vmatprep.subr.mxu0 0.0
    %360 = vmatpush1.xpose.msra.mxu0 0.0
    %361 = vmatprep.subr.mxu0 0.0
    %362 = vmatpush1.xpose.msra.mxu0 0.0
    %363 = vmatprep.subr.mxu0 0.0
    %364 = vmatpush1.xpose.msra.mxu0 0.0
    %365 = vmatprep.subr.mxu0 0.0
    %366 = vmatpush1.xpose.msra.mxu0 0.0
    %367 = vmatprep.subr.mxu0 0.0
    %368 = vmatpush1.xpose.msra.mxu0 0.0
    %369 = vmatprep.subr.mxu0 0.0
    %370 = vmatpush1.xpose.msra.mxu0 0.0
    %371 = vmatprep.subr.mxu0 0.0
    %372 = vmatpush1.xpose.msra.mxu0 0.0
    %373 = vmatprep.subr.mxu0 0.0
    %374 = vmatpush1.xpose.msra.mxu0 0.0
    %375 = vmatprep.subr.mxu0 0.0
    %376 = vmatpush1.xpose.msra.mxu0 0.0
    %377 = vmatprep.subr.mxu0 0.0
    %378 = vmatpush1.xpose.msra.mxu0 0.0
    %379 = vmatprep.subr.mxu0 0.0
    %380 = vmatpush1.xpose.msra.mxu0 0.0
    %381 = vmatprep.subr.mxu0 0.0
    %382 = vmatpush1.xpose.msra.mxu0 0.0
    %383 = vmatprep.subr.mxu0 0.0
    %384 = vmatpush1.xpose.msra.mxu0 0.0
    %385 = vmatprep.subr.mxu0 0.0
    %386 = vmatpush1.xpose.msra.mxu0 0.0
    %387 = vmatprep.subr.mxu0 0.0
    %388 = vmatpush1.xpose.msra.mxu0 0.0
    %389 = vmatprep.subr.mxu0 0.0
    %390 = vmatpush1.xpose.msra.mxu0 0.0
    %391 = vmatprep.subr.mxu0 0.0
    %392 = vmatpush1.xpose.msra.mxu0 0.0
    %393 = vmatprep.subr.mxu0 0.0
    %394 = vmatpush1.xpose.msra.mxu0 0.0
    %395 = vmatprep.subr.mxu0 0.0
    %396 = vmatpush1.xpose.msra.mxu0 0.0
    %397 = vmatprep.subr.mxu0 0.0
    %398 = vmatpush1.xpose.msra.mxu0 0.0
    %399 = vmatprep.subr.mxu0 0.0
    %400 = vmatpush1.xpose.msra.mxu0 0.0
    %401 = vmatprep.subr.mxu0 0.0
    %402 = vmatpush1.xpose.msra.mxu0 0.0
    %403 = vmatprep.subr.mxu0 0.0
    %404 = vmatpush1.xpose.msra.mxu0 0.0
    %405 = vmatprep.subr.mxu0 0.0
    %406 = vmatpush1.xpose.msra.mxu0 0.0
    %407 = vmatprep.subr.mxu0 0.0
    %408 = vmatpush1.xpose.msra.mxu0 0.0
    %409 = vmatprep.subr.mxu0 0.0
    %410 = vmatpush1.xpose.msra.mxu0 0.0
    %411 = vmatprep.subr.mxu0 0.0
    %412 = vmatpush1.xpose.msra.mxu0 0.0
    %413 = vmatprep.subr.mxu0 0.0
    %414 = vmatpush1.xpose.msra.mxu0 0.0
    %415 = vmatprep.subr.mxu0 0.0
    %416 = vmatpush1.xpose.msra.mxu0 0.0
    %417 = vmatprep.mubr.f32.mxu0 0.0
    %418 = vmatmul.mubr.f32.gmra.mrb[0].mxu0 %v349
    %v419 = vpop.f32.mrb[0].mxu0
    %v420 = vadd.f32 0.0, %v419
    %v421 = vpop.f32.mrb[0].mxu0
    %422 = vdwg.mxu0
    %v423 = vsel %vm347, %v420, -inf
    %424 = vmax.xlane.f32.xlu0 %v423
    %v425 = vpop.xlane.xlu0 %424
    %v426 = vsub.f32 %v420, %v425
    %v427 = vmul.f32 %v426, 1.442695
    %v428 = vpow.pop %v427
    %v429 = vsel %vm347, %v428, 0.0
    %430 = vadd.xlane.f32.xlu0 %v429
    %v431 = vpop.xlane.xlu0 %430
    %432 = vrot.lane.b32.xlu0 %v334, 64
    %v433 = vpop.permute.xlu0 %432
    %v436 = vsel %vm347, %v428, 0
    %438 = vmatprep.subr.mxu0 0.0
    %439 = vmatpush1.msra.mxu0 %v433
    %440 = vmatprep.subr.mxu0 0.0
    %441 = vmatpush1.msra.mxu0 0.0
    %442 = vmatprep.subr.mxu0 0.0
    %443 = vmatpush1.msra.mxu0 0.0
    %444 = vmatprep.subr.mxu0 0.0
    %445 = vmatpush1.msra.mxu0 0.0
    %446 = vmatprep.subr.mxu0 0.0
    %447 = vmatpush1.msra.mxu0 0.0
    %448 = vmatprep.subr.mxu0 0.0
    %449 = vmatpush1.msra.mxu0 0.0
    %450 = vmatprep.subr.mxu0 0.0
    %451 = vmatpush1.msra.mxu0 0.0
    %452 = vmatprep.subr.mxu0 0.0
    %453 = vmatpush1.msra.mxu0 0.0
    %454 = vmatprep.subr.mxu0 0.0
    %455 = vmatpush1.msra.mxu0 0.0
    %456 = vmatprep.subr.mxu0 0.0
    %457 = vmatpush1.msra.mxu0 0.0
    %458 = vmatprep.subr.mxu0 0.0
    %459 = vmatpush1.msra.mxu0 0.0
    %460 = vmatprep.subr.mxu0 0.0
    %461 = vmatpush1.msra.mxu0 0.0
    %462 = vmatprep.subr.mxu0 0.0
    %463 = vmatpush1.msra.mxu0 0.0
    %464 = vmatprep.subr.mxu0 0.0
    %465 = vmatpush1.msra.mxu0 0.0
    %466 = vmatprep.subr.mxu0 0.0
    %467 = vmatpush1.msra.mxu0 0.0
    %468 = vmatprep.subr.mxu0 0.0
    %469 = vmatpush1.msra.mxu0 0.0
    %470 = vmatprep.subr.mxu0 0.0
    %471 = vmatpush1.msra.mxu0 0.0
    %472 = vmatprep.subr.mxu0 0.0
    %473 = vmatpush1.msra.mxu0 0.0
    %474 = vmatprep.subr.mxu0 0.0
    %475 = vmatpush1.msra.mxu0 0.0
    %476 = vmatprep.subr.mxu0 0.0
    %477 = vmatpush1.msra.mxu0 0.0
    %478 = vmatprep.subr.mxu0 0.0
    %479 = vmatpush1.msra.mxu0 0.0
    %480 = vmatprep.subr.mxu0 0.0
    %481 = vmatpush1.msra.mxu0 0.0
    %482 = vmatprep.subr.mxu0 0.0
    %483 = vmatpush1.msra.mxu0 0.0
    %484 = vmatprep.subr.mxu0 0.0
    %485 = vmatpush1.msra.mxu0 0.0
    %486 = vmatprep.subr.mxu0 0.0
    %487 = vmatpush1.msra.mxu0 0.0
    %488 = vmatprep.subr.mxu0 0.0
    %489 = vmatpush1.msra.mxu0 0.0
    %490 = vmatprep.subr.mxu0 0.0
    %491 = vmatpush1.msra.mxu0 0.0
    %492 = vmatprep.subr.mxu0 0.0
    %493 = vmatpush1.msra.mxu0 0.0
    %494 = vmatprep.subr.mxu0 0.0
    %495 = vmatpush1.msra.mxu0 0.0
    %496 = vmatprep.subr.mxu0 0.0
    %497 = vmatpush1.msra.mxu0 0.0
    %498 = vmatprep.subr.mxu0 0.0
    %499 = vmatpush1.msra.mxu0 0.0
    %500 = vmatprep.subr.mxu0 0.0
    %501 = vmatpush1.msra.mxu0 0.0
    %502 = vmatprep.mubr.f32.mxu0 0.0
    %503 = vmatmul.mubr.f32.gmra.mrb[0].mxu0 %v436
    %v504 = vpop.f32.mrb[0].mxu0
    %v505 = vadd.f32 0.0, %v504
    %v506 = vpop.f32.mrb[0].mxu0
    %507 = vdwg.mxu0
    %v508 = vrcp.pop %v431
    %v509 = vmul.f32 %v505, %v508
    %510 = vst.msk [vmem:[#allocation2] sm:$0xff] %vm347, %v509
    %511 = vrot.lane.b32.xlu0 %v342, 120
    %v512 = vpop.permute.xlu0 %511
    %513 = vrot.lane.b32.xlu0 %v334, 88
    %v514 = vpop.permute.xlu0 %513
    %v515 = vsel %vm347, %v512, 0
    %v517 = vsel %vm347, %v514, 0
    %519 = vmatprep.subr.mxu0 0.0
    %520 = vmatpush1.xpose.msra.mxu0 %v517
    %521 = vmatprep.subr.mxu0 0.0
    %522 = vmatpush1.xpose.msra.mxu0 0.0
    %523 = vmatprep.subr.mxu0 0.0
    %524 = vmatpush1.xpose.msra.mxu0 0.0
    %525 = vmatprep.subr.mxu0 0.0
    %526 = vmatpush1.xpose.msra.mxu0 0.0
    %527 = vmatprep.subr.mxu0 0.0
    %528 = vmatpush1.xpose.msra.mxu0 0.0
    %529 = vmatprep.subr.mxu0 0.0
    %530 = vmatpush1.xpose.msra.mxu0 0.0
    %531 = vmatprep.subr.mxu0 0.0
    %532 = vmatpush1.xpose.msra.mxu0 0.0
    %533 = vmatprep.subr.mxu0 0.0
    %534 = vmatpush1.xpose.msra.mxu0 0.0
    %535 = vmatprep.subr.mxu0 0.0
    %536 = vmatpush1.xpose.msra.mxu0 0.0
    %537 = vmatprep.subr.mxu0 0.0
    %538 = vmatpush1.xpose.msra.mxu0 0.0
    %539 = vmatprep.subr.mxu0 0.0
    %540 = vmatpush1.xpose.msra.mxu0 0.0
    %541 = vmatprep.subr.mxu0 0.0
    %542 = vmatpush1.xpose.msra.mxu0 0.0
    %543 = vmatprep.subr.mxu0 0.0
    %544 = vmatpush1.xpose.msra.mxu0 0.0
    %545 = vmatprep.subr.mxu0 0.0
    %546 = vmatpush1.xpose.msra.mxu0 0.0
    %547 = vmatprep.subr.mxu0 0.0
    %548 = vmatpush1.xpose.msra.mxu0 0.0
    %549 = vmatprep.subr.mxu0 0.0
    %550 = vmatpush1.xpose.msra.mxu0 0.0
    %551 = vmatprep.subr.mxu0 0.0
    %552 = vmatpush1.xpose.msra.mxu0 0.0
    %553 = vmatprep.subr.mxu0 0.0
    %554 = vmatpush1.xpose.msra.mxu0 0.0
    %555 = vmatprep.subr.mxu0 0.0
    %556 = vmatpush1.xpose.msra.mxu0 0.0
    %557 = vmatprep.subr.mxu0 0.0
    %558 = vmatpush1.xpose.msra.mxu0 0.0
    %559 = vmatprep.subr.mxu0 0.0
    %560 = vmatpush1.xpose.msra.mxu0 0.0
    %561 = vmatprep.subr.mxu0 0.0
    %562 = vmatpush1.xpose.msra.mxu0 0.0
    %563 = vmatprep.subr.mxu0 0.0
    %564 = vmatpush1.xpose.msra.mxu0 0.0
    %565 = vmatprep.subr.mxu0 0.0
    %566 = vmatpush1.xpose.msra.mxu0 0.0
    %567 = vmatprep.subr.mxu0 0.0
    %568 = vmatpush1.xpose.msra.mxu0 0.0
    %569 = vmatprep.subr.mxu0 0.0
    %570 = vmatpush1.xpose.msra.mxu0 0.0
    %571 = vmatprep.subr.mxu0 0.0
    %572 = vmatpush1.xpose.msra.mxu0 0.0
    %573 = vmatprep.subr.mxu0 0.0
    %574 = vmatpush1.xpose.msra.mxu0 0.0
    %575 = vmatprep.subr.mxu0 0.0
    %576 = vmatpush1.xpose.msra.mxu0 0.0
    %577 = vmatprep.subr.mxu0 0.0
    %578 = vmatpush1.xpose.msra.mxu0 0.0
    %579 = vmatprep.subr.mxu0 0.0
    %580 = vmatpush1.xpose.msra.mxu0 0.0
    %581 = vmatprep.subr.mxu0 0.0
    %582 = vmatpush1.xpose.msra.mxu0 0.0
    %583 = vmatprep.mubr.f32.mxu0 0.0
    %584 = vmatmul.mubr.f32.gmra.mrb[0].mxu0 %v515
    %v585 = vpop.f32.mrb[0].mxu0
    %v586 = vadd.f32 0.0, %v585
    %v587 = vpop.f32.mrb[0].mxu0
    %588 = vdwg.mxu0
    %v589 = vsel %vm347, %v586, -inf
    %590 = vmax.xlane.f32.xlu0 %v589
    %v591 = vpop.xlane.xlu0 %590
    %v592 = vsub.f32 %v586, %v591
    %v593 = vmul.f32 %v592, 1.442695
    %v594 = vpow.pop %v593
    %v595 = vsel %vm347, %v594, 0.0
    %596 = vadd.xlane.f32.xlu0 %v595
    %v597 = vpop.xlane.xlu0 %596
    %598 = vrot.lane.b32.xlu0 %v334, 56
    %v599 = vpop.permute.xlu0 %598
    %v602 = vsel %vm347, %v594, 0
    %604 = vmatprep.subr.mxu0 0.0
    %605 = vmatpush1.msra.mxu0 %v599
    %606 = vmatprep.subr.mxu0 0.0
    %607 = vmatpush1.msra.mxu0 0.0
    %608 = vmatprep.subr.mxu0 0.0
    %609 = vmatpush1.msra.mxu0 0.0
    %610 = vmatprep.subr.mxu0 0.0
    %611 = vmatpush1.msra.mxu0 0.0
    %612 = vmatprep.subr.mxu0 0.0
    %613 = vmatpush1.msra.mxu0 0.0
    %614 = vmatprep.subr.mxu0 0.0
    %615 = vmatpush1.msra.mxu0 0.0
    %616 = vmatprep.subr.mxu0 0.0
    %617 = vmatpush1.msra.mxu0 0.0
    %618 = vmatprep.subr.mxu0 0.0
    %619 = vmatpush1.msra.mxu0 0.0
    %620 = vmatprep.subr.mxu0 0.0
    %621 = vmatpush1.msra.mxu0 0.0
    %622 = vmatprep.subr.mxu0 0.0
    %623 = vmatpush1.msra.mxu0 0.0
    %624 = vmatprep.subr.mxu0 0.0
    %625 = vmatpush1.msra.mxu0 0.0
    %626 = vmatprep.subr.mxu0 0.0
    %627 = vmatpush1.msra.mxu0 0.0
    %628 = vmatprep.subr.mxu0 0.0
    %629 = vmatpush1.msra.mxu0 0.0
    %630 = vmatprep.subr.mxu0 0.0
    %631 = vmatpush1.msra.mxu0 0.0
    %632 = vmatprep.subr.mxu0 0.0
    %633 = vmatpush1.msra.mxu0 0.0
    %634 = vmatprep.subr.mxu0 0.0
    %635 = vmatpush1.msra.mxu0 0.0
    %636 = vmatprep.subr.mxu0 0.0
    %637 = vmatpush1.msra.mxu0 0.0
    %638 = vmatprep.subr.mxu0 0.0
    %639 = vmatpush1.msra.mxu0 0.0
    %640 = vmatprep.subr.mxu0 0.0
    %641 = vmatpush1.msra.mxu0 0.0
    %642 = vmatprep.subr.mxu0 0.0
    %643 = vmatpush1.msra.mxu0 0.0
    %644 = vmatprep.subr.mxu0 0.0
    %645 = vmatpush1.msra.mxu0 0.0
    %646 = vmatprep.subr.mxu0 0.0
    %647 = vmatpush1.msra.mxu0 0.0
    %648 = vmatprep.subr.mxu0 0.0
    %649 = vmatpush1.msra.mxu0 0.0
    %650 = vmatprep.subr.mxu0 0.0
    %651 = vmatpush1.msra.mxu0 0.0
    %652 = vmatprep.subr.mxu0 0.0
    %653 = vmatpush1.msra.mxu0 0.0
    %654 = vmatprep.subr.mxu0 0.0
    %655 = vmatpush1.msra.mxu0 0.0
    %656 = vmatprep.subr.mxu0 0.0
    %657 = vmatpush1.msra.mxu0 0.0
    %658 = vmatprep.subr.mxu0 0.0
    %659 = vmatpush1.msra.mxu0 0.0
    %660 = vmatprep.subr.mxu0 0.0
    %661 = vmatpush1.msra.mxu0 0.0
    %662 = vmatprep.subr.mxu0 0.0
    %663 = vmatpush1.msra.mxu0 0.0
    %664 = vmatprep.subr.mxu0 0.0
    %665 = vmatpush1.msra.mxu0 0.0
    %666 = vmatprep.subr.mxu0 0.0
    %667 = vmatpush1.msra.mxu0 0.0
    %668 = vmatprep.mubr.f32.mxu0 0.0
    %669 = vmatmul.mubr.f32.gmra.mrb[0].mxu0 %v602
    %v670 = vpop.f32.mrb[0].mxu0
    %v671 = vadd.f32 0.0, %v670
    %v672 = vpop.f32.mrb[0].mxu0
    %673 = vdwg.mxu0
    %v674 = vrcp.pop %v597
    %v675 = vmul.f32 %v671, %v674
    %677 = vrot.lane.b32.xlu0 %v675, 8
    %v678 = vpop.permute.xlu0 %677
    %vm680 = vcmask 130112
    %681 = vst.msk [vmem:[#allocation2] sm:$0xff] %vm680, %v678
    %682 = vrot.lane.b32.xlu0 %v342, 112
    %v683 = vpop.permute.xlu0 %682
    %684 = vrot.lane.b32.xlu0 %v334, 80
    %v685 = vpop.permute.xlu0 %684
    %v686 = vsel %vm347, %v683, 0
    %v688 = vsel %vm347, %v685, 0
    %690 = vmatprep.subr.mxu0 0.0
    %691 = vmatpush1.xpose.msra.mxu0 %v688
    %692 = vmatprep.subr.mxu0 0.0
    %693 = vmatpush1.xpose.msra.mxu0 0.0
    %694 = vmatprep.subr.mxu0 0.0
    %695 = vmatpush1.xpose.msra.mxu0 0.0
    %696 = vmatprep.subr.mxu0 0.0
    %697 = vmatpush1.xpose.msra.mxu0 0.0
    %698 = vmatprep.subr.mxu0 0.0
    %699 = vmatpush1.xpose.msra.mxu0 0.0
    %700 = vmatprep.subr.mxu0 0.0
    %701 = vmatpush1.xpose.msra.mxu0 0.0
    %702 = vmatprep.subr.mxu0 0.0
    %703 = vmatpush1.xpose.msra.mxu0 0.0
    %704 = vmatprep.subr.mxu0 0.0
    %705 = vmatpush1.xpose.msra.mxu0 0.0
    %706 = vmatprep.subr.mxu0 0.0
    %707 = vmatpush1.xpose.msra.mxu0 0.0
    %708 = vmatprep.subr.mxu0 0.0
    %709 = vmatpush1.xpose.msra.mxu0 0.0
    %710 = vmatprep.subr.mxu0 0.0
    %711 = vmatpush1.xpose.msra.mxu0 0.0
    %712 = vmatprep.subr.mxu0 0.0
    %713 = vmatpush1.xpose.msra.mxu0 0.0
    %714 = vmatprep.subr.mxu0 0.0
    %715 = vmatpush1.xpose.msra.mxu0 0.0
    %716 = vmatprep.subr.mxu0 0.0
    %717 = vmatpush1.xpose.msra.mxu0 0.0
    %718 = vmatprep.subr.mxu0 0.0
    %719 = vmatpush1.xpose.msra.mxu0 0.0
    %720 = vmatprep.subr.mxu0 0.0
    %721 = vmatpush1.xpose.msra.mxu0 0.0
    %722 = vmatprep.subr.mxu0 0.0
    %723 = vmatpush1.xpose.msra.mxu0 0.0
    %724 = vmatprep.subr.mxu0 0.0
    %725 = vmatpush1.xpose.msra.mxu0 0.0
    %726 = vmatprep.subr.mxu0 0.0
    %727 = vmatpush1.xpose.msra.mxu0 0.0
    %728 = vmatprep.subr.mxu0 0.0
    %729 = vmatpush1.xpose.msra.mxu0 0.0
    %730 = vmatprep.subr.mxu0 0.0
    %731 = vmatpush1.xpose.msra.mxu0 0.0
    %732 = vmatprep.subr.mxu0 0.0
    %733 = vmatpush1.xpose.msra.mxu0 0.0
    %734 = vmatprep.subr.mxu0 0.0
    %735 = vmatpush1.xpose.msra.mxu0 0.0
    %736 = vmatprep.subr.mxu0 0.0
    %737 = vmatpush1.xpose.msra.mxu0 0.0
    %738 = vmatprep.subr.mxu0 0.0
    %739 = vmatpush1.xpose.msra.mxu0 0.0
    %740 = vmatprep.subr.mxu0 0.0
    %741 = vmatpush1.xpose.msra.mxu0 0.0
    %742 = vmatprep.subr.mxu0 0.0
    %743 = vmatpush1.xpose.msra.mxu0 0.0
    %744 = vmatprep.subr.mxu0 0.0
    %745 = vmatpush1.xpose.msra.mxu0 0.0
    %746 = vmatprep.subr.mxu0 0.0
    %747 = vmatpush1.xpose.msra.mxu0 0.0
    %748 = vmatprep.subr.mxu0 0.0
    %749 = vmatpush1.xpose.msra.mxu0 0.0
    %750 = vmatprep.subr.mxu0 0.0
    %751 = vmatpush1.xpose.msra.mxu0 0.0
    %752 = vmatprep.subr.mxu0 0.0
    %753 = vmatpush1.xpose.msra.mxu0 0.0
    %754 = vmatprep.mubr.f32.mxu0 0.0
    %755 = vmatmul.mubr.f32.gmra.mrb[0].mxu0 %v686
    %v756 = vpop.f32.mrb[0].mxu0
    %v757 = vadd.f32 0.0, %v756
    %v758 = vpop.f32.mrb[0].mxu0
    %759 = vdwg.mxu0
    %v760 = vsel %vm347, %v757, -inf
    %761 = vmax.xlane.f32.xlu0 %v760
    %v762 = vpop.xlane.xlu0 %761
    %v763 = vsub.f32 %v757, %v762
    %v764 = vmul.f32 %v763, 1.442695
    %v765 = vpow.pop %v764
    %v766 = vsel %vm347, %v765, 0.0
    %767 = vadd.xlane.f32.xlu0 %v766
    %v768 = vpop.xlane.xlu0 %767
    %769 = vrot.lane.b32.xlu0 %v334, 48
    %v770 = vpop.permute.xlu0 %769
    %v773 = vsel %vm347, %v765, 0
    %775 = vmatprep.subr.mxu0 0.0
    %776 = vmatpush1.msra.mxu0 %v770
    %777 = vmatprep.subr.mxu0 0.0
    %778 = vmatpush1.msra.mxu0 0.0
    %779 = vmatprep.subr.mxu0 0.0
    %780 = vmatpush1.msra.mxu0 0.0
    %781 = vmatprep.subr.mxu0 0.0
    %782 = vmatpush1.msra.mxu0 0.0
    %783 = vmatprep.subr.mxu0 0.0
    %784 = vmatpush1.msra.mxu0 0.0
    %785 = vmatprep.subr.mxu0 0.0
    %786 = vmatpush1.msra.mxu0 0.0
    %787 = vmatprep.subr.mxu0 0.0
    %788 = vmatpush1.msra.mxu0 0.0
    %789 = vmatprep.subr.mxu0 0.0
    %790 = vmatpush1.msra.mxu0 0.0
    %791 = vmatprep.subr.mxu0 0.0
    %792 = vmatpush1.msra.mxu0 0.0
    %793 = vmatprep.subr.mxu0 0.0
    %794 = vmatpush1.msra.mxu0 0.0
    %795 = vmatprep.subr.mxu0 0.0
    %796 = vmatpush1.msra.mxu0 0.0
    %797 = vmatprep.subr.mxu0 0.0
    %798 = vmatpush1.msra.mxu0 0.0
    %799 = vmatprep.subr.mxu0 0.0
    %800 = vmatpush1.msra.mxu0 0.0
    %801 = vmatprep.subr.mxu0 0.0
    %802 = vmatpush1.msra.mxu0 0.0
    %803 = vmatprep.subr.mxu0 0.0
    %804 = vmatpush1.msra.mxu0 0.0
    %805 = vmatprep.subr.mxu0 0.0
    %806 = vmatpush1.msra.mxu0 0.0
    %807 = vmatprep.subr.mxu0 0.0
    %808 = vmatpush1.msra.mxu0 0.0
    %809 = vmatprep.subr.mxu0 0.0
    %810 = vmatpush1.msra.mxu0 0.0
    %811 = vmatprep.subr.mxu0 0.0
    %812 = vmatpush1.msra.mxu0 0.0
    %813 = vmatprep.subr.mxu0 0.0
    %814 = vmatpush1.msra.mxu0 0.0
    %815 = vmatprep.subr.mxu0 0.0
    %816 = vmatpush1.msra.mxu0 0.0
    %817 = vmatprep.subr.mxu0 0.0
    %818 = vmatpush1.msra.mxu0 0.0
    %819 = vmatprep.subr.mxu0 0.0
    %820 = vmatpush1.msra.mxu0 0.0
    %821 = vmatprep.subr.mxu0 0.0
    %822 = vmatpush1.msra.mxu0 0.0
    %823 = vmatprep.subr.mxu0 0.0
    %824 = vmatpush1.msra.mxu0 0.0
    %825 = vmatprep.subr.mxu0 0.0
    %826 = vmatpush1.msra.mxu0 0.0
    %827 = vmatprep.subr.mxu0 0.0
    %828 = vmatpush1.msra.mxu0 0.0
    %829 = vmatprep.subr.mxu0 0.0
    %830 = vmatpush1.msra.mxu0 0.0
    %831 = vmatprep.subr.mxu0 0.0
    %832 = vmatpush1.msra.mxu0 0.0
    %833 = vmatprep.subr.mxu0 0.0
    %834 = vmatpush1.msra.mxu0 0.0
    %835 = vmatprep.subr.mxu0 0.0
    %836 = vmatpush1.msra.mxu0 0.0
    %837 = vmatprep.subr.mxu0 0.0
    %838 = vmatpush1.msra.mxu0 0.0
    %839 = vmatprep.mubr.f32.mxu0 0.0
    %840 = vmatmul.mubr.f32.gmra.mrb[0].mxu0 %v773
    %v841 = vpop.f32.mrb[0].mxu0
    %v842 = vadd.f32 0.0, %v841
    %v843 = vpop.f32.mrb[0].mxu0
    %844 = vdwg.mxu0
    %v845 = vrcp.pop %v768
    %v846 = vmul.f32 %v842, %v845
    %848 = vrot.lane.b32.xlu0 %v846, 16
    %v849 = vpop.permute.xlu0 %848
    %vm851 = vcmask 195712
    %852 = vst.msk [vmem:[#allocation2] sm:$0xff] %vm851, %v849
    %853 = vrot.lane.b32.xlu0 %v342, 104
    %v854 = vpop.permute.xlu0 %853
    %855 = vrot.lane.b32.xlu0 %v334, 72
    %v856 = vpop.permute.xlu0 %855
    %v857 = vsel %vm347, %v854, 0
    %v859 = vsel %vm347, %v856, 0
    %861 = vmatprep.subr.mxu0 0.0
    %862 = vmatpush1.xpose.msra.mxu0 %v859
    %863 = vmatprep.subr.mxu0 0.0
    %864 = vmatpush1.xpose.msra.mxu0 0.0
    %865 = vmatprep.subr.mxu0 0.0
    %866 = vmatpush1.xpose.msra.mxu0 0.0
    %867 = vmatprep.subr.mxu0 0.0
    %868 = vmatpush1.xpose.msra.mxu0 0.0
    %869 = vmatprep.subr.mxu0 0.0
    %870 = vmatpush1.xpose.msra.mxu0 0.0
    %871 = vmatprep.subr.mxu0 0.0
    %872 = vmatpush1.xpose.msra.mxu0 0.0
    %873 = vmatprep.subr.mxu0 0.0
    %874 = vmatpush1.xpose.msra.mxu0 0.0
    %875 = vmatprep.subr.mxu0 0.0
    %876 = vmatpush1.xpose.msra.mxu0 0.0
    %877 = vmatprep.subr.mxu0 0.0
    %878 = vmatpush1.xpose.msra.mxu0 0.0
    %879 = vmatprep.subr.mxu0 0.0
    %880 = vmatpush1.xpose.msra.mxu0 0.0
    %881 = vmatprep.subr.mxu0 0.0
    %882 = vmatpush1.xpose.msra.mxu0 0.0
    %883 = vmatprep.subr.mxu0 0.0
    %884 = vmatpush1.xpose.msra.mxu0 0.0
    %885 = vmatprep.subr.mxu0 0.0
    %886 = vmatpush1.xpose.msra.mxu0 0.0
    %887 = vmatprep.subr.mxu0 0.0
    %888 = vmatpush1.xpose.msra.mxu0 0.0
    %889 = vmatprep.subr.mxu0 0.0
    %890 = vmatpush1.xpose.msra.mxu0 0.0
    %891 = vmatprep.subr.mxu0 0.0
    %892 = vmatpush1.xpose.msra.mxu0 0.0
    %893 = vmatprep.subr.mxu0 0.0
    %894 = vmatpush1.xpose.msra.mxu0 0.0
    %895 = vmatprep.subr.mxu0 0.0
    %896 = vmatpush1.xpose.msra.mxu0 0.0
    %897 = vmatprep.subr.mxu0 0.0
    %898 = vmatpush1.xpose.msra.mxu0 0.0
    %899 = vmatprep.subr.mxu0 0.0
    %900 = vmatpush1.xpose.msra.mxu0 0.0
    %901 = vmatprep.subr.mxu0 0.0
    %902 = vmatpush1.xpose.msra.mxu0 0.0
    %903 = vmatprep.subr.mxu0 0.0
    %904 = vmatpush1.xpose.msra.mxu0 0.0
    %905 = vmatprep.subr.mxu0 0.0
    %906 = vmatpush1.xpose.msra.mxu0 0.0
    %907 = vmatprep.subr.mxu0 0.0
    %908 = vmatpush1.xpose.msra.mxu0 0.0
    %909 = vmatprep.subr.mxu0 0.0
    %910 = vmatpush1.xpose.msra.mxu0 0.0
    %911 = vmatprep.subr.mxu0 0.0
    %912 = vmatpush1.xpose.msra.mxu0 0.0
    %913 = vmatprep.subr.mxu0 0.0
    %914 = vmatpush1.xpose.msra.mxu0 0.0
    %915 = vmatprep.subr.mxu0 0.0
    %916 = vmatpush1.xpose.msra.mxu0 0.0
    %917 = vmatprep.subr.mxu0 0.0
    %918 = vmatpush1.xpose.msra.mxu0 0.0
    %919 = vmatprep.subr.mxu0 0.0
    %920 = vmatpush1.xpose.msra.mxu0 0.0
    %921 = vmatprep.subr.mxu0 0.0
    %922 = vmatpush1.xpose.msra.mxu0 0.0
    %923 = vmatprep.subr.mxu0 0.0
    %924 = vmatpush1.xpose.msra.mxu0 0.0
    %925 = vmatprep.mubr.f32.mxu0 0.0
    %926 = vmatmul.mubr.f32.gmra.mrb[0].mxu0 %v857
    %v927 = vpop.f32.mrb[0].mxu0
    %v928 = vadd.f32 0.0, %v927
    %v929 = vpop.f32.mrb[0].mxu0
    %930 = vdwg.mxu0
    %v931 = vsel %vm347, %v928, -inf
    %932 = vmax.xlane.f32.xlu0 %v931
    %v933 = vpop.xlane.xlu0 %932
    %v934 = vsub.f32 %v928, %v933
    %v935 = vmul.f32 %v934, 1.442695
    %v936 = vpow.pop %v935
    %v937 = vsel %vm347, %v936, 0.0
    %938 = vadd.xlane.f32.xlu0 %v937
    %v939 = vpop.xlane.xlu0 %938
    %940 = vrot.lane.b32.xlu0 %v334, 40
    %v941 = vpop.permute.xlu0 %940
    %v944 = vsel %vm347, %v936, 0
    %946 = vmatprep.subr.mxu0 0.0
    %947 = vmatpush1.msra.mxu0 %v941
    %948 = vmatprep.subr.mxu0 0.0
    %949 = vmatpush1.msra.mxu0 0.0
    %950 = vmatprep.subr.mxu0 0.0
    %951 = vmatpush1.msra.mxu0 0.0
    %952 = vmatprep.subr.mxu0 0.0
    %953 = vmatpush1.msra.mxu0 0.0
    %954 = vmatprep.subr.mxu0 0.0
    %955 = vmatpush1.msra.mxu0 0.0
    %956 = vmatprep.subr.mxu0 0.0
    %957 = vmatpush1.msra.mxu0 0.0
    %958 = vmatprep.subr.mxu0 0.0
    %959 = vmatpush1.msra.mxu0 0.0
    %960 = vmatprep.subr.mxu0 0.0
    %961 = vmatpush1.msra.mxu0 0.0
    %962 = vmatprep.subr.mxu0 0.0
    %963 = vmatpush1.msra.mxu0 0.0
    %964 = vmatprep.subr.mxu0 0.0
    %965 = vmatpush1.msra.mxu0 0.0
    %966 = vmatprep.subr.mxu0 0.0
    %967 = vmatpush1.msra.mxu0 0.0
    %968 = vmatprep.subr.mxu0 0.0
    %969 = vmatpush1.msra.mxu0 0.0
    %970 = vmatprep.subr.mxu0 0.0
    %971 = vmatpush1.msra.mxu0 0.0
    %972 = vmatprep.subr.mxu0 0.0
    %973 = vmatpush1.msra.mxu0 0.0
    %974 = vmatprep.subr.mxu0 0.0
    %975 = vmatpush1.msra.mxu0 0.0
    %976 = vmatprep.subr.mxu0 0.0
    %977 = vmatpush1.msra.mxu0 0.0
    %978 = vmatprep.subr.mxu0 0.0
    %979 = vmatpush1.msra.mxu0 0.0
    %980 = vmatprep.subr.mxu0 0.0
    %981 = vmatpush1.msra.mxu0 0.0
    %982 = vmatprep.subr.mxu0 0.0
    %983 = vmatpush1.msra.mxu0 0.0
    %984 = vmatprep.subr.mxu0 0.0
    %985 = vmatpush1.msra.mxu0 0.0
    %986 = vmatprep.subr.mxu0 0.0
    %987 = vmatpush1.msra.mxu0 0.0
    %988 = vmatprep.subr.mxu0 0.0
    %989 = vmatpush1.msra.mxu0 0.0
    %990 = vmatprep.subr.mxu0 0.0
    %991 = vmatpush1.msra.mxu0 0.0
    %992 = vmatprep.subr.mxu0 0.0
    %993 = vmatpush1.msra.mxu0 0.0
    %994 = vmatprep.subr.mxu0 0.0
    %995 = vmatpush1.msra.mxu0 0.0
    %996 = vmatprep.subr.mxu0 0.0
    %997 = vmatpush1.msra.mxu0 0.0
    %998 = vmatprep.subr.mxu0 0.0
    %999 = vmatpush1.msra.mxu0 0.0
    %1000 = vmatprep.subr.mxu0 0.0
    %1001 = vmatpush1.msra.mxu0 0.0
    %1002 = vmatprep.subr.mxu0 0.0
    %1003 = vmatpush1.msra.mxu0 0.0
    %1004 = vmatprep.subr.mxu0 0.0
    %1005 = vmatpush1.msra.mxu0 0.0
    %1006 = vmatprep.subr.mxu0 0.0
    %1007 = vmatpush1.msra.mxu0 0.0
    %1008 = vmatprep.subr.mxu0 0.0
    %1009 = vmatpush1.msra.mxu0 0.0
    %1010 = vmatprep.mubr.f32.mxu0 0.0
    %1011 = vmatmul.mubr.f32.gmra.mrb[0].mxu0 %v944
    %v1012 = vpop.f32.mrb[0].mxu0
    %v1013 = vadd.f32 0.0, %v1012
    %v1014 = vpop.f32.mrb[0].mxu0
    %1015 = vdwg.mxu0
    %v1016 = vrcp.pop %v939
    %v1017 = vmul.f32 %v1013, %v1016
    %1019 = vrot.lane.b32.xlu0 %v1017, 24
    %v1020 = vpop.permute.xlu0 %1019
    %vm1022 = vcmask 261312
    %1023 = vst.msk [vmem:[#allocation2] sm:$0xff] %vm1022, %v1020
    %1025 = vrot.lane.b32.xlu0 %v339, 96
    %v1026 = vpop.permute.xlu0 %1025
    %v1028 = vsel %vm347, %v343, 0
    %v1030 = vsel %vm347, %v1026, 0
    %1032 = vmatprep.subr.mxu0 0.0
    %1033 = vmatpush1.xpose.msra.mxu0 %v1030
    %1034 = vmatprep.subr.mxu0 0.0
    %1035 = vmatpush1.xpose.msra.mxu0 0.0
    %1036 = vmatprep.subr.mxu0 0.0
    %1037 = vmatpush1.xpose.msra.mxu0 0.0
    %1038 = vmatprep.subr.mxu0 0.0
    %1039 = vmatpush1.xpose.msra.mxu0 0.0
    %1040 = vmatprep.subr.mxu0 0.0
    %1041 = vmatpush1.xpose.msra.mxu0 0.0
    %1042 = vmatprep.subr.mxu0 0.0
    %1043 = vmatpush1.xpose.msra.mxu0 0.0
    %1044 = vmatprep.subr.mxu0 0.0
    %1045 = vmatpush1.xpose.msra.mxu0 0.0
    %1046 = vmatprep.subr.mxu0 0.0
    %1047 = vmatpush1.xpose.msra.mxu0 0.0
    %1048 = vmatprep.subr.mxu0 0.0
    %1049 = vmatpush1.xpose.msra.mxu0 0.0
    %1050 = vmatprep.subr.mxu0 0.0
    %1051 = vmatpush1.xpose.msra.mxu0 0.0
    %1052 = vmatprep.subr.mxu0 0.0
    %1053 = vmatpush1.xpose.msra.mxu0 0.0
    %1054 = vmatprep.subr.mxu0 0.0
    %1055 = vmatpush1.xpose.msra.mxu0 0.0
    %1056 = vmatprep.subr.mxu0 0.0
    %1057 = vmatpush1.xpose.msra.mxu0 0.0
    %1058 = vmatprep.subr.mxu0 0.0
    %1059 = vmatpush1.xpose.msra.mxu0 0.0
    %1060 = vmatprep.subr.mxu0 0.0
    %1061 = vmatpush1.xpose.msra.mxu0 0.0
    %1062 = vmatprep.subr.mxu0 0.0
    %1063 = vmatpush1.xpose.msra.mxu0 0.0
    %1064 = vmatprep.subr.mxu0 0.0
    %1065 = vmatpush1.xpose.msra.mxu0 0.0
    %1066 = vmatprep.subr.mxu0 0.0
    %1067 = vmatpush1.xpose.msra.mxu0 0.0
    %1068 = vmatprep.subr.mxu0 0.0
    %1069 = vmatpush1.xpose.msra.mxu0 0.0
    %1070 = vmatprep.subr.mxu0 0.0
    %1071 = vmatpush1.xpose.msra.mxu0 0.0
    %1072 = vmatprep.subr.mxu0 0.0
    %1073 = vmatpush1.xpose.msra.mxu0 0.0
    %1074 = vmatprep.subr.mxu0 0.0
    %1075 = vmatpush1.xpose.msra.mxu0 0.0
    %1076 = vmatprep.subr.mxu0 0.0
    %1077 = vmatpush1.xpose.msra.mxu0 0.0
    %1078 = vmatprep.subr.mxu0 0.0
    %1079 = vmatpush1.xpose.msra.mxu0 0.0
    %1080 = vmatprep.subr.mxu0 0.0
    %1081 = vmatpush1.xpose.msra.mxu0 0.0
    %1082 = vmatprep.subr.mxu0 0.0
    %1083 = vmatpush1.xpose.msra.mxu0 0.0
    %1084 = vmatprep.subr.mxu0 0.0
    %1085 = vmatpush1.xpose.msra.mxu0 0.0
    %1086 = vmatprep.subr.mxu0 0.0
    %1087 = vmatpush1.xpose.msra.mxu0 0.0
    %1088 = vmatprep.subr.mxu0 0.0
    %1089 = vmatpush1.xpose.msra.mxu0 0.0
    %1090 = vmatprep.subr.mxu0 0.0
    %1091 = vmatpush1.xpose.msra.mxu0 0.0
    %1092 = vmatprep.subr.mxu0 0.0
    %1093 = vmatpush1.xpose.msra.mxu0 0.0
    %1094 = vmatprep.subr.mxu0 0.0
    %1095 = vmatpush1.xpose.msra.mxu0 0.0
    %1096 = vmatprep.mubr.f32.mxu0 0.0
    %1097 = vmatmul.mubr.f32.gmra.mrb[0].mxu0 %v1028
    %v1098 = vpop.f32.mrb[0].mxu0
    %v1099 = vadd.f32 0.0, %v1098
    %v1100 = vpop.f32.mrb[0].mxu0
    %1101 = vdwg.mxu0
    %v1102 = vsel %vm347, %v1099, -inf
    %1103 = vmax.xlane.f32.xlu0 %v1102
    %v1104 = vpop.xlane.xlu0 %1103
    %v1105 = vsub.f32 %v1099, %v1104
    %v1106 = vmul.f32 %v1105, 1.442695
    %v1107 = vpow.pop %v1106
    %v1108 = vsel %vm347, %v1107, 0.0
    %1109 = vadd.xlane.f32.xlu0 %v1108
    %v1110 = vpop.xlane.xlu0 %1109
    %1111 = vrot.lane.b32.xlu0 %v339, 64
    %v1112 = vpop.permute.xlu0 %1111
    %v1115 = vsel %vm347, %v1107, 0
    %1117 = vmatprep.subr.mxu0 0.0
    %1118 = vmatpush1.msra.mxu0 %v1112
    %1119 = vmatprep.subr.mxu0 0.0
    %1120 = vmatpush1.msra.mxu0 0.0
    %1121 = vmatprep.subr.mxu0 0.0
    %1122 = vmatpush1.msra.mxu0 0.0
    %1123 = vmatprep.subr.mxu0 0.0
    %1124 = vmatpush1.msra.mxu0 0.0
    %1125 = vmatprep.subr.mxu0 0.0
    %1126 = vmatpush1.msra.mxu0 0.0
    %1127 = vmatprep.subr.mxu0 0.0
    %1128 = vmatpush1.msra.mxu0 0.0
    %1129 = vmatprep.subr.mxu0 0.0
    %1130 = vmatpush1.msra.mxu0 0.0
    %1131 = vmatprep.subr.mxu0 0.0
    %1132 = vmatpush1.msra.mxu0 0.0
    %1133 = vmatprep.subr.mxu0 0.0
    %1134 = vmatpush1.msra.mxu0 0.0
    %1135 = vmatprep.subr.mxu0 0.0
    %1136 = vmatpush1.msra.mxu0 0.0
    %1137 = vmatprep.subr.mxu0 0.0
    %1138 = vmatpush1.msra.mxu0 0.0
    %1139 = vmatprep.subr.mxu0 0.0
    %1140 = vmatpush1.msra.mxu0 0.0
    %1141 = vmatprep.subr.mxu0 0.0
    %1142 = vmatpush1.msra.mxu0 0.0
    %1143 = vmatprep.subr.mxu0 0.0
    %1144 = vmatpush1.msra.mxu0 0.0
    %1145 = vmatprep.subr.mxu0 0.0
    %1146 = vmatpush1.msra.mxu0 0.0
    %1147 = vmatprep.subr.mxu0 0.0
    %1148 = vmatpush1.msra.mxu0 0.0
    %1149 = vmatprep.subr.mxu0 0.0
    %1150 = vmatpush1.msra.mxu0 0.0
    %1151 = vmatprep.subr.mxu0 0.0
    %1152 = vmatpush1.msra.mxu0 0.0
    %1153 = vmatprep.subr.mxu0 0.0
    %1154 = vmatpush1.msra.mxu0 0.0
    %1155 = vmatprep.subr.mxu0 0.0
    %1156 = vmatpush1.msra.mxu0 0.0
    %1157 = vmatprep.subr.mxu0 0.0
    %1158 = vmatpush1.msra.mxu0 0.0
    %1159 = vmatprep.subr.mxu0 0.0
    %1160 = vmatpush1.msra.mxu0 0.0
    %1161 = vmatprep.subr.mxu0 0.0
    %1162 = vmatpush1.msra.mxu0 0.0
    %1163 = vmatprep.subr.mxu0 0.0
    %1164 = vmatpush1.msra.mxu0 0.0
    %1165 = vmatprep.subr.mxu0 0.0
    %1166 = vmatpush1.msra.mxu0 0.0
    %1167 = vmatprep.subr.mxu0 0.0
    %1168 = vmatpush1.msra.mxu0 0.0
    %1169 = vmatprep.subr.mxu0 0.0
    %1170 = vmatpush1.msra.mxu0 0.0
    %1171 = vmatprep.subr.mxu0 0.0
    %1172 = vmatpush1.msra.mxu0 0.0
    %1173 = vmatprep.subr.mxu0 0.0
    %1174 = vmatpush1.msra.mxu0 0.0
    %1175 = vmatprep.subr.mxu0 0.0
    %1176 = vmatpush1.msra.mxu0 0.0
    %1177 = vmatprep.subr.mxu0 0.0
    %1178 = vmatpush1.msra.mxu0 0.0
    %1179 = vmatprep.subr.mxu0 0.0
    %1180 = vmatpush1.msra.mxu0 0.0
    %1181 = vmatprep.mubr.f32.mxu0 0.0
    %1182 = vmatmul.mubr.f32.gmra.mrb[0].mxu0 %v1115
    %v1183 = vpop.f32.mrb[0].mxu0
    %v1184 = vadd.f32 0.0, %v1183
    %v1185 = vpop.f32.mrb[0].mxu0
    %1186 = vdwg.mxu0
    %v1187 = vrcp.pop %v1110
    %v1188 = vmul.f32 %v1184, %v1187
    %1189 = vst.msk [vmem:[#allocation2 + $0x8] sm:$0xff] %vm347, %v1188
    %1190 = vrot.lane.b32.xlu0 %v343, 120
    %v1191 = vpop.permute.xlu0 %1190
    %1192 = vrot.lane.b32.xlu0 %v339, 88
    %v1193 = vpop.permute.xlu0 %1192
    %v1194 = vsel %vm347, %v1191, 0
    %v1196 = vsel %vm347, %v1193, 0
    %1198 = vmatprep.subr.mxu0 0.0
    %1199 = vmatpush1.xpose.msra.mxu0 %v1196
    %1200 = vmatprep.subr.mxu0 0.0
    %1201 = vmatpush1.xpose.msra.mxu0 0.0
    %1202 = vmatprep.subr.mxu0 0.0
    %1203 = vmatpush1.xpose.msra.mxu0 0.0
    %1204 = vmatprep.subr.mxu0 0.0
    %1205 = vmatpush1.xpose.msra.mxu0 0.0
    %1206 = vmatprep.subr.mxu0 0.0
    %1207 = vmatpush1.xpose.msra.mxu0 0.0
    %1208 = vmatprep.subr.mxu0 0.0
    %1209 = vmatpush1.xpose.msra.mxu0 0.0
    %1210 = vmatprep.subr.mxu0 0.0
    %1211 = vmatpush1.xpose.msra.mxu0 0.0
    %1212 = vmatprep.subr.mxu0 0.0
    %1213 = vmatpush1.xpose.msra.mxu0 0.0
    %1214 = vmatprep.subr.mxu0 0.0
    %1215 = vmatpush1.xpose.msra.mxu0 0.0
    %1216 = vmatprep.subr.mxu0 0.0
    %1217 = vmatpush1.xpose.msra.mxu0 0.0
    %1218 = vmatprep.subr.mxu0 0.0
    %1219 = vmatpush1.xpose.msra.mxu0 0.0
    %1220 = vmatprep.subr.mxu0 0.0
    %1221 = vmatpush1.xpose.msra.mxu0 0.0
    %1222 = vmatprep.subr.mxu0 0.0
    %1223 = vmatpush1.xpose.msra.mxu0 0.0
    %1224 = vmatprep.subr.mxu0 0.0
    %1225 = vmatpush1.xpose.msra.mxu0 0.0
    %1226 = vmatprep.subr.mxu0 0.0
    %1227 = vmatpush1.xpose.msra.mxu0 0.0
    %1228 = vmatprep.subr.mxu0 0.0
    %1229 = vmatpush1.xpose.msra.mxu0 0.0
    %1230 = vmatprep.subr.mxu0 0.0
    %1231 = vmatpush1.xpose.msra.mxu0 0.0
    %1232 = vmatprep.subr.mxu0 0.0
    %1233 = vmatpush1.xpose.msra.mxu0 0.0
    %1234 = vmatprep.subr.mxu0 0.0
    %1235 = vmatpush1.xpose.msra.mxu0 0.0
    %1236 = vmatprep.subr.mxu0 0.0
    %1237 = vmatpush1.xpose.msra.mxu0 0.0
    %1238 = vmatprep.subr.mxu0 0.0
    %1239 = vmatpush1.xpose.msra.mxu0 0.0
    %1240 = vmatprep.subr.mxu0 0.0
    %1241 = vmatpush1.xpose.msra.mxu0 0.0
    %1242 = vmatprep.subr.mxu0 0.0
    %1243 = vmatpush1.xpose.msra.mxu0 0.0
    %1244 = vmatprep.subr.mxu0 0.0
    %1245 = vmatpush1.xpose.msra.mxu0 0.0
    %1246 = vmatprep.subr.mxu0 0.0
    %1247 = vmatpush1.xpose.msra.mxu0 0.0
    %1248 = vmatprep.subr.mxu0 0.0
    %1249 = vmatpush1.xpose.msra.mxu0 0.0
    %1250 = vmatprep.subr.mxu0 0.0
    %1251 = vmatpush1.xpose.msra.mxu0 0.0
    %1252 = vmatprep.subr.mxu0 0.0
    %1253 = vmatpush1.xpose.msra.mxu0 0.0
    %1254 = vmatprep.subr.mxu0 0.0
    %1255 = vmatpush1.xpose.msra.mxu0 0.0
    %1256 = vmatprep.subr.mxu0 0.0
    %1257 = vmatpush1.xpose.msra.mxu0 0.0
    %1258 = vmatprep.subr.mxu0 0.0
    %1259 = vmatpush1.xpose.msra.mxu0 0.0
    %1260 = vmatprep.subr.mxu0 0.0
    %1261 = vmatpush1.xpose.msra.mxu0 0.0
    %1262 = vmatprep.mubr.f32.mxu0 0.0
    %1263 = vmatmul.mubr.f32.gmra.mrb[0].mxu0 %v1194
    %v1264 = vpop.f32.mrb[0].mxu0
    %v1265 = vadd.f32 0.0, %v1264
    %v1266 = vpop.f32.mrb[0].mxu0
    %1267 = vdwg.mxu0
    %v1268 = vsel %vm347, %v1265, -inf
    %1269 = vmax.xlane.f32.xlu0 %v1268
    %v1270 = vpop.xlane.xlu0 %1269
    %v1271 = vsub.f32 %v1265, %v1270
    %v1272 = vmul.f32 %v1271, 1.442695
    %v1273 = vpow.pop %v1272
    %v1274 = vsel %vm347, %v1273, 0.0
    %1275 = vadd.xlane.f32.xlu0 %v1274
    %v1276 = vpop.xlane.xlu0 %1275
    %1277 = vrot.lane.b32.xlu0 %v339, 56
    %v1278 = vpop.permute.xlu0 %1277
    %v1281 = vsel %vm347, %v1273, 0
    %1283 = vmatprep.subr.mxu0 0.0
    %1284 = vmatpush1.msra.mxu0 %v1278
    %1285 = vmatprep.subr.mxu0 0.0
    %1286 = vmatpush1.msra.mxu0 0.0
    %1287 = vmatprep.subr.mxu0 0.0
    %1288 = vmatpush1.msra.mxu0 0.0
    %1289 = vmatprep.subr.mxu0 0.0
    %1290 = vmatpush1.msra.mxu0 0.0
    %1291 = vmatprep.subr.mxu0 0.0
    %1292 = vmatpush1.msra.mxu0 0.0
    %1293 = vmatprep.subr.mxu0 0.0
    %1294 = vmatpush1.msra.mxu0 0.0
    %1295 = vmatprep.subr.mxu0 0.0
    %1296 = vmatpush1.msra.mxu0 0.0
    %1297 = vmatprep.subr.mxu0 0.0
    %1298 = vmatpush1.msra.mxu0 0.0
    %1299 = vmatprep.subr.mxu0 0.0
    %1300 = vmatpush1.msra.mxu0 0.0
    %1301 = vmatprep.subr.mxu0 0.0
    %1302 = vmatpush1.msra.mxu0 0.0
    %1303 = vmatprep.subr.mxu0 0.0
    %1304 = vmatpush1.msra.mxu0 0.0
    %1305 = vmatprep.subr.mxu0 0.0
    %1306 = vmatpush1.msra.mxu0 0.0
    %1307 = vmatprep.subr.mxu0 0.0
    %1308 = vmatpush1.msra.mxu0 0.0
    %1309 = vmatprep.subr.mxu0 0.0
    %1310 = vmatpush1.msra.mxu0 0.0
    %1311 = vmatprep.subr.mxu0 0.0
    %1312 = vmatpush1.msra.mxu0 0.0
    %1313 = vmatprep.subr.mxu0 0.0
    %1314 = vmatpush1.msra.mxu0 0.0
    %1315 = vmatprep.subr.mxu0 0.0
    %1316 = vmatpush1.msra.mxu0 0.0
    %1317 = vmatprep.subr.mxu0 0.0
    %1318 = vmatpush1.msra.mxu0 0.0
    %1319 = vmatprep.subr.mxu0 0.0
    %1320 = vmatpush1.msra.mxu0 0.0
    %1321 = vmatprep.subr.mxu0 0.0
    %1322 = vmatpush1.msra.mxu0 0.0
    %1323 = vmatprep.subr.mxu0 0.0
    %1324 = vmatpush1.msra.mxu0 0.0
    %1325 = vmatprep.subr.mxu0 0.0
    %1326 = vmatpush1.msra.mxu0 0.0
    %1327 = vmatprep.subr.mxu0 0.0
    %1328 = vmatpush1.msra.mxu0 0.0
    %1329 = vmatprep.subr.mxu0 0.0
    %1330 = vmatpush1.msra.mxu0 0.0
    %1331 = vmatprep.subr.mxu0 0.0
    %1332 = vmatpush1.msra.mxu0 0.0
    %1333 = vmatprep.subr.mxu0 0.0
    %1334 = vmatpush1.msra.mxu0 0.0
    %1335 = vmatprep.subr.mxu0 0.0
    %1336 = vmatpush1.msra.mxu0 0.0
    %1337 = vmatprep.subr.mxu0 0.0
    %1338 = vmatpush1.msra.mxu0 0.0
    %1339 = vmatprep.subr.mxu0 0.0
    %1340 = vmatpush1.msra.mxu0 0.0
    %1341 = vmatprep.subr.mxu0 0.0
    %1342 = vmatpush1.msra.mxu0 0.0
    %1343 = vmatprep.subr.mxu0 0.0
    %1344 = vmatpush1.msra.mxu0 0.0
    %1345 = vmatprep.subr.mxu0 0.0
    %1346 = vmatpush1.msra.mxu0 0.0
    %1347 = vmatprep.mubr.f32.mxu0 0.0
    %1348 = vmatmul.mubr.f32.gmra.mrb[0].mxu0 %v1281
    %v1349 = vpop.f32.mrb[0].mxu0
    %v1350 = vadd.f32 0.0, %v1349
    %v1351 = vpop.f32.mrb[0].mxu0
    %1352 = vdwg.mxu0
    %v1353 = vrcp.pop %v1276
    %v1354 = vmul.f32 %v1350, %v1353
    %1356 = vrot.lane.b32.xlu0 %v1354, 8
    %v1357 = vpop.permute.xlu0 %1356
    %1359 = vst.msk [vmem:[#allocation2 + $0x8] sm:$0xff] %vm680, %v1357
    %1360 = vrot.lane.b32.xlu0 %v343, 112
    %v1361 = vpop.permute.xlu0 %1360
    %1362 = vrot.lane.b32.xlu0 %v339, 80
    %v1363 = vpop.permute.xlu0 %1362
    %v1364 = vsel %vm347, %v1361, 0
    %v1366 = vsel %vm347, %v1363, 0
    %1368 = vmatprep.subr.mxu0 0.0
    %1369 = vmatpush1.xpose.msra.mxu0 %v1366
    %1370 = vmatprep.subr.mxu0 0.0
    %1371 = vmatpush1.xpose.msra.mxu0 0.0
    %1372 = vmatprep.subr.mxu0 0.0
    %1373 = vmatpush1.xpose.msra.mxu0 0.0
    %1374 = vmatprep.subr.mxu0 0.0
    %1375 = vmatpush1.xpose.msra.mxu0 0.0
    %1376 = vmatprep.subr.mxu0 0.0
    %1377 = vmatpush1.xpose.msra.mxu0 0.0
    %1378 = vmatprep.subr.mxu0 0.0
    %1379 = vmatpush1.xpose.msra.mxu0 0.0
    %1380 = vmatprep.subr.mxu0 0.0
    %1381 = vmatpush1.xpose.msra.mxu0 0.0
    %1382 = vmatprep.subr.mxu0 0.0
    %1383 = vmatpush1.xpose.msra.mxu0 0.0
    %1384 = vmatprep.subr.mxu0 0.0
    %1385 = vmatpush1.xpose.msra.mxu0 0.0
    %1386 = vmatprep.subr.mxu0 0.0
    %1387 = vmatpush1.xpose.msra.mxu0 0.0
    %1388 = vmatprep.subr.mxu0 0.0
    %1389 = vmatpush1.xpose.msra.mxu0 0.0
    %1390 = vmatprep.subr.mxu0 0.0
    %1391 = vmatpush1.xpose.msra.mxu0 0.0
    %1392 = vmatprep.subr.mxu0 0.0
    %1393 = vmatpush1.xpose.msra.mxu0 0.0
    %1394 = vmatprep.subr.mxu0 0.0
    %1395 = vmatpush1.xpose.msra.mxu0 0.0
    %1396 = vmatprep.subr.mxu0 0.0
    %1397 = vmatpush1.xpose.msra.mxu0 0.0
    %1398 = vmatprep.subr.mxu0 0.0
    %1399 = vmatpush1.xpose.msra.mxu0 0.0
    %1400 = vmatprep.subr.mxu0 0.0
    %1401 = vmatpush1.xpose.msra.mxu0 0.0
    %1402 = vmatprep.subr.mxu0 0.0
    %1403 = vmatpush1.xpose.msra.mxu0 0.0
    %1404 = vmatprep.subr.mxu0 0.0
    %1405 = vmatpush1.xpose.msra.mxu0 0.0
    %1406 = vmatprep.subr.mxu0 0.0
    %1407 = vmatpush1.xpose.msra.mxu0 0.0
    %1408 = vmatprep.subr.mxu0 0.0
    %1409 = vmatpush1.xpose.msra.mxu0 0.0
    %1410 = vmatprep.subr.mxu0 0.0
    %1411 = vmatpush1.xpose.msra.mxu0 0.0
    %1412 = vmatprep.subr.mxu0 0.0
    %1413 = vmatpush1.xpose.msra.mxu0 0.0
    %1414 = vmatprep.subr.mxu0 0.0
    %1415 = vmatpush1.xpose.msra.mxu0 0.0
    %1416 = vmatprep.subr.mxu0 0.0
    %1417 = vmatpush1.xpose.msra.mxu0 0.0
    %1418 = vmatprep.subr.mxu0 0.0
    %1419 = vmatpush1.xpose.msra.mxu0 0.0
    %1420 = vmatprep.subr.mxu0 0.0
    %1421 = vmatpush1.xpose.msra.mxu0 0.0
    %1422 = vmatprep.subr.mxu0 0.0
    %1423 = vmatpush1.xpose.msra.mxu0 0.0
    %1424 = vmatprep.subr.mxu0 0.0
    %1425 = vmatpush1.xpose.msra.mxu0 0.0
    %1426 = vmatprep.subr.mxu0 0.0
    %1427 = vmatpush1.xpose.msra.mxu0 0.0
    %1428 = vmatprep.subr.mxu0 0.0
    %1429 = vmatpush1.xpose.msra.mxu0 0.0
    %1430 = vmatprep.subr.mxu0 0.0
    %1431 = vmatpush1.xpose.msra.mxu0 0.0
    %1432 = vmatprep.mubr.f32.mxu0 0.0
    %1433 = vmatmul.mubr.f32.gmra.mrb[0].mxu0 %v1364
    %v1434 = vpop.f32.mrb[0].mxu0
    %v1435 = vadd.f32 0.0, %v1434
    %v1436 = vpop.f32.mrb[0].mxu0
    %1437 = vdwg.mxu0
    %v1438 = vsel %vm347, %v1435, -inf
    %1439 = vmax.xlane.f32.xlu0 %v1438
    %v1440 = vpop.xlane.xlu0 %1439
    %v1441 = vsub.f32 %v1435, %v1440
    %v1442 = vmul.f32 %v1441, 1.442695
    %v1443 = vpow.pop %v1442
    %v1444 = vsel %vm347, %v1443, 0.0
    %1445 = vadd.xlane.f32.xlu0 %v1444
    %v1446 = vpop.xlane.xlu0 %1445
    %1447 = vrot.lane.b32.xlu0 %v339, 48
    %v1448 = vpop.permute.xlu0 %1447
    %v1451 = vsel %vm347, %v1443, 0
    %1453 = vmatprep.subr.mxu0 0.0
    %1454 = vmatpush1.msra.mxu0 %v1448
    %1455 = vmatprep.subr.mxu0 0.0
    %1456 = vmatpush1.msra.mxu0 0.0
    %1457 = vmatprep.subr.mxu0 0.0
    %1458 = vmatpush1.msra.mxu0 0.0
    %1459 = vmatprep.subr.mxu0 0.0
    %1460 = vmatpush1.msra.mxu0 0.0
    %1461 = vmatprep.subr.mxu0 0.0
    %1462 = vmatpush1.msra.mxu0 0.0
    %1463 = vmatprep.subr.mxu0 0.0
    %1464 = vmatpush1.msra.mxu0 0.0
    %1465 = vmatprep.subr.mxu0 0.0
    %1466 = vmatpush1.msra.mxu0 0.0
    %1467 = vmatprep.subr.mxu0 0.0
    %1468 = vmatpush1.msra.mxu0 0.0
    %1469 = vmatprep.subr.mxu0 0.0
    %1470 = vmatpush1.msra.mxu0 0.0
    %1471 = vmatprep.subr.mxu0 0.0
    %1472 = vmatpush1.msra.mxu0 0.0
    %1473 = vmatprep.subr.mxu0 0.0
    %1474 = vmatpush1.msra.mxu0 0.0
    %1475 = vmatprep.subr.mxu0 0.0
    %1476 = vmatpush1.msra.mxu0 0.0
    %1477 = vmatprep.subr.mxu0 0.0
    %1478 = vmatpush1.msra.mxu0 0.0
    %1479 = vmatprep.subr.mxu0 0.0
    %1480 = vmatpush1.msra.mxu0 0.0
    %1481 = vmatprep.subr.mxu0 0.0
    %1482 = vmatpush1.msra.mxu0 0.0
    %1483 = vmatprep.subr.mxu0 0.0
    %1484 = vmatpush1.msra.mxu0 0.0
    %1485 = vmatprep.subr.mxu0 0.0
    %1486 = vmatpush1.msra.mxu0 0.0
    %1487 = vmatprep.subr.mxu0 0.0
    %1488 = vmatpush1.msra.mxu0 0.0
    %1489 = vmatprep.subr.mxu0 0.0
    %1490 = vmatpush1.msra.mxu0 0.0
    %1491 = vmatprep.subr.mxu0 0.0
    %1492 = vmatpush1.msra.mxu0 0.0
    %1493 = vmatprep.subr.mxu0 0.0
    %1494 = vmatpush1.msra.mxu0 0.0
    %1495 = vmatprep.subr.mxu0 0.0
    %1496 = vmatpush1.msra.mxu0 0.0
    %1497 = vmatprep.subr.mxu0 0.0
    %1498 = vmatpush1.msra.mxu0 0.0
    %1499 = vmatprep.subr.mxu0 0.0
    %1500 = vmatpush1.msra.mxu0 0.0
    %1501 = vmatprep.subr.mxu0 0.0
    %1502 = vmatpush1.msra.mxu0 0.0
    %1503 = vmatprep.subr.mxu0 0.0
    %1504 = vmatpush1.msra.mxu0 0.0
    %1505 = vmatprep.subr.mxu0 0.0
    %1506 = vmatpush1.msra.mxu0 0.0
    %1507 = vmatprep.subr.mxu0 0.0
    %1508 = vmatpush1.msra.mxu0 0.0
    %1509 = vmatprep.subr.mxu0 0.0
    %1510 = vmatpush1.msra.mxu0 0.0
    %1511 = vmatprep.subr.mxu0 0.0
    %1512 = vmatpush1.msra.mxu0 0.0
    %1513 = vmatprep.subr.mxu0 0.0
    %1514 = vmatpush1.msra.mxu0 0.0
    %1515 = vmatprep.subr.mxu0 0.0
    %1516 = vmatpush1.msra.mxu0 0.0
    %1517 = vmatprep.mubr.f32.mxu0 0.0
    %1518 = vmatmul.mubr.f32.gmra.mrb[0].mxu0 %v1451
    %v1519 = vpop.f32.mrb[0].mxu0
    %v1520 = vadd.f32 0.0, %v1519
    %v1521 = vpop.f32.mrb[0].mxu0
    %1522 = vdwg.mxu0
    %v1523 = vrcp.pop %v1446
    %v1524 = vmul.f32 %v1520, %v1523
    %1526 = vrot.lane.b32.xlu0 %v1524, 16
    %v1527 = vpop.permute.xlu0 %1526
    %1529 = vst.msk [vmem:[#allocation2 + $0x8] sm:$0xff] %vm851, %v1527
    %1530 = vrot.lane.b32.xlu0 %v343, 104
    %v1531 = vpop.permute.xlu0 %1530
    %1532 = vrot.lane.b32.xlu0 %v339, 72
    %v1533 = vpop.permute.xlu0 %1532
    %v1534 = vsel %vm347, %v1531, 0
    %v1536 = vsel %vm347, %v1533, 0
    %1538 = vmatprep.subr.mxu0 0.0
    %1539 = vmatpush1.xpose.msra.mxu0 %v1536
    %1540 = vmatprep.subr.mxu0 0.0
    %1541 = vmatpush1.xpose.msra.mxu0 0.0
    %1542 = vmatprep.subr.mxu0 0.0
    %1543 = vmatpush1.xpose.msra.mxu0 0.0
    %1544 = vmatprep.subr.mxu0 0.0
    %1545 = vmatpush1.xpose.msra.mxu0 0.0
    %1546 = vmatprep.subr.mxu0 0.0
    %1547 = vmatpush1.xpose.msra.mxu0 0.0
    %1548 = vmatprep.subr.mxu0 0.0
    %1549 = vmatpush1.xpose.msra.mxu0 0.0
    %1550 = vmatprep.subr.mxu0 0.0
    %1551 = vmatpush1.xpose.msra.mxu0 0.0
    %1552 = vmatprep.subr.mxu0 0.0
    %1553 = vmatpush1.xpose.msra.mxu0 0.0
    %1554 = vmatprep.subr.mxu0 0.0
    %1555 = vmatpush1.xpose.msra.mxu0 0.0
    %1556 = vmatprep.subr.mxu0 0.0
    %1557 = vmatpush1.xpose.msra.mxu0 0.0
    %1558 = vmatprep.subr.mxu0 0.0
    %1559 = vmatpush1.xpose.msra.mxu0 0.0
    %1560 = vmatprep.subr.mxu0 0.0
    %1561 = vmatpush1.xpose.msra.mxu0 0.0
    %1562 = vmatprep.subr.mxu0 0.0
    %1563 = vmatpush1.xpose.msra.mxu0 0.0
    %1564 = vmatprep.subr.mxu0 0.0
    %1565 = vmatpush1.xpose.msra.mxu0 0.0
    %1566 = vmatprep.subr.mxu0 0.0
    %1567 = vmatpush1.xpose.msra.mxu0 0.0
    %1568 = vmatprep.subr.mxu0 0.0
    %1569 = vmatpush1.xpose.msra.mxu0 0.0
    %1570 = vmatprep.subr.mxu0 0.0
    %1571 = vmatpush1.xpose.msra.mxu0 0.0
    %1572 = vmatprep.subr.mxu0 0.0
    %1573 = vmatpush1.xpose.msra.mxu0 0.0
    %1574 = vmatprep.subr.mxu0 0.0
    %1575 = vmatpush1.xpose.msra.mxu0 0.0
    %1576 = vmatprep.subr.mxu0 0.0
    %1577 = vmatpush1.xpose.msra.mxu0 0.0
    %1578 = vmatprep.subr.mxu0 0.0
    %1579 = vmatpush1.xpose.msra.mxu0 0.0
    %1580 = vmatprep.subr.mxu0 0.0
    %1581 = vmatpush1.xpose.msra.mxu0 0.0
    %1582 = vmatprep.subr.mxu0 0.0
    %1583 = vmatpush1.xpose.msra.mxu0 0.0
    %1584 = vmatprep.subr.mxu0 0.0
    %1585 = vmatpush1.xpose.msra.mxu0 0.0
    %1586 = vmatprep.subr.mxu0 0.0
    %1587 = vmatpush1.xpose.msra.mxu0 0.0
    %1588 = vmatprep.subr.mxu0 0.0
    %1589 = vmatpush1.xpose.msra.mxu0 0.0
    %1590 = vmatprep.subr.mxu0 0.0
    %1591 = vmatpush1.xpose.msra.mxu0 0.0
    %1592 = vmatprep.subr.mxu0 0.0
    %1593 = vmatpush1.xpose.msra.mxu0 0.0
    %1594 = vmatprep.subr.mxu0 0.0
    %1595 = vmatpush1.xpose.msra.mxu0 0.0
    %1596 = vmatprep.subr.mxu0 0.0
    %1597 = vmatpush1.xpose.msra.mxu0 0.0
    %1598 = vmatprep.subr.mxu0 0.0
    %1599 = vmatpush1.xpose.msra.mxu0 0.0
    %1600 = vmatprep.subr.mxu0 0.0
    %1601 = vmatpush1.xpose.msra.mxu0 0.0
    %1602 = vmatprep.mubr.f32.mxu0 0.0
    %1603 = vmatmul.mubr.f32.gmra.mrb[0].mxu0 %v1534
    %v1604 = vpop.f32.mrb[0].mxu0
    %v1605 = vadd.f32 0.0, %v1604
    %v1606 = vpop.f32.mrb[0].mxu0
    %1607 = vdwg.mxu0
    %v1608 = vsel %vm347, %v1605, -inf
    %1609 = vmax.xlane.f32.xlu0 %v1608
    %v1610 = vpop.xlane.xlu0 %1609
    %v1611 = vsub.f32 %v1605, %v1610
    %v1612 = vmul.f32 %v1611, 1.442695
    %v1613 = vpow.pop %v1612
    %v1614 = vsel %vm347, %v1613, 0.0
    %1615 = vadd.xlane.f32.xlu0 %v1614
    %v1616 = vpop.xlane.xlu0 %1615
    %1617 = vrot.lane.b32.xlu0 %v339, 40
    %v1618 = vpop.permute.xlu0 %1617
    %v1621 = vsel %vm347, %v1613, 0
    %1623 = vmatprep.subr.mxu0 0.0
    %1624 = vmatpush1.msra.mxu0 %v1618
    %1625 = vmatprep.subr.mxu0 0.0
    %1626 = vmatpush1.msra.mxu0 0.0
    %1627 = vmatprep.subr.mxu0 0.0
    %1628 = vmatpush1.msra.mxu0 0.0
    %1629 = vmatprep.subr.mxu0 0.0
    %1630 = vmatpush1.msra.mxu0 0.0
    %1631 = vmatprep.subr.mxu0 0.0
    %1632 = vmatpush1.msra.mxu0 0.0
    %1633 = vmatprep.subr.mxu0 0.0
    %1634 = vmatpush1.msra.mxu0 0.0
    %1635 = vmatprep.subr.mxu0 0.0
    %1636 = vmatpush1.msra.mxu0 0.0
    %1637 = vmatprep.subr.mxu0 0.0
    %1638 = vmatpush1.msra.mxu0 0.0
    %1639 = vmatprep.subr.mxu0 0.0
    %1640 = vmatpush1.msra.mxu0 0.0
    %1641 = vmatprep.subr.mxu0 0.0
    %1642 = vmatpush1.msra.mxu0 0.0
    %1643 = vmatprep.subr.mxu0 0.0
    %1644 = vmatpush1.msra.mxu0 0.0
    %1645 = vmatprep.subr.mxu0 0.0
    %1646 = vmatpush1.msra.mxu0 0.0
    %1647 = vmatprep.subr.mxu0 0.0
    %1648 = vmatpush1.msra.mxu0 0.0
    %1649 = vmatprep.subr.mxu0 0.0
    %1650 = vmatpush1.msra.mxu0 0.0
    %1651 = vmatprep.subr.mxu0 0.0
    %1652 = vmatpush1.msra.mxu0 0.0
    %1653 = vmatprep.subr.mxu0 0.0
    %1654 = vmatpush1.msra.mxu0 0.0
    %1655 = vmatprep.subr.mxu0 0.0
    %1656 = vmatpush1.msra.mxu0 0.0
    %1657 = vmatprep.subr.mxu0 0.0
    %1658 = vmatpush1.msra.mxu0 0.0
    %1659 = vmatprep.subr.mxu0 0.0
    %1660 = vmatpush1.msra.mxu0 0.0
    %1661 = vmatprep.subr.mxu0 0.0
    %1662 = vmatpush1.msra.mxu0 0.0
    %1663 = vmatprep.subr.mxu0 0.0
    %1664 = vmatpush1.msra.mxu0 0.0
    %1665 = vmatprep.subr.mxu0 0.0
    %1666 = vmatpush1.msra.mxu0 0.0
    %1667 = vmatprep.subr.mxu0 0.0
    %1668 = vmatpush1.msra.mxu0 0.0
    %1669 = vmatprep.subr.mxu0 0.0
    %1670 = vmatpush1.msra.mxu0 0.0
    %1671 = vmatprep.subr.mxu0 0.0
    %1672 = vmatpush1.msra.mxu0 0.0
    %1673 = vmatprep.subr.mxu0 0.0
    %1674 = vmatpush1.msra.mxu0 0.0
    %1675 = vmatprep.subr.mxu0 0.0
    %1676 = vmatpush1.msra.mxu0 0.0
    %1677 = vmatprep.subr.mxu0 0.0
    %1678 = vmatpush1.msra.mxu0 0.0
    %1679 = vmatprep.subr.mxu0 0.0
    %1680 = vmatpush1.msra.mxu0 0.0
    %1681 = vmatprep.subr.mxu0 0.0
    %1682 = vmatpush1.msra.mxu0 0.0
    %1683 = vmatprep.subr.mxu0 0.0
    %1684 = vmatpush1.msra.mxu0 0.0
    %1685 = vmatprep.subr.mxu0 0.0
    %1686 = vmatpush1.msra.mxu0 0.0
    %1687 = vmatprep.mubr.f32.mxu0 0.0
    %1688 = vmatmul.mubr.f32.gmra.mrb[0].mxu0 %v1621
    %v1689 = vpop.f32.mrb[0].mxu0
    %v1690 = vadd.f32 0.0, %v1689
    %v1691 = vpop.f32.mrb[0].mxu0
    %1692 = vdwg.mxu0
    %v1693 = vrcp.pop %v1616
    %v1694 = vmul.f32 %v1690, %v1693
    %1696 = vrot.lane.b32.xlu0 %v1694, 24
    %v1697 = vpop.permute.xlu0 %1696
    %1699 = vst.msk [vmem:[#allocation2 + $0x8] sm:$0xff] %vm1022, %v1697
    %v1700 = vld [vmem:[#allocation2] sm:$0xff]
    %v1701 = vld [vmem:[#allocation2 + $0x8] sm:$0xff]
    %v1702 = vld [vmem:[%s6] sm:$0xff]
    %v1703 = vld [vmem:[%s6 + $0x8] sm:$0xff]
    %v1704 = vld [vmem:[%s6 + $0x10] sm:$0xff]
    %v1705 = vld [vmem:[%s6 + $0x18] sm:$0xff]
    %v1706 = vld [vmem:[#allocation8] sm:$0x1]
    %v1708 = vlaneseq
    %v1709 = vshrl.u32 %v1708, 7
    %v1710 = vsub.s32 0, %v1709
    %v1711 = vrot.slane %v1706, %v1710
    %v1714 = vsel %vm260, %v1700, 0
    %v1717 = vsel %vm260, %v1701, 0
    %1719 = vmatprep.subr.mxu0 0.0
    %1720 = vmatpush1.msra.mxu0 %v1702
    %1721 = vmatprep.subr.mxu0 0.0
    %1722 = vmatpush1.msra.mxu0 %v1703
    %1723 = vmatprep.subr.mxu0 0.0
    %1724 = vmatpush1.msra.mxu0 %v1704
    %1725 = vmatprep.subr.mxu0 0.0
    %1726 = vmatpush1.msra.mxu0 %v1705
    %1727 = vmatprep.subr.mxu0 0.0
    %1728 = vmatpush1.msra.mxu0 0.0
    %1729 = vmatprep.subr.mxu0 0.0
    %1730 = vmatpush1.msra.mxu0 0.0
    %1731 = vmatprep.subr.mxu0 0.0
    %1732 = vmatpush1.msra.mxu0 0.0
    %1733 = vmatprep.subr.mxu0 0.0
    %1734 = vmatpush1.msra.mxu0 0.0
    %1735 = vmatprep.subr.mxu0 0.0
    %1736 = vmatpush1.msra.mxu0 0.0
    %1737 = vmatprep.subr.mxu0 0.0
    %1738 = vmatpush1.msra.mxu0 0.0
    %1739 = vmatprep.subr.mxu0 0.0
    %1740 = vmatpush1.msra.mxu0 0.0
    %1741 = vmatprep.subr.mxu0 0.0
    %1742 = vmatpush1.msra.mxu0 0.0
    %1743 = vmatprep.subr.mxu0 0.0
    %1744 = vmatpush1.msra.mxu0 0.0
    %1745 = vmatprep.subr.mxu0 0.0
    %1746 = vmatpush1.msra.mxu0 0.0
    %1747 = vmatprep.subr.mxu0 0.0
    %1748 = vmatpush1.msra.mxu0 0.0
    %1749 = vmatprep.subr.mxu0 0.0
    %1750 = vmatpush1.msra.mxu0 0.0
    %1751 = vmatprep.subr.mxu0 0.0
    %1752 = vmatpush1.msra.mxu0 0.0
    %1753 = vmatprep.subr.mxu0 0.0
    %1754 = vmatpush1.msra.mxu0 0.0
    %1755 = vmatprep.subr.mxu0 0.0
    %1756 = vmatpush1.msra.mxu0 0.0
    %1757 = vmatprep.subr.mxu0 0.0
    %1758 = vmatpush1.msra.mxu0 0.0
    %1759 = vmatprep.subr.mxu0 0.0
    %1760 = vmatpush1.msra.mxu0 0.0
    %1761 = vmatprep.subr.mxu0 0.0
    %1762 = vmatpush1.msra.mxu0 0.0
    %1763 = vmatprep.subr.mxu0 0.0
    %1764 = vmatpush1.msra.mxu0 0.0
    %1765 = vmatprep.subr.mxu0 0.0
    %1766 = vmatpush1.msra.mxu0 0.0
    %1767 = vmatprep.subr.mxu0 0.0
    %1768 = vmatpush1.msra.mxu0 0.0
    %1769 = vmatprep.subr.mxu0 0.0
    %1770 = vmatpush1.msra.mxu0 0.0
    %1771 = vmatprep.subr.mxu0 0.0
    %1772 = vmatpush1.msra.mxu0 0.0
    %1773 = vmatprep.subr.mxu0 0.0
    %1774 = vmatpush1.msra.mxu0 0.0
    %1775 = vmatprep.subr.mxu0 0.0
    %1776 = vmatpush1.msra.mxu0 0.0
    %1777 = vmatprep.subr.mxu0 0.0
    %1778 = vmatpush1.msra.mxu0 0.0
    %1779 = vmatprep.subr.mxu0 0.0
    %1780 = vmatpush1.msra.mxu0 0.0
    %1781 = vmatprep.subr.mxu0 0.0
    %1782 = vmatpush1.msra.mxu0 0.0
    %1783 = vmatprep.mubr.f32.mxu0 0.0
    %1784 = vmatmul.mubr.f32.gmra.mrb[0].mxu0 %v1714
    %v1785 = vpop.f32.mrb[0].mxu0
    %v1786 = vadd.f32 %v1711, %v1785
    %v1787 = vpop.f32.mrb[0].mxu0
    %1788 = vmatprep.mubr.f32.mxu0 0.0
    %1789 = vmatmul.mubr.f32.gmra.mrb[0].mxu0 %v1717
    %v1790 = vpop.f32.mrb[0].mxu0
    %v1791 = vadd.f32 %v1711, %v1790
    %v1792 = vpop.f32.mrb[0].mxu0
    %1793 = vdwg.mxu0
    %v1794 = vadd.f32 %v247, %v1786
    %v1795 = vadd.f32 %v248, %v1791
    %v1796 = vsel %vm260, %v1794, 0.0
    %1797 = vadd.xlane.f32.xlu0 %v1796
    %v1798 = vpop.xlane.xlu0 %1797
    %v1799 = vsel %vm260, %v1795, 0.0
    %1800 = vadd.xlane.f32.xlu0 %v1799
    %v1801 = vpop.xlane.xlu0 %1800
    %v1802 = vrcp.pop 32.0
    %v1803 = vmul.f32 %v1798, %v1802
    %v1804 = vmul.f32 %v1801, %v1802
    %v1805 = vsub.f32 %v1794, %v1803
    %v1806 = vsub.f32 %v1795, %v1804
    %v1807 = vmul.f32 %v1805, %v1805
    %v1808 = vmul.f32 %v1806, %v1806
    %v1809 = vsel %vm260, %v1807, 0.0
    %1810 = vadd.xlane.f32.xlu0 %v1809
    %v1811 = vpop.xlane.xlu0 %1810
    %v1812 = vsel %vm260, %v1808, 0.0
    %1813 = vadd.xlane.f32.xlu0 %v1812
    %v1814 = vpop.xlane.xlu0 %1813
    %v1815 = vmul.f32 %v1811, %v1802
    %v1816 = vmul.f32 %v1814, %v1802
    %v1817 = vadd.f32 %v1815, 1e-05
    %v1818 = vadd.f32 %v1816, 1e-05
    %v1819 = vrsqrt.pop %v1817
    %v1820 = vrsqrt.pop %v1818
    %v1821 = vmul.f32 %v1805, %v1819
    %v1822 = vmul.f32 %v1806, %v1820
    %v1823 = vld [vmem:[%s8] sm:$0x1]
    %v1825 = vlaneseq
    %v1826 = vshrl.u32 %v1825, 7
    %v1827 = vsub.s32 0, %v1826
    %v1828 = vrot.slane %v1823, %v1827
    %v1830 = vmul.f32 %v1821, %v1828
    %v1831 = vmul.f32 %v1822, %v1828
    %v1832 = vld [vmem:[#allocation9] sm:$0x1]
    %v1834 = vlaneseq
    %v1835 = vshrl.u32 %v1834, 7
    %v1836 = vsub.s32 0, %v1835
    %v1837 = vrot.slane %v1832, %v1836
    %v1839 = vadd.f32 %v1830, %v1837
    %v1840 = vadd.f32 %v1831, %v1837
    %v1841 = vld [vmem:[%s10] sm:$0xff]
    %v1842 = vld [vmem:[%s10 + $0x8] sm:$0xff]
    %v1843 = vld [vmem:[%s10 + $0x10] sm:$0xff]
    %v1844 = vld [vmem:[%s10 + $0x18] sm:$0xff]
    %v1845 = vld [vmem:[#allocation11] sm:$0x1]
    %v1847 = vlaneseq
    %v1848 = vshrl.u32 %v1847, 7
    %v1849 = vsub.s32 0, %v1848
    %v1850 = vrot.slane %v1845, %v1849
    %v1853 = vsel %vm260, %v1839, 0
    %v1856 = vsel %vm260, %v1840, 0
    %1858 = vmatprep.subr.mxu0 0.0
    %1859 = vmatpush1.msra.mxu0 %v1841
    %1860 = vmatprep.subr.mxu0 0.0
    %1861 = vmatpush1.msra.mxu0 %v1842
    %1862 = vmatprep.subr.mxu0 0.0
    %1863 = vmatpush1.msra.mxu0 %v1843
    %1864 = vmatprep.subr.mxu0 0.0
    %1865 = vmatpush1.msra.mxu0 %v1844
    %1866 = vmatprep.subr.mxu0 0.0
    %1867 = vmatpush1.msra.mxu0 0.0
    %1868 = vmatprep.subr.mxu0 0.0
    %1869 = vmatpush1.msra.mxu0 0.0
    %1870 = vmatprep.subr.mxu0 0.0
    %1871 = vmatpush1.msra.mxu0 0.0
    %1872 = vmatprep.subr.mxu0 0.0
    %1873 = vmatpush1.msra.mxu0 0.0
    %1874 = vmatprep.subr.mxu0 0.0
    %1875 = vmatpush1.msra.mxu0 0.0
    %1876 = vmatprep.subr.mxu0 0.0
    %1877 = vmatpush1.msra.mxu0 0.0
    %1878 = vmatprep.subr.mxu0 0.0
    %1879 = vmatpush1.msra.mxu0 0.0
    %1880 = vmatprep.subr.mxu0 0.0
    %1881 = vmatpush1.msra.mxu0 0.0
    %1882 = vmatprep.subr.mxu0 0.0
    %1883 = vmatpush1.msra.mxu0 0.0
    %1884 = vmatprep.subr.mxu0 0.0
    %1885 = vmatpush1.msra.mxu0 0.0
    %1886 = vmatprep.subr.mxu0 0.0
    %1887 = vmatpush1.msra.mxu0 0.0
    %1888 = vmatprep.subr.mxu0 0.0
    %1889 = vmatpush1.msra.mxu0 0.0
    %1890 = vmatprep.subr.mxu0 0.0
    %1891 = vmatpush1.msra.mxu0 0.0
    %1892 = vmatprep.subr.mxu0 0.0
    %1893 = vmatpush1.msra.mxu0 0.0
    %1894 = vmatprep.subr.mxu0 0.0
    %1895 = vmatpush1.msra.mxu0 0.0
    %1896 = vmatprep.subr.mxu0 0.0
    %1897 = vmatpush1.msra.mxu0 0.0
    %1898 = vmatprep.subr.mxu0 0.0
    %1899 = vmatpush1.msra.mxu0 0.0
    %1900 = vmatprep.subr.mxu0 0.0
    %1901 = vmatpush1.msra.mxu0 0.0
    %1902 = vmatprep.subr.mxu0 0.0
    %1903 = vmatpush1.msra.mxu0 0.0
    %1904 = vmatprep.subr.mxu0 0.0
    %1905 = vmatpush1.msra.mxu0 0.0
    %1906 = vmatprep.subr.mxu0 0.0
    %1907 = vmatpush1.msra.mxu0 0.0
    %1908 = vmatprep.subr.mxu0 0.0
    %1909 = vmatpush1.msra.mxu0 0.0
    %1910 = vmatprep.subr.mxu0 0.0
    %1911 = vmatpush1.msra.mxu0 0.0
    %1912 = vmatprep.subr.mxu0 0.0
    %1913 = vmatpush1.msra.mxu0 0.0
    %1914 = vmatprep.subr.mxu0 0.0
    %1915 = vmatpush1.msra.mxu0 0.0
    %1916 = vmatprep.subr.mxu0 0.0
    %1917 = vmatpush1.msra.mxu0 0.0
    %1918 = vmatprep.subr.mxu0 0.0
    %1919 = vmatpush1.msra.mxu0 0.0
    %1920 = vmatprep.subr.mxu0 0.0
    %1921 = vmatpush1.msra.mxu0 0.0
    %1922 = vmatprep.mubr.f32.mxu0 0.0
    %1923 = vmatmul.mubr.f32.gmra.mrb[0].mxu0 %v1853
    %v1924 = vpop.f32.mrb[0].mxu0
    %v1925 = vadd.f32 %v1850, %v1924
    %v1926 = vpop.f32.mrb[0].mxu0
    %1927 = vmatprep.mubr.f32.mxu0 0.0
    %1928 = vmatmul.mubr.f32.gmra.mrb[0].mxu0 %v1856
    %v1929 = vpop.f32.mrb[0].mxu0
    %v1930 = vadd.f32 %v1850, %v1929
    %v1931 = vpop.f32.mrb[0].mxu0
    %1932 = vdwg.mxu0
    %v1933 = vmax.f32 %v1925, 0.0
    %v1934 = vmax.f32 %v1930, 0.0
    %v1935 = vld [vmem:[%s12] sm:$0xff]
    %v1936 = vld [vmem:[%s12 + $0x8] sm:$0xff]
    %v1937 = vld [vmem:[%s12 + $0x10] sm:$0xff]
    %v1938 = vld [vmem:[%s12 + $0x18] sm:$0xff]
    %v1939 = vld [vmem:[%s12 + $0x20] sm:$0xff]
    %v1940 = vld [vmem:[%s12 + $0x28] sm:$0xff]
    %v1941 = vld [vmem:[%s12 + $0x30] sm:$0xff]
    %v1942 = vld [vmem:[%s12 + $0x38] sm:$0xff]
    %v1943 = vld [vmem:[#allocation12] sm:$0x1]
    %v1945 = vlaneseq
    %v1946 = vshrl.u32 %v1945, 7
    %v1947 = vsub.s32 0, %v1946
    %v1948 = vrot.slane %v1943, %v1947
    %vm1950 = vcmask 523264
    %v1952 = vsel %vm1950, %v1933, 0
    %v1955 = vsel %vm1950, %v1934, 0
    %1957 = vmatprep.subr.mxu0 0.0
    %1958 = vmatpush1.msra.mxu0 %v1935
    %1959 = vmatprep.subr.mxu0 0.0
    %1960 = vmatpush1.msra.mxu0 %v1936
    %1961 = vmatprep.subr.mxu0 0.0
    %1962 = vmatpush1.msra.mxu0 %v1937
    %1963 = vmatprep.subr.mxu0 0.0
    %1964 = vmatpush1.msra.mxu0 %v1938
    %1965 = vmatprep.subr.mxu0 0.0
    %1966 = vmatpush1.msra.mxu0 %v1939
    %1967 = vmatprep.subr.mxu0 0.0
    %1968 = vmatpush1.msra.mxu0 %v1940
    %1969 = vmatprep.subr.mxu0 0.0
    %1970 = vmatpush1.msra.mxu0 %v1941
    %1971 = vmatprep.subr.mxu0 0.0
    %1972 = vmatpush1.msra.mxu0 %v1942
    %1973 = vmatprep.subr.mxu0 0.0
    %1974 = vmatpush1.msra.mxu0 0.0
    %1975 = vmatprep.subr.mxu0 0.0
    %1976 = vmatpush1.msra.mxu0 0.0
    %1977 = vmatprep.subr.mxu0 0.0
    %1978 = vmatpush1.msra.mxu0 0.0
    %1979 = vmatprep.subr.mxu0 0.0
    %1980 = vmatpush1.msra.mxu0 0.0
    %1981 = vmatprep.subr.mxu0 0.0
    %1982 = vmatpush1.msra.mxu0 0.0
    %1983 = vmatprep.subr.mxu0 0.0
    %1984 = vmatpush1.msra.mxu0 0.0
    %1985 = vmatprep.subr.mxu0 0.0
    %1986 = vmatpush1.msra.mxu0 0.0
    %1987 = vmatprep.subr.mxu0 0.0
    %1988 = vmatpush1.msra.mxu0 0.0
    %1989 = vmatprep.subr.mxu0 0.0
    %1990 = vmatpush1.msra.mxu0 0.0
    %1991 = vmatprep.subr.mxu0 0.0
    %1992 = vmatpush1.msra.mxu0 0.0
    %1993 = vmatprep.subr.mxu0 0.0
    %1994 = vmatpush1.msra.mxu0 0.0
    %1995 = vmatprep.subr.mxu0 0.0
    %1996 = vmatpush1.msra.mxu0 0.0
    %1997 = vmatprep.subr.mxu0 0.0
    %1998 = vmatpush1.msra.mxu0 0.0
    %1999 = vmatprep.subr.mxu0 0.0
    %2000 = vmatpush1.msra.mxu0 0.0
    %2001 = vmatprep.subr.mxu0 0.0
    %2002 = vmatpush1.msra.mxu0 0.0
    %2003 = vmatprep.subr.mxu0 0.0
    %2004 = vmatpush1.msra.mxu0 0.0
    %2005 = vmatprep.subr.mxu0 0.0
    %2006 = vmatpush1.msra.mxu0 0.0
    %2007 = vmatprep.subr.mxu0 0.0
    %2008 = vmatpush1.msra.mxu0 0.0
    %2009 = vmatprep.subr.mxu0 0.0
    %2010 = vmatpush1.msra.mxu0 0.0
    %2011 = vmatprep.subr.mxu0 0.0
    %2012 = vmatpush1.msra.mxu0 0.0
    %2013 = vmatprep.subr.mxu0 0.0
    %2014 = vmatpush1.msra.mxu0 0.0
    %2015 = vmatprep.subr.mxu0 0.0
    %2016 = vmatpush1.msra.mxu0 0.0
    %2017 = vmatprep.subr.mxu0 0.0
    %2018 = vmatpush1.msra.mxu0 0.0
    %2019 = vmatprep.subr.mxu0 0.0
    %2020 = vmatpush1.msra.mxu0 0.0
    %2021 = vmatprep.mubr.f32.mxu0 0.0
    %2022 = vmatmul.mubr.f32.gmra.mrb[0].mxu0 %v1952
    %v2023 = vpop.f32.mrb[0].mxu0
    %v2024 = vadd.f32 %v1948, %v2023
    %v2025 = vpop.f32.mrb[0].mxu0
    %2026 = vmatprep.mubr.f32.mxu0 0.0
    %2027 = vmatmul.mubr.f32.gmra.mrb[0].mxu0 %v1955
    %v2028 = vpop.f32.mrb[0].mxu0
    %v2029 = vadd.f32 %v1948, %v2028
    %v2030 = vpop.f32.mrb[0].mxu0
    %2031 = vdwg.mxu0
    %v2032 = vadd.f32 %v1839, %v2024
    %v2033 = vadd.f32 %v1840, %v2029
    %v2034 = vsel %vm260, %v2032, 0.0
    %2035 = vadd.xlane.f32.xlu0 %v2034
    %v2036 = vpop.xlane.xlu0 %2035
    %v2037 = vsel %vm260, %v2033, 0.0
    %2038 = vadd.xlane.f32.xlu0 %v2037
    %v2039 = vpop.xlane.xlu0 %2038
    %v2040 = vmul.f32 %v2036, %v1802
    %v2041 = vmul.f32 %v2039, %v1802
    %v2042 = vsub.f32 %v2032, %v2040
    %v2043 = vsub.f32 %v2033, %v2041
    %v2044 = vmul.f32 %v2042, %v2042
    %v2045 = vmul.f32 %v2043, %v2043
    %v2046 = vsel %vm260, %v2044, 0.0
    %2047 = vadd.xlane.f32.xlu0 %v2046
    %v2048 = vpop.xlane.xlu0 %2047
    %v2049 = vsel %vm260, %v2045, 0.0
    %2050 = vadd.xlane.f32.xlu0 %v2049
    %v2051 = vpop.xlane.xlu0 %2050
    %v2052 = vmul.f32 %v2048, %v1802
    %v2053 = vmul.f32 %v2051, %v1802
    %v2054 = vadd.f32 %v2052, 1e-05
    %v2055 = vadd.f32 %v2053, 1e-05
    %v2056 = vrsqrt.pop %v2054
    %v2057 = vrsqrt.pop %v2055
    %v2058 = vmul.f32 %v2042, %v2056
    %v2059 = vmul.f32 %v2043, %v2057
    %v2060 = vld [vmem:[%s14] sm:$0x1]
    %v2062 = vlaneseq
    %v2063 = vshrl.u32 %v2062, 7
    %v2064 = vsub.s32 0, %v2063
    %v2065 = vrot.slane %v2060, %v2064
    %v2067 = vmul.f32 %v2058, %v2065
    %v2068 = vmul.f32 %v2059, %v2065
    %v2069 = vld [vmem:[%s15] sm:$0x1]
    %v2071 = vlaneseq
    %v2072 = vshrl.u32 %v2071, 7
    %v2073 = vsub.s32 0, %v2072
    %v2074 = vrot.slane %v2069, %v2073
    %v2076 = vadd.f32 %v2067, %v2074
    %v2077 = vadd.f32 %v2068, %v2074
    %s2078 = scalar_lea.vmem %s4, 32
    %v2079 = vld [vmem:[%s2078] sm:$0xff]
    %v2080 = vld [vmem:[%s2078 + $0x8] sm:$0xff]
    %v2081 = vld [vmem:[%s2078 + $0x10] sm:$0xff]
    %v2082 = vld [vmem:[%s2078 + $0x18] sm:$0xff]
    %s2083 = scalar_lea.vmem %s5, 1
    %v2084 = vld [vmem:[%s2083] sm:$0x1]
    %v2086 = vlaneseq
    %v2087 = vshrl.u32 %v2086, 7
    %v2088 = vsub.s32 0, %v2087
    %v2089 = vrot.slane %v2084, %v2088
    %v2092 = vsel %vm260, %v2076, 0
    %v2095 = vsel %vm260, %v2077, 0
    %2097 = vmatprep.subr.mxu0 0.0
    %2098 = vmatpush1.msra.mxu0 %v2079
    %2099 = vmatprep.subr.mxu0 0.0
    %2100 = vmatpush1.msra.mxu0 %v2080
    %2101 = vmatprep.subr.mxu0 0.0
    %2102 = vmatpush1.msra.mxu0 %v2081
    %2103 = vmatprep.subr.mxu0 0.0
    %2104 = vmatpush1.msra.mxu0 %v2082
    %2105 = vmatprep.subr.mxu0 0.0
    %2106 = vmatpush1.msra.mxu0 0.0
    %2107 = vmatprep.subr.mxu0 0.0
    %2108 = vmatpush1.msra.mxu0 0.0
    %2109 = vmatprep.subr.mxu0 0.0
    %2110 = vmatpush1.msra.mxu0 0.0
    %2111 = vmatprep.subr.mxu0 0.0
    %2112 = vmatpush1.msra.mxu0 0.0
    %2113 = vmatprep.subr.mxu0 0.0
    %2114 = vmatpush1.msra.mxu0 0.0
    %2115 = vmatprep.subr.mxu0 0.0
    %2116 = vmatpush1.msra.mxu0 0.0
    %2117 = vmatprep.subr.mxu0 0.0
    %2118 = vmatpush1.msra.mxu0 0.0
    %2119 = vmatprep.subr.mxu0 0.0
    %2120 = vmatpush1.msra.mxu0 0.0
    %2121 = vmatprep.subr.mxu0 0.0
    %2122 = vmatpush1.msra.mxu0 0.0
    %2123 = vmatprep.subr.mxu0 0.0
    %2124 = vmatpush1.msra.mxu0 0.0
    %2125 = vmatprep.subr.mxu0 0.0
    %2126 = vmatpush1.msra.mxu0 0.0
    %2127 = vmatprep.subr.mxu0 0.0
    %2128 = vmatpush1.msra.mxu0 0.0
    %2129 = vmatprep.subr.mxu0 0.0
    %2130 = vmatpush1.msra.mxu0 0.0
    %2131 = vmatprep.subr.mxu0 0.0
    %2132 = vmatpush1.msra.mxu0 0.0
    %2133 = vmatprep.subr.mxu0 0.0
    %2134 = vmatpush1.msra.mxu0 0.0
    %2135 = vmatprep.subr.mxu0 0.0
    %2136 = vmatpush1.msra.mxu0 0.0
    %2137 = vmatprep.subr.mxu0 0.0
    %2138 = vmatpush1.msra.mxu0 0.0
    %2139 = vmatprep.subr.mxu0 0.0
    %2140 = vmatpush1.msra.mxu0 0.0
    %2141 = vmatprep.subr.mxu0 0.0
    %2142 = vmatpush1.msra.mxu0 0.0
    %2143 = vmatprep.subr.mxu0 0.0
    %2144 = vmatpush1.msra.mxu0 0.0
    %2145 = vmatprep.subr.mxu0 0.0
    %2146 = vmatpush1.msra.mxu0 0.0
    %2147 = vmatprep.subr.mxu0 0.0
    %2148 = vmatpush1.msra.mxu0 0.0
    %2149 = vmatprep.subr.mxu0 0.0
    %2150 = vmatpush1.msra.mxu0 0.0
    %2151 = vmatprep.subr.mxu0 0.0
    %2152 = vmatpush1.msra.mxu0 0.0
    %2153 = vmatprep.subr.mxu0 0.0
    %2154 = vmatpush1.msra.mxu0 0.0
    %2155 = vmatprep.subr.mxu0 0.0
    %2156 = vmatpush1.msra.mxu0 0.0
    %2157 = vmatprep.subr.mxu0 0.0
    %2158 = vmatpush1.msra.mxu0 0.0
    %2159 = vmatprep.subr.mxu0 0.0
    %2160 = vmatpush1.msra.mxu0 0.0
    %2161 = vmatprep.mubr.f32.mxu0 0.0
    %2162 = vmatmul.mubr.f32.gmra.mrb[0].mxu0 %v2092
    %v2163 = vpop.f32.mrb[0].mxu0
    %v2164 = vadd.f32 %v2089, %v2163
    %v2165 = vpop.f32.mrb[0].mxu0
    %2166 = vmatprep.mubr.f32.mxu0 0.0
    %2167 = vmatmul.mubr.f32.gmra.mrb[0].mxu0 %v2095
    %v2168 = vpop.f32.mrb[0].mxu0
    %v2169 = vadd.f32 %v2089, %v2168
    %v2170 = vpop.f32.mrb[0].mxu0
    %2171 = vdwg.mxu0
    %v2172 = vmul.f32 %v2164, 0.35355338
    %v2173 = vmul.f32 %v2169, 0.35355338
    %2175 = vrot.lane.b32.xlu0 %v2164, 96
    %v2176 = vpop.permute.xlu0 %2175
    %v2178 = vsel %vm347, %v2172, 0
    %v2180 = vsel %vm347, %v2176, 0
    %2182 = vmatprep.subr.mxu0 0.0
    %2183 = vmatpush1.xpose.msra.mxu0 %v2180
    %2184 = vmatprep.subr.mxu0 0.0
    %2185 = vmatpush1.xpose.msra.mxu0 0.0
    %2186 = vmatprep.subr.mxu0 0.0
    %2187 = vmatpush1.xpose.msra.mxu0 0.0
    %2188 = vmatprep.subr.mxu0 0.0
    %2189 = vmatpush1.xpose.msra.mxu0 0.0
    %2190 = vmatprep.subr.mxu0 0.0
    %2191 = vmatpush1.xpose.msra.mxu0 0.0
    %2192 = vmatprep.subr.mxu0 0.0
    %2193 = vmatpush1.xpose.msra.mxu0 0.0
    %2194 = vmatprep.subr.mxu0 0.0
    %2195 = vmatpush1.xpose.msra.mxu0 0.0
    %2196 = vmatprep.subr.mxu0 0.0
    %2197 = vmatpush1.xpose.msra.mxu0 0.0
    %2198 = vmatprep.subr.mxu0 0.0
    %2199 = vmatpush1.xpose.msra.mxu0 0.0
    %2200 = vmatprep.subr.mxu0 0.0
    %2201 = vmatpush1.xpose.msra.mxu0 0.0
    %2202 = vmatprep.subr.mxu0 0.0
    %2203 = vmatpush1.xpose.msra.mxu0 0.0
    %2204 = vmatprep.subr.mxu0 0.0
    %2205 = vmatpush1.xpose.msra.mxu0 0.0
    %2206 = vmatprep.subr.mxu0 0.0
    %2207 = vmatpush1.xpose.msra.mxu0 0.0
    %2208 = vmatprep.subr.mxu0 0.0
    %2209 = vmatpush1.xpose.msra.mxu0 0.0
    %2210 = vmatprep.subr.mxu0 0.0
    %2211 = vmatpush1.xpose.msra.mxu0 0.0
    %2212 = vmatprep.subr.mxu0 0.0
    %2213 = vmatpush1.xpose.msra.mxu0 0.0
    %2214 = vmatprep.subr.mxu0 0.0
    %2215 = vmatpush1.xpose.msra.mxu0 0.0
    %2216 = vmatprep.subr.mxu0 0.0
    %2217 = vmatpush1.xpose.msra.mxu0 0.0
    %2218 = vmatprep.subr.mxu0 0.0
    %2219 = vmatpush1.xpose.msra.mxu0 0.0
    %2220 = vmatprep.subr.mxu0 0.0
    %2221 = vmatpush1.xpose.msra.mxu0 0.0
    %2222 = vmatprep.subr.mxu0 0.0
    %2223 = vmatpush1.xpose.msra.mxu0 0.0
    %2224 = vmatprep.subr.mxu0 0.0
    %2225 = vmatpush1.xpose.msra.mxu0 0.0
    %2226 = vmatprep.subr.mxu0 0.0
    %2227 = vmatpush1.xpose.msra.mxu0 0.0
    %2228 = vmatprep.subr.mxu0 0.0
    %2229 = vmatpush1.xpose.msra.mxu0 0.0
    %2230 = vmatprep.subr.mxu0 0.0
    %2231 = vmatpush1.xpose.msra.mxu0 0.0
    %2232 = vmatprep.subr.mxu0 0.0
    %2233 = vmatpush1.xpose.msra.mxu0 0.0
    %2234 = vmatprep.subr.mxu0 0.0
    %2235 = vmatpush1.xpose.msra.mxu0 0.0
    %2236 = vmatprep.subr.mxu0 0.0
    %2237 = vmatpush1.xpose.msra.mxu0 0.0
    %2238 = vmatprep.subr.mxu0 0.0
    %2239 = vmatpush1.xpose.msra.mxu0 0.0
    %2240 = vmatprep.subr.mxu0 0.0
    %2241 = vmatpush1.xpose.msra.mxu0 0.0
    %2242 = vmatprep.subr.mxu0 0.0
    %2243 = vmatpush1.xpose.msra.mxu0 0.0
    %2244 = vmatprep.subr.mxu0 0.0
    %2245 = vmatpush1.xpose.msra.mxu0 0.0
    %2246 = vmatprep.mubr.f32.mxu0 0.0
    %2247 = vmatmul.mubr.f32.gmra.mrb[0].mxu0 %v2178
    %v2248 = vpop.f32.mrb[0].mxu0
    %v2249 = vadd.f32 0.0, %v2248
    %v2250 = vpop.f32.mrb[0].mxu0
    %2251 = vdwg.mxu0
    %v2252 = vsel %vm347, %v2249, -inf
    %2253 = vmax.xlane.f32.xlu0 %v2252
    %v2254 = vpop.xlane.xlu0 %2253
    %v2255 = vsub.f32 %v2249, %v2254
    %v2256 = vmul.f32 %v2255, 1.442695
    %v2257 = vpow.pop %v2256
    %v2258 = vsel %vm347, %v2257, 0.0
    %2259 = vadd.xlane.f32.xlu0 %v2258
    %v2260 = vpop.xlane.xlu0 %2259
    %2261 = vrot.lane.b32.xlu0 %v2164, 64
    %v2262 = vpop.permute.xlu0 %2261
    %v2265 = vsel %vm347, %v2257, 0
    %2267 = vmatprep.subr.mxu0 0.0
    %2268 = vmatpush1.msra.mxu0 %v2262
    %2269 = vmatprep.subr.mxu0 0.0
    %2270 = vmatpush1.msra.mxu0 0.0
    %2271 = vmatprep.subr.mxu0 0.0
    %2272 = vmatpush1.msra.mxu0 0.0
    %2273 = vmatprep.subr.mxu0 0.0
    %2274 = vmatpush1.msra.mxu0 0.0
    %2275 = vmatprep.subr.mxu0 0.0
    %2276 = vmatpush1.msra.mxu0 0.0
    %2277 = vmatprep.subr.mxu0 0.0
    %2278 = vmatpush1.msra.mxu0 0.0
    %2279 = vmatprep.subr.mxu0 0.0
    %2280 = vmatpush1.msra.mxu0 0.0
    %2281 = vmatprep.subr.mxu0 0.0
    %2282 = vmatpush1.msra.mxu0 0.0
    %2283 = vmatprep.subr.mxu0 0.0
    %2284 = vmatpush1.msra.mxu0 0.0
    %2285 = vmatprep.subr.mxu0 0.0
    %2286 = vmatpush1.msra.mxu0 0.0
    %2287 = vmatprep.subr.mxu0 0.0
    %2288 = vmatpush1.msra.mxu0 0.0
    %2289 = vmatprep.subr.mxu0 0.0
    %2290 = vmatpush1.msra.mxu0 0.0
    %2291 = vmatprep.subr.mxu0 0.0
    %2292 = vmatpush1.msra.mxu0 0.0
    %2293 = vmatprep.subr.mxu0 0.0
    %2294 = vmatpush1.msra.mxu0 0.0
    %2295 = vmatprep.subr.mxu0 0.0
    %2296 = vmatpush1.msra.mxu0 0.0
    %2297 = vmatprep.subr.mxu0 0.0
    %2298 = vmatpush1.msra.mxu0 0.0
    %2299 = vmatprep.subr.mxu0 0.0
    %2300 = vmatpush1.msra.mxu0 0.0
    %2301 = vmatprep.subr.mxu0 0.0
    %2302 = vmatpush1.msra.mxu0 0.0
    %2303 = vmatprep.subr.mxu0 0.0
    %2304 = vmatpush1.msra.mxu0 0.0
    %2305 = vmatprep.subr.mxu0 0.0
    %2306 = vmatpush1.msra.mxu0 0.0
    %2307 = vmatprep.subr.mxu0 0.0
    %2308 = vmatpush1.msra.mxu0 0.0
    %2309 = vmatprep.subr.mxu0 0.0
    %2310 = vmatpush1.msra.mxu0 0.0
    %2311 = vmatprep.subr.mxu0 0.0
    %2312 = vmatpush1.msra.mxu0 0.0
    %2313 = vmatprep.subr.mxu0 0.0
    %2314 = vmatpush1.msra.mxu0 0.0
    %2315 = vmatprep.subr.mxu0 0.0
    %2316 = vmatpush1.msra.mxu0 0.0
    %2317 = vmatprep.subr.mxu0 0.0
    %2318 = vmatpush1.msra.mxu0 0.0
    %2319 = vmatprep.subr.mxu0 0.0
    %2320 = vmatpush1.msra.mxu0 0.0
    %2321 = vmatprep.subr.mxu0 0.0
    %2322 = vmatpush1.msra.mxu0 0.0
    %2323 = vmatprep.subr.mxu0 0.0
    %2324 = vmatpush1.msra.mxu0 0.0
    %2325 = vmatprep.subr.mxu0 0.0
    %2326 = vmatpush1.msra.mxu0 0.0
    %2327 = vmatprep.subr.mxu0 0.0
    %2328 = vmatpush1.msra.mxu0 0.0
    %2329 = vmatprep.subr.mxu0 0.0
    %2330 = vmatpush1.msra.mxu0 0.0
    %2331 = vmatprep.mubr.f32.mxu0 0.0
    %2332 = vmatmul.mubr.f32.gmra.mrb[0].mxu0 %v2265
    %v2333 = vpop.f32.mrb[0].mxu0
    %v2334 = vadd.f32 0.0, %v2333
    %v2335 = vpop.f32.mrb[0].mxu0
    %2336 = vdwg.mxu0
    %v2337 = vrcp.pop %v2260
    %v2338 = vmul.f32 %v2334, %v2337
    %2339 = vst.msk [vmem:[#allocation2] sm:$0xff] %vm347, %v2338
    %2340 = vrot.lane.b32.xlu0 %v2172, 120
    %v2341 = vpop.permute.xlu0 %2340
    %2342 = vrot.lane.b32.xlu0 %v2164, 88
    %v2343 = vpop.permute.xlu0 %2342
    %v2344 = vsel %vm347, %v2341, 0
    %v2346 = vsel %vm347, %v2343, 0
    %2348 = vmatprep.subr.mxu0 0.0
    %2349 = vmatpush1.xpose.msra.mxu0 %v2346
    %2350 = vmatprep.subr.mxu0 0.0
    %2351 = vmatpush1.xpose.msra.mxu0 0.0
    %2352 = vmatprep.subr.mxu0 0.0
    %2353 = vmatpush1.xpose.msra.mxu0 0.0
    %2354 = vmatprep.subr.mxu0 0.0
    %2355 = vmatpush1.xpose.msra.mxu0 0.0
    %2356 = vmatprep.subr.mxu0 0.0
    %2357 = vmatpush1.xpose.msra.mxu0 0.0
    %2358 = vmatprep.subr.mxu0 0.0
    %2359 = vmatpush1.xpose.msra.mxu0 0.0
    %2360 = vmatprep.subr.mxu0 0.0
    %2361 = vmatpush1.xpose.msra.mxu0 0.0
    %2362 = vmatprep.subr.mxu0 0.0
    %2363 = vmatpush1.xpose.msra.mxu0 0.0
    %2364 = vmatprep.subr.mxu0 0.0
    %2365 = vmatpush1.xpose.msra.mxu0 0.0
    %2366 = vmatprep.subr.mxu0 0.0
    %2367 = vmatpush1.xpose.msra.mxu0 0.0
    %2368 = vmatprep.subr.mxu0 0.0
    %2369 = vmatpush1.xpose.msra.mxu0 0.0
    %2370 = vmatprep.subr.mxu0 0.0
    %2371 = vmatpush1.xpose.msra.mxu0 0.0
    %2372 = vmatprep.subr.mxu0 0.0
    %2373 = vmatpush1.xpose.msra.mxu0 0.0
    %2374 = vmatprep.subr.mxu0 0.0
    %2375 = vmatpush1.xpose.msra.mxu0 0.0
    %2376 = vmatprep.subr.mxu0 0.0
    %2377 = vmatpush1.xpose.msra.mxu0 0.0
    %2378 = vmatprep.subr.mxu0 0.0
    %2379 = vmatpush1.xpose.msra.mxu0 0.0
    %2380 = vmatprep.subr.mxu0 0.0
    %2381 = vmatpush1.xpose.msra.mxu0 0.0
    %2382 = vmatprep.subr.mxu0 0.0
    %2383 = vmatpush1.xpose.msra.mxu0 0.0
    %2384 = vmatprep.subr.mxu0 0.0
    %2385 = vmatpush1.xpose.msra.mxu0 0.0
    %2386 = vmatprep.subr.mxu0 0.0
    %2387 = vmatpush1.xpose.msra.mxu0 0.0
    %2388 = vmatprep.subr.mxu0 0.0
    %2389 = vmatpush1.xpose.msra.mxu0 0.0
    %2390 = vmatprep.subr.mxu0 0.0
    %2391 = vmatpush1.xpose.msra.mxu0 0.0
    %2392 = vmatprep.subr.mxu0 0.0
    %2393 = vmatpush1.xpose.msra.mxu0 0.0
    %2394 = vmatprep.subr.mxu0 0.0
    %2395 = vmatpush1.xpose.msra.mxu0 0.0
    %2396 = vmatprep.subr.mxu0 0.0
    %2397 = vmatpush1.xpose.msra.mxu0 0.0
    %2398 = vmatprep.subr.mxu0 0.0
    %2399 = vmatpush1.xpose.msra.mxu0 0.0
    %2400 = vmatprep.subr.mxu0 0.0
    %2401 = vmatpush1.xpose.msra.mxu0 0.0
    %2402 = vmatprep.subr.mxu0 0.0
    %2403 = vmatpush1.xpose.msra.mxu0 0.0
    %2404 = vmatprep.subr.mxu0 0.0
    %2405 = vmatpush1.xpose.msra.mxu0 0.0
    %2406 = vmatprep.subr.mxu0 0.0
    %2407 = vmatpush1.xpose.msra.mxu0 0.0
    %2408 = vmatprep.subr.mxu0 0.0
    %2409 = vmatpush1.xpose.msra.mxu0 0.0
    %2410 = vmatprep.subr.mxu0 0.0
    %2411 = vmatpush1.xpose.msra.mxu0 0.0
    %2412 = vmatprep.mubr.f32.mxu0 0.0
    %2413 = vmatmul.mubr.f32.gmra.mrb[0].mxu0 %v2344
    %v2414 = vpop.f32.mrb[0].mxu0
    %v2415 = vadd.f32 0.0, %v2414
    %v2416 = vpop.f32.mrb[0].mxu0
    %2417 = vdwg.mxu0
    %v2418 = vsel %vm347, %v2415, -inf
    %2419 = vmax.xlane.f32.xlu0 %v2418
    %v2420 = vpop.xlane.xlu0 %2419
    %v2421 = vsub.f32 %v2415, %v2420
    %v2422 = vmul.f32 %v2421, 1.442695
    %v2423 = vpow.pop %v2422
    %v2424 = vsel %vm347, %v2423, 0.0
    %2425 = vadd.xlane.f32.xlu0 %v2424
    %v2426 = vpop.xlane.xlu0 %2425
    %2427 = vrot.lane.b32.xlu0 %v2164, 56
    %v2428 = vpop.permute.xlu0 %2427
    %v2431 = vsel %vm347, %v2423, 0
    %2433 = vmatprep.subr.mxu0 0.0
    %2434 = vmatpush1.msra.mxu0 %v2428
    %2435 = vmatprep.subr.mxu0 0.0
    %2436 = vmatpush1.msra.mxu0 0.0
    %2437 = vmatprep.subr.mxu0 0.0
    %2438 = vmatpush1.msra.mxu0 0.0
    %2439 = vmatprep.subr.mxu0 0.0
    %2440 = vmatpush1.msra.mxu0 0.0
    %2441 = vmatprep.subr.mxu0 0.0
    %2442 = vmatpush1.msra.mxu0 0.0
    %2443 = vmatprep.subr.mxu0 0.0
    %2444 = vmatpush1.msra.mxu0 0.0
    %2445 = vmatprep.subr.mxu0 0.0
    %2446 = vmatpush1.msra.mxu0 0.0
    %2447 = vmatprep.subr.mxu0 0.0
    %2448 = vmatpush1.msra.mxu0 0.0
    %2449 = vmatprep.subr.mxu0 0.0
    %2450 = vmatpush1.msra.mxu0 0.0
    %2451 = vmatprep.subr.mxu0 0.0
    %2452 = vmatpush1.msra.mxu0 0.0
    %2453 = vmatprep.subr.mxu0 0.0
    %2454 = vmatpush1.msra.mxu0 0.0
    %2455 = vmatprep.subr.mxu0 0.0
    %2456 = vmatpush1.msra.mxu0 0.0
    %2457 = vmatprep.subr.mxu0 0.0
    %2458 = vmatpush1.msra.mxu0 0.0
    %2459 = vmatprep.subr.mxu0 0.0
    %2460 = vmatpush1.msra.mxu0 0.0
    %2461 = vmatprep.subr.mxu0 0.0
    %2462 = vmatpush1.msra.mxu0 0.0
    %2463 = vmatprep.subr.mxu0 0.0
    %2464 = vmatpush1.msra.mxu0 0.0
    %2465 = vmatprep.subr.mxu0 0.0
    %2466 = vmatpush1.msra.mxu0 0.0
    %2467 = vmatprep.subr.mxu0 0.0
    %2468 = vmatpush1.msra.mxu0 0.0
    %2469 = vmatprep.subr.mxu0 0.0
    %2470 = vmatpush1.msra.mxu0 0.0
    %2471 = vmatprep.subr.mxu0 0.0
    %2472 = vmatpush1.msra.mxu0 0.0
    %2473 = vmatprep.subr.mxu0 0.0
    %2474 = vmatpush1.msra.mxu0 0.0
    %2475 = vmatprep.subr.mxu0 0.0
    %2476 = vmatpush1.msra.mxu0 0.0
    %2477 = vmatprep.subr.mxu0 0.0
    %2478 = vmatpush1.msra.mxu0 0.0
    %2479 = vmatprep.subr.mxu0 0.0
    %2480 = vmatpush1.msra.mxu0 0.0
    %2481 = vmatprep.subr.mxu0 0.0
    %2482 = vmatpush1.msra.mxu0 0.0
    %2483 = vmatprep.subr.mxu0 0.0
    %2484 = vmatpush1.msra.mxu0 0.0
    %2485 = vmatprep.subr.mxu0 0.0
    %2486 = vmatpush1.msra.mxu0 0.0
    %2487 = vmatprep.subr.mxu0 0.0
    %2488 = vmatpush1.msra.mxu0 0.0
    %2489 = vmatprep.subr.mxu0 0.0
    %2490 = vmatpush1.msra.mxu0 0.0
    %2491 = vmatprep.subr.mxu0 0.0
    %2492 = vmatpush1.msra.mxu0 0.0
    %2493 = vmatprep.subr.mxu0 0.0
    %2494 = vmatpush1.msra.mxu0 0.0
    %2495 = vmatprep.subr.mxu0 0.0
    %2496 = vmatpush1.msra.mxu0 0.0
    %2497 = vmatprep.mubr.f32.mxu0 0.0
    %2498 = vmatmul.mubr.f32.gmra.mrb[0].mxu0 %v2431
    %v2499 = vpop.f32.mrb[0].mxu0
    %v2500 = vadd.f32 0.0, %v2499
    %v2501 = vpop.f32.mrb[0].mxu0
    %2502 = vdwg.mxu0
    %v2503 = vrcp.pop %v2426
    %v2504 = vmul.f32 %v2500, %v2503
    %2506 = vrot.lane.b32.xlu0 %v2504, 8
    %v2507 = vpop.permute.xlu0 %2506
    %2509 = vst.msk [vmem:[#allocation2] sm:$0xff] %vm680, %v2507
    %2510 = vrot.lane.b32.xlu0 %v2172, 112
    %v2511 = vpop.permute.xlu0 %2510
    %2512 = vrot.lane.b32.xlu0 %v2164, 80
    %v2513 = vpop.permute.xlu0 %2512
    %v2514 = vsel %vm347, %v2511, 0
    %v2516 = vsel %vm347, %v2513, 0
    %2518 = vmatprep.subr.mxu0 0.0
    %2519 = vmatpush1.xpose.msra.mxu0 %v2516
    %2520 = vmatprep.subr.mxu0 0.0
    %2521 = vmatpush1.xpose.msra.mxu0 0.0
    %2522 = vmatprep.subr.mxu0 0.0
    %2523 = vmatpush1.xpose.msra.mxu0 0.0
    %2524 = vmatprep.subr.mxu0 0.0
    %2525 = vmatpush1.xpose.msra.mxu0 0.0
    %2526 = vmatprep.subr.mxu0 0.0
    %2527 = vmatpush1.xpose.msra.mxu0 0.0
    %2528 = vmatprep.subr.mxu0 0.0
    %2529 = vmatpush1.xpose.msra.mxu0 0.0
    %2530 = vmatprep.subr.mxu0 0.0
    %2531 = vmatpush1.xpose.msra.mxu0 0.0
    %2532 = vmatprep.subr.mxu0 0.0
    %2533 = vmatpush1.xpose.msra.mxu0 0.0
    %2534 = vmatprep.subr.mxu0 0.0
    %2535 = vmatpush1.xpose.msra.mxu0 0.0
    %2536 = vmatprep.subr.mxu0 0.0
    %2537 = vmatpush1.xpose.msra.mxu0 0.0
    %2538 = vmatprep.subr.mxu0 0.0
    %2539 = vmatpush1.xpose.msra.mxu0 0.0
    %2540 = vmatprep.subr.mxu0 0.0
    %2541 = vmatpush1.xpose.msra.mxu0 0.0
    %2542 = vmatprep.subr.mxu0 0.0
    %2543 = vmatpush1.xpose.msra.mxu0 0.0
    %2544 = vmatprep.subr.mxu0 0.0
    %2545 = vmatpush1.xpose.msra.mxu0 0.0
    %2546 = vmatprep.subr.mxu0 0.0
    %2547 = vmatpush1.xpose.msra.mxu0 0.0
    %2548 = vmatprep.subr.mxu0 0.0
    %2549 = vmatpush1.xpose.msra.mxu0 0.0
    %2550 = vmatprep.subr.mxu0 0.0
    %2551 = vmatpush1.xpose.msra.mxu0 0.0
    %2552 = vmatprep.subr.mxu0 0.0
    %2553 = vmatpush1.xpose.msra.mxu0 0.0
    %2554 = vmatprep.subr.mxu0 0.0
    %2555 = vmatpush1.xpose.msra.mxu0 0.0
    %2556 = vmatprep.subr.mxu0 0.0
    %2557 = vmatpush1.xpose.msra.mxu0 0.0
    %2558 = vmatprep.subr.mxu0 0.0
    %2559 = vmatpush1.xpose.msra.mxu0 0.0
    %2560 = vmatprep.subr.mxu0 0.0
    %2561 = vmatpush1.xpose.msra.mxu0 0.0
    %2562 = vmatprep.subr.mxu0 0.0
    %2563 = vmatpush1.xpose.msra.mxu0 0.0
    %2564 = vmatprep.subr.mxu0 0.0
    %2565 = vmatpush1.xpose.msra.mxu0 0.0
    %2566 = vmatprep.subr.mxu0 0.0
    %2567 = vmatpush1.xpose.msra.mxu0 0.0
    %2568 = vmatprep.subr.mxu0 0.0
    %2569 = vmatpush1.xpose.msra.mxu0 0.0
    %2570 = vmatprep.subr.mxu0 0.0
    %2571 = vmatpush1.xpose.msra.mxu0 0.0
    %2572 = vmatprep.subr.mxu0 0.0
    %2573 = vmatpush1.xpose.msra.mxu0 0.0
    %2574 = vmatprep.subr.mxu0 0.0
    %2575 = vmatpush1.xpose.msra.mxu0 0.0
    %2576 = vmatprep.subr.mxu0 0.0
    %2577 = vmatpush1.xpose.msra.mxu0 0.0
    %2578 = vmatprep.subr.mxu0 0.0
    %2579 = vmatpush1.xpose.msra.mxu0 0.0
    %2580 = vmatprep.subr.mxu0 0.0
    %2581 = vmatpush1.xpose.msra.mxu0 0.0
    %2582 = vmatprep.mubr.f32.mxu0 0.0
    %2583 = vmatmul.mubr.f32.gmra.mrb[0].mxu0 %v2514
    %v2584 = vpop.f32.mrb[0].mxu0
    %v2585 = vadd.f32 0.0, %v2584
    %v2586 = vpop.f32.mrb[0].mxu0
    %2587 = vdwg.mxu0
    %v2588 = vsel %vm347, %v2585, -inf
    %2589 = vmax.xlane.f32.xlu0 %v2588
    %v2590 = vpop.xlane.xlu0 %2589
    %v2591 = vsub.f32 %v2585, %v2590
    %v2592 = vmul.f32 %v2591, 1.442695
    %v2593 = vpow.pop %v2592
    %v2594 = vsel %vm347, %v2593, 0.0
    %2595 = vadd.xlane.f32.xlu0 %v2594
    %v2596 = vpop.xlane.xlu0 %2595
    %2597 = vrot.lane.b32.xlu0 %v2164, 48
    %v2598 = vpop.permute.xlu0 %2597
    %v2601 = vsel %vm347, %v2593, 0
    %2603 = vmatprep.subr.mxu0 0.0
    %2604 = vmatpush1.msra.mxu0 %v2598
    %2605 = vmatprep.subr.mxu0 0.0
    %2606 = vmatpush1.msra.mxu0 0.0
    %2607 = vmatprep.subr.mxu0 0.0
    %2608 = vmatpush1.msra.mxu0 0.0
    %2609 = vmatprep.subr.mxu0 0.0
    %2610 = vmatpush1.msra.mxu0 0.0
    %2611 = vmatprep.subr.mxu0 0.0
    %2612 = vmatpush1.msra.mxu0 0.0
    %2613 = vmatprep.subr.mxu0 0.0
    %2614 = vmatpush1.msra.mxu0 0.0
    %2615 = vmatprep.subr.mxu0 0.0
    %2616 = vmatpush1.msra.mxu0 0.0
    %2617 = vmatprep.subr.mxu0 0.0
    %2618 = vmatpush1.msra.mxu0 0.0
    %2619 = vmatprep.subr.mxu0 0.0
    %2620 = vmatpush1.msra.mxu0 0.0
    %2621 = vmatprep.subr.mxu0 0.0
    %2622 = vmatpush1.msra.mxu0 0.0
    %2623 = vmatprep.subr.mxu0 0.0
    %2624 = vmatpush1.msra.mxu0 0.0
    %2625 = vmatprep.subr.mxu0 0.0
    %2626 = vmatpush1.msra.mxu0 0.0
    %2627 = vmatprep.subr.mxu0 0.0
    %2628 = vmatpush1.msra.mxu0 0.0
    %2629 = vmatprep.subr.mxu0 0.0
    %2630 = vmatpush1.msra.mxu0 0.0
    %2631 = vmatprep.subr.mxu0 0.0
    %2632 = vmatpush1.msra.mxu0 0.0
    %2633 = vmatprep.subr.mxu0 0.0
    %2634 = vmatpush1.msra.mxu0 0.0
    %2635 = vmatprep.subr.mxu0 0.0
    %2636 = vmatpush1.msra.mxu0 0.0
    %2637 = vmatprep.subr.mxu0 0.0
    %2638 = vmatpush1.msra.mxu0 0.0
    %2639 = vmatprep.subr.mxu0 0.0
    %2640 = vmatpush1.msra.mxu0 0.0
    %2641 = vmatprep.subr.mxu0 0.0
    %2642 = vmatpush1.msra.mxu0 0.0
    %2643 = vmatprep.subr.mxu0 0.0
    %2644 = vmatpush1.msra.mxu0 0.0
    %2645 = vmatprep.subr.mxu0 0.0
    %2646 = vmatpush1.msra.mxu0 0.0
    %2647 = vmatprep.subr.mxu0 0.0
    %2648 = vmatpush1.msra.mxu0 0.0
    %2649 = vmatprep.subr.mxu0 0.0
    %2650 = vmatpush1.msra.mxu0 0.0
    %2651 = vmatprep.subr.mxu0 0.0
    %2652 = vmatpush1.msra.mxu0 0.0
    %2653 = vmatprep.subr.mxu0 0.0
    %2654 = vmatpush1.msra.mxu0 0.0
    %2655 = vmatprep.subr.mxu0 0.0
    %2656 = vmatpush1.msra.mxu0 0.0
    %2657 = vmatprep.subr.mxu0 0.0
    %2658 = vmatpush1.msra.mxu0 0.0
    %2659 = vmatprep.subr.mxu0 0.0
    %2660 = vmatpush1.msra.mxu0 0.0
    %2661 = vmatprep.subr.mxu0 0.0
    %2662 = vmatpush1.msra.mxu0 0.0
    %2663 = vmatprep.subr.mxu0 0.0
    %2664 = vmatpush1.msra.mxu0 0.0
    %2665 = vmatprep.subr.mxu0 0.0
    %2666 = vmatpush1.msra.mxu0 0.0
    %2667 = vmatprep.mubr.f32.mxu0 0.0
    %2668 = vmatmul.mubr.f32.gmra.mrb[0].mxu0 %v2601
    %v2669 = vpop.f32.mrb[0].mxu0
    %v2670 = vadd.f32 0.0, %v2669
    %v2671 = vpop.f32.mrb[0].mxu0
    %2672 = vdwg.mxu0
    %v2673 = vrcp.pop %v2596
    %v2674 = vmul.f32 %v2670, %v2673
    %2676 = vrot.lane.b32.xlu0 %v2674, 16
    %v2677 = vpop.permute.xlu0 %2676
    %2679 = vst.msk [vmem:[#allocation2] sm:$0xff] %vm851, %v2677
    %2680 = vrot.lane.b32.xlu0 %v2172, 104
    %v2681 = vpop.permute.xlu0 %2680
    %2682 = vrot.lane.b32.xlu0 %v2164, 72
    %v2683 = vpop.permute.xlu0 %2682
    %v2684 = vsel %vm347, %v2681, 0
    %v2686 = vsel %vm347, %v2683, 0
    %2688 = vmatprep.subr.mxu0 0.0
    %2689 = vmatpush1.xpose.msra.mxu0 %v2686
    %2690 = vmatprep.subr.mxu0 0.0
    %2691 = vmatpush1.xpose.msra.mxu0 0.0
    %2692 = vmatprep.subr.mxu0 0.0
    %2693 = vmatpush1.xpose.msra.mxu0 0.0
    %2694 = vmatprep.subr.mxu0 0.0
    %2695 = vmatpush1.xpose.msra.mxu0 0.0
    %2696 = vmatprep.subr.mxu0 0.0
    %2697 = vmatpush1.xpose.msra.mxu0 0.0
    %2698 = vmatprep.subr.mxu0 0.0
    %2699 = vmatpush1.xpose.msra.mxu0 0.0
    %2700 = vmatprep.subr.mxu0 0.0
    %2701 = vmatpush1.xpose.msra.mxu0 0.0
    %2702 = vmatprep.subr.mxu0 0.0
    %2703 = vmatpush1.xpose.msra.mxu0 0.0
    %2704 = vmatprep.subr.mxu0 0.0
    %2705 = vmatpush1.xpose.msra.mxu0 0.0
    %2706 = vmatprep.subr.mxu0 0.0
    %2707 = vmatpush1.xpose.msra.mxu0 0.0
    %2708 = vmatprep.subr.mxu0 0.0
    %2709 = vmatpush1.xpose.msra.mxu0 0.0
    %2710 = vmatprep.subr.mxu0 0.0
    %2711 = vmatpush1.xpose.msra.mxu0 0.0
    %2712 = vmatprep.subr.mxu0 0.0
    %2713 = vmatpush1.xpose.msra.mxu0 0.0
    %2714 = vmatprep.subr.mxu0 0.0
    %2715 = vmatpush1.xpose.msra.mxu0 0.0
    %2716 = vmatprep.subr.mxu0 0.0
    %2717 = vmatpush1.xpose.msra.mxu0 0.0
    %2718 = vmatprep.subr.mxu0 0.0
    %2719 = vmatpush1.xpose.msra.mxu0 0.0
    %2720 = vmatprep.subr.mxu0 0.0
    %2721 = vmatpush1.xpose.msra.mxu0 0.0
    %2722 = vmatprep.subr.mxu0 0.0
    %2723 = vmatpush1.xpose.msra.mxu0 0.0
    %2724 = vmatprep.subr.mxu0 0.0
    %2725 = vmatpush1.xpose.msra.mxu0 0.0
    %2726 = vmatprep.subr.mxu0 0.0
    %2727 = vmatpush1.xpose.msra.mxu0 0.0
    %2728 = vmatprep.subr.mxu0 0.0
    %2729 = vmatpush1.xpose.msra.mxu0 0.0
    %2730 = vmatprep.subr.mxu0 0.0
    %2731 = vmatpush1.xpose.msra.mxu0 0.0
    %2732 = vmatprep.subr.mxu0 0.0
    %2733 = vmatpush1.xpose.msra.mxu0 0.0
    %2734 = vmatprep.subr.mxu0 0.0
    %2735 = vmatpush1.xpose.msra.mxu0 0.0
    %2736 = vmatprep.subr.mxu0 0.0
    %2737 = vmatpush1.xpose.msra.mxu0 0.0
    %2738 = vmatprep.subr.mxu0 0.0
    %2739 = vmatpush1.xpose.msra.mxu0 0.0
    %2740 = vmatprep.subr.mxu0 0.0
    %2741 = vmatpush1.xpose.msra.mxu0 0.0
    %2742 = vmatprep.subr.mxu0 0.0
    %2743 = vmatpush1.xpose.msra.mxu0 0.0
    %2744 = vmatprep.subr.mxu0 0.0
    %2745 = vmatpush1.xpose.msra.mxu0 0.0
    %2746 = vmatprep.subr.mxu0 0.0
    %2747 = vmatpush1.xpose.msra.mxu0 0.0
    %2748 = vmatprep.subr.mxu0 0.0
    %2749 = vmatpush1.xpose.msra.mxu0 0.0
    %2750 = vmatprep.subr.mxu0 0.0
    %2751 = vmatpush1.xpose.msra.mxu0 0.0
    %2752 = vmatprep.mubr.f32.mxu0 0.0
    %2753 = vmatmul.mubr.f32.gmra.mrb[0].mxu0 %v2684
    %v2754 = vpop.f32.mrb[0].mxu0
    %v2755 = vadd.f32 0.0, %v2754
    %v2756 = vpop.f32.mrb[0].mxu0
    %2757 = vdwg.mxu0
    %v2758 = vsel %vm347, %v2755, -inf
    %2759 = vmax.xlane.f32.xlu0 %v2758
    %v2760 = vpop.xlane.xlu0 %2759
    %v2761 = vsub.f32 %v2755, %v2760
    %v2762 = vmul.f32 %v2761, 1.442695
    %v2763 = vpow.pop %v2762
    %v2764 = vsel %vm347, %v2763, 0.0
    %2765 = vadd.xlane.f32.xlu0 %v2764
    %v2766 = vpop.xlane.xlu0 %2765
    %2767 = vrot.lane.b32.xlu0 %v2164, 40
    %v2768 = vpop.permute.xlu0 %2767
    %v2771 = vsel %vm347, %v2763, 0
    %2773 = vmatprep.subr.mxu0 0.0
    %2774 = vmatpush1.msra.mxu0 %v2768
    %2775 = vmatprep.subr.mxu0 0.0
    %2776 = vmatpush1.msra.mxu0 0.0
    %2777 = vmatprep.subr.mxu0 0.0
    %2778 = vmatpush1.msra.mxu0 0.0
    %2779 = vmatprep.subr.mxu0 0.0
    %2780 = vmatpush1.msra.mxu0 0.0
    %2781 = vmatprep.subr.mxu0 0.0
    %2782 = vmatpush1.msra.mxu0 0.0
    %2783 = vmatprep.subr.mxu0 0.0
    %2784 = vmatpush1.msra.mxu0 0.0
    %2785 = vmatprep.subr.mxu0 0.0
    %2786 = vmatpush1.msra.mxu0 0.0
    %2787 = vmatprep.subr.mxu0 0.0
    %2788 = vmatpush1.msra.mxu0 0.0
    %2789 = vmatprep.subr.mxu0 0.0
    %2790 = vmatpush1.msra.mxu0 0.0
    %2791 = vmatprep.subr.mxu0 0.0
    %2792 = vmatpush1.msra.mxu0 0.0
    %2793 = vmatprep.subr.mxu0 0.0
    %2794 = vmatpush1.msra.mxu0 0.0
    %2795 = vmatprep.subr.mxu0 0.0
    %2796 = vmatpush1.msra.mxu0 0.0
    %2797 = vmatprep.subr.mxu0 0.0
    %2798 = vmatpush1.msra.mxu0 0.0
    %2799 = vmatprep.subr.mxu0 0.0
    %2800 = vmatpush1.msra.mxu0 0.0
    %2801 = vmatprep.subr.mxu0 0.0
    %2802 = vmatpush1.msra.mxu0 0.0
    %2803 = vmatprep.subr.mxu0 0.0
    %2804 = vmatpush1.msra.mxu0 0.0
    %2805 = vmatprep.subr.mxu0 0.0
    %2806 = vmatpush1.msra.mxu0 0.0
    %2807 = vmatprep.subr.mxu0 0.0
    %2808 = vmatpush1.msra.mxu0 0.0
    %2809 = vmatprep.subr.mxu0 0.0
    %2810 = vmatpush1.msra.mxu0 0.0
    %2811 = vmatprep.subr.mxu0 0.0
    %2812 = vmatpush1.msra.mxu0 0.0
    %2813 = vmatprep.subr.mxu0 0.0
    %2814 = vmatpush1.msra.mxu0 0.0
    %2815 = vmatprep.subr.mxu0 0.0
    %2816 = vmatpush1.msra.mxu0 0.0
    %2817 = vmatprep.subr.mxu0 0.0
    %2818 = vmatpush1.msra.mxu0 0.0
    %2819 = vmatprep.subr.mxu0 0.0
    %2820 = vmatpush1.msra.mxu0 0.0
    %2821 = vmatprep.subr.mxu0 0.0
    %2822 = vmatpush1.msra.mxu0 0.0
    %2823 = vmatprep.subr.mxu0 0.0
    %2824 = vmatpush1.msra.mxu0 0.0
    %2825 = vmatprep.subr.mxu0 0.0
    %2826 = vmatpush1.msra.mxu0 0.0
    %2827 = vmatprep.subr.mxu0 0.0
    %2828 = vmatpush1.msra.mxu0 0.0
    %2829 = vmatprep.subr.mxu0 0.0
    %2830 = vmatpush1.msra.mxu0 0.0
    %2831 = vmatprep.subr.mxu0 0.0
    %2832 = vmatpush1.msra.mxu0 0.0
    %2833 = vmatprep.subr.mxu0 0.0
    %2834 = vmatpush1.msra.mxu0 0.0
    %2835 = vmatprep.subr.mxu0 0.0
    %2836 = vmatpush1.msra.mxu0 0.0
    %2837 = vmatprep.mubr.f32.mxu0 0.0
    %2838 = vmatmul.mubr.f32.gmra.mrb[0].mxu0 %v2771
    %v2839 = vpop.f32.mrb[0].mxu0
    %v2840 = vadd.f32 0.0, %v2839
    %v2841 = vpop.f32.mrb[0].mxu0
    %2842 = vdwg.mxu0
    %v2843 = vrcp.pop %v2766
    %v2844 = vmul.f32 %v2840, %v2843
    %2846 = vrot.lane.b32.xlu0 %v2844, 24
    %v2847 = vpop.permute.xlu0 %2846
    %2849 = vst.msk [vmem:[#allocation2] sm:$0xff] %vm1022, %v2847
    %2851 = vrot.lane.b32.xlu0 %v2169, 96
    %v2852 = vpop.permute.xlu0 %2851
    %v2854 = vsel %vm347, %v2173, 0
    %v2856 = vsel %vm347, %v2852, 0
    %2858 = vmatprep.subr.mxu0 0.0
    %2859 = vmatpush1.xpose.msra.mxu0 %v2856
    %2860 = vmatprep.subr.mxu0 0.0
    %2861 = vmatpush1.xpose.msra.mxu0 0.0
    %2862 = vmatprep.subr.mxu0 0.0
    %2863 = vmatpush1.xpose.msra.mxu0 0.0
    %2864 = vmatprep.subr.mxu0 0.0
    %2865 = vmatpush1.xpose.msra.mxu0 0.0
    %2866 = vmatprep.subr.mxu0 0.0
    %2867 = vmatpush1.xpose.msra.mxu0 0.0
    %2868 = vmatprep.subr.mxu0 0.0
    %2869 = vmatpush1.xpose.msra.mxu0 0.0
    %2870 = vmatprep.subr.mxu0 0.0
    %2871 = vmatpush1.xpose.msra.mxu0 0.0
    %2872 = vmatprep.subr.mxu0 0.0
    %2873 = vmatpush1.xpose.msra.mxu0 0.0
    %2874 = vmatprep.subr.mxu0 0.0
    %2875 = vmatpush1.xpose.msra.mxu0 0.0
    %2876 = vmatprep.subr.mxu0 0.0
    %2877 = vmatpush1.xpose.msra.mxu0 0.0
    %2878 = vmatprep.subr.mxu0 0.0
    %2879 = vmatpush1.xpose.msra.mxu0 0.0
    %2880 = vmatprep.subr.mxu0 0.0
    %2881 = vmatpush1.xpose.msra.mxu0 0.0
    %2882 = vmatprep.subr.mxu0 0.0
    %2883 = vmatpush1.xpose.msra.mxu0 0.0
    %2884 = vmatprep.subr.mxu0 0.0
    %2885 = vmatpush1.xpose.msra.mxu0 0.0
    %2886 = vmatprep.subr.mxu0 0.0
    %2887 = vmatpush1.xpose.msra.mxu0 0.0
    %2888 = vmatprep.subr.mxu0 0.0
    %2889 = vmatpush1.xpose.msra.mxu0 0.0
    %2890 = vmatprep.subr.mxu0 0.0
    %2891 = vmatpush1.xpose.msra.mxu0 0.0
    %2892 = vmatprep.subr.mxu0 0.0
    %2893 = vmatpush1.xpose.msra.mxu0 0.0
    %2894 = vmatprep.subr.mxu0 0.0
    %2895 = vmatpush1.xpose.msra.mxu0 0.0
    %2896 = vmatprep.subr.mxu0 0.0
    %2897 = vmatpush1.xpose.msra.mxu0 0.0
    %2898 = vmatprep.subr.mxu0 0.0
    %2899 = vmatpush1.xpose.msra.mxu0 0.0
    %2900 = vmatprep.subr.mxu0 0.0
    %2901 = vmatpush1.xpose.msra.mxu0 0.0
    %2902 = vmatprep.subr.mxu0 0.0
    %2903 = vmatpush1.xpose.msra.mxu0 0.0
    %2904 = vmatprep.subr.mxu0 0.0
    %2905 = vmatpush1.xpose.msra.mxu0 0.0
    %2906 = vmatprep.subr.mxu0 0.0
    %2907 = vmatpush1.xpose.msra.mxu0 0.0
    %2908 = vmatprep.subr.mxu0 0.0
    %2909 = vmatpush1.xpose.msra.mxu0 0.0
    %2910 = vmatprep.subr.mxu0 0.0
    %2911 = vmatpush1.xpose.msra.mxu0 0.0
    %2912 = vmatprep.subr.mxu0 0.0
    %2913 = vmatpush1.xpose.msra.mxu0 0.0
    %2914 = vmatprep.subr.mxu0 0.0
    %2915 = vmatpush1.xpose.msra.mxu0 0.0
    %2916 = vmatprep.subr.mxu0 0.0
    %2917 = vmatpush1.xpose.msra.mxu0 0.0
    %2918 = vmatprep.subr.mxu0 0.0
    %2919 = vmatpush1.xpose.msra.mxu0 0.0
    %2920 = vmatprep.subr.mxu0 0.0
    %2921 = vmatpush1.xpose.msra.mxu0 0.0
    %2922 = vmatprep.mubr.f32.mxu0 0.0
    %2923 = vmatmul.mubr.f32.gmra.mrb[0].mxu0 %v2854
    %v2924 = vpop.f32.mrb[0].mxu0
    %v2925 = vadd.f32 0.0, %v2924
    %v2926 = vpop.f32.mrb[0].mxu0
    %2927 = vdwg.mxu0
    %v2928 = vsel %vm347, %v2925, -inf
    %2929 = vmax.xlane.f32.xlu0 %v2928
    %v2930 = vpop.xlane.xlu0 %2929
    %v2931 = vsub.f32 %v2925, %v2930
    %v2932 = vmul.f32 %v2931, 1.442695
    %v2933 = vpow.pop %v2932
    %v2934 = vsel %vm347, %v2933, 0.0
    %2935 = vadd.xlane.f32.xlu0 %v2934
    %v2936 = vpop.xlane.xlu0 %2935
    %2937 = vrot.lane.b32.xlu0 %v2169, 64
    %v2938 = vpop.permute.xlu0 %2937
    %v2941 = vsel %vm347, %v2933, 0
    %2943 = vmatprep.subr.mxu0 0.0
    %2944 = vmatpush1.msra.mxu0 %v2938
    %2945 = vmatprep.subr.mxu0 0.0
    %2946 = vmatpush1.msra.mxu0 0.0
    %2947 = vmatprep.subr.mxu0 0.0
    %2948 = vmatpush1.msra.mxu0 0.0
    %2949 = vmatprep.subr.mxu0 0.0
    %2950 = vmatpush1.msra.mxu0 0.0
    %2951 = vmatprep.subr.mxu0 0.0
    %2952 = vmatpush1.msra.mxu0 0.0
    %2953 = vmatprep.subr.mxu0 0.0
    %2954 = vmatpush1.msra.mxu0 0.0
    %2955 = vmatprep.subr.mxu0 0.0
    %2956 = vmatpush1.msra.mxu0 0.0
    %2957 = vmatprep.subr.mxu0 0.0
    %2958 = vmatpush1.msra.mxu0 0.0
    %2959 = vmatprep.subr.mxu0 0.0
    %2960 = vmatpush1.msra.mxu0 0.0
    %2961 = vmatprep.subr.mxu0 0.0
    %2962 = vmatpush1.msra.mxu0 0.0
    %2963 = vmatprep.subr.mxu0 0.0
    %2964 = vmatpush1.msra.mxu0 0.0
    %2965 = vmatprep.subr.mxu0 0.0
    %2966 = vmatpush1.msra.mxu0 0.0
    %2967 = vmatprep.subr.mxu0 0.0
    %2968 = vmatpush1.msra.mxu0 0.0
    %2969 = vmatprep.subr.mxu0 0.0
    %2970 = vmatpush1.msra.mxu0 0.0
    %2971 = vmatprep.subr.mxu0 0.0
    %2972 = vmatpush1.msra.mxu0 0.0
    %2973 = vmatprep.subr.mxu0 0.0
    %2974 = vmatpush1.msra.mxu0 0.0
    %2975 = vmatprep.subr.mxu0 0.0
    %2976 = vmatpush1.msra.mxu0 0.0
    %2977 = vmatprep.subr.mxu0 0.0
    %2978 = vmatpush1.msra.mxu0 0.0
    %2979 = vmatprep.subr.mxu0 0.0
    %2980 = vmatpush1.msra.mxu0 0.0
    %2981 = vmatprep.subr.mxu0 0.0
    %2982 = vmatpush1.msra.mxu0 0.0
    %2983 = vmatprep.subr.mxu0 0.0
    %2984 = vmatpush1.msra.mxu0 0.0
    %2985 = vmatprep.subr.mxu0 0.0
    %2986 = vmatpush1.msra.mxu0 0.0
    %2987 = vmatprep.subr.mxu0 0.0
    %2988 = vmatpush1.msra.mxu0 0.0
    %2989 = vmatprep.subr.mxu0 0.0
    %2990 = vmatpush1.msra.mxu0 0.0
    %2991 = vmatprep.subr.mxu0 0.0
    %2992 = vmatpush1.msra.mxu0 0.0
    %2993 = vmatprep.subr.mxu0 0.0
    %2994 = vmatpush1.msra.mxu0 0.0
    %2995 = vmatprep.subr.mxu0 0.0
    %2996 = vmatpush1.msra.mxu0 0.0
    %2997 = vmatprep.subr.mxu0 0.0
    %2998 = vmatpush1.msra.mxu0 0.0
    %2999 = vmatprep.subr.mxu0 0.0
    %3000 = vmatpush1.msra.mxu0 0.0
    %3001 = vmatprep.subr.mxu0 0.0
    %3002 = vmatpush1.msra.mxu0 0.0
    %3003 = vmatprep.subr.mxu0 0.0
    %3004 = vmatpush1.msra.mxu0 0.0
    %3005 = vmatprep.subr.mxu0 0.0
    %3006 = vmatpush1.msra.mxu0 0.0
    %3007 = vmatprep.mubr.f32.mxu0 0.0
    %3008 = vmatmul.mubr.f32.gmra.mrb[0].mxu0 %v2941
    %v3009 = vpop.f32.mrb[0].mxu0
    %v3010 = vadd.f32 0.0, %v3009
    %v3011 = vpop.f32.mrb[0].mxu0
    %3012 = vdwg.mxu0
    %v3013 = vrcp.pop %v2936
    %v3014 = vmul.f32 %v3010, %v3013
    %3015 = vst.msk [vmem:[#allocation2 + $0x8] sm:$0xff] %vm347, %v3014
    %3016 = vrot.lane.b32.xlu0 %v2173, 120
    %v3017 = vpop.permute.xlu0 %3016
    %3018 = vrot.lane.b32.xlu0 %v2169, 88
    %v3019 = vpop.permute.xlu0 %3018
    %v3020 = vsel %vm347, %v3017, 0
    %v3022 = vsel %vm347, %v3019, 0
    %3024 = vmatprep.subr.mxu0 0.0
    %3025 = vmatpush1.xpose.msra.mxu0 %v3022
    %3026 = vmatprep.subr.mxu0 0.0
    %3027 = vmatpush1.xpose.msra.mxu0 0.0
    %3028 = vmatprep.subr.mxu0 0.0
    %3029 = vmatpush1.xpose.msra.mxu0 0.0
    %3030 = vmatprep.subr.mxu0 0.0
    %3031 = vmatpush1.xpose.msra.mxu0 0.0
    %3032 = vmatprep.subr.mxu0 0.0
    %3033 = vmatpush1.xpose.msra.mxu0 0.0
    %3034 = vmatprep.subr.mxu0 0.0
    %3035 = vmatpush1.xpose.msra.mxu0 0.0
    %3036 = vmatprep.subr.mxu0 0.0
    %3037 = vmatpush1.xpose.msra.mxu0 0.0
    %3038 = vmatprep.subr.mxu0 0.0
    %3039 = vmatpush1.xpose.msra.mxu0 0.0
    %3040 = vmatprep.subr.mxu0 0.0
    %3041 = vmatpush1.xpose.msra.mxu0 0.0
    %3042 = vmatprep.subr.mxu0 0.0
    %3043 = vmatpush1.xpose.msra.mxu0 0.0
    %3044 = vmatprep.subr.mxu0 0.0
    %3045 = vmatpush1.xpose.msra.mxu0 0.0
    %3046 = vmatprep.subr.mxu0 0.0
    %3047 = vmatpush1.xpose.msra.mxu0 0.0
    %3048 = vmatprep.subr.mxu0 0.0
    %3049 = vmatpush1.xpose.msra.mxu0 0.0
    %3050 = vmatprep.subr.mxu0 0.0
    %3051 = vmatpush1.xpose.msra.mxu0 0.0
    %3052 = vmatprep.subr.mxu0 0.0
    %3053 = vmatpush1.xpose.msra.mxu0 0.0
    %3054 = vmatprep.subr.mxu0 0.0
    %3055 = vmatpush1.xpose.msra.mxu0 0.0
    %3056 = vmatprep.subr.mxu0 0.0
    %3057 = vmatpush1.xpose.msra.mxu0 0.0
    %3058 = vmatprep.subr.mxu0 0.0
    %3059 = vmatpush1.xpose.msra.mxu0 0.0
    %3060 = vmatprep.subr.mxu0 0.0
    %3061 = vmatpush1.xpose.msra.mxu0 0.0
    %3062 = vmatprep.subr.mxu0 0.0
    %3063 = vmatpush1.xpose.msra.mxu0 0.0
    %3064 = vmatprep.subr.mxu0 0.0
    %3065 = vmatpush1.xpose.msra.mxu0 0.0
    %3066 = vmatprep.subr.mxu0 0.0
    %3067 = vmatpush1.xpose.msra.mxu0 0.0
    %3068 = vmatprep.subr.mxu0 0.0
    %3069 = vmatpush1.xpose.msra.mxu0 0.0
    %3070 = vmatprep.subr.mxu0 0.0
    %3071 = vmatpush1.xpose.msra.mxu0 0.0
    %3072 = vmatprep.subr.mxu0 0.0
    %3073 = vmatpush1.xpose.msra.mxu0 0.0
    %3074 = vmatprep.subr.mxu0 0.0
    %3075 = vmatpush1.xpose.msra.mxu0 0.0
    %3076 = vmatprep.subr.mxu0 0.0
    %3077 = vmatpush1.xpose.msra.mxu0 0.0
    %3078 = vmatprep.subr.mxu0 0.0
    %3079 = vmatpush1.xpose.msra.mxu0 0.0
    %3080 = vmatprep.subr.mxu0 0.0
    %3081 = vmatpush1.xpose.msra.mxu0 0.0
    %3082 = vmatprep.subr.mxu0 0.0
    %3083 = vmatpush1.xpose.msra.mxu0 0.0
    %3084 = vmatprep.subr.mxu0 0.0
    %3085 = vmatpush1.xpose.msra.mxu0 0.0
    %3086 = vmatprep.subr.mxu0 0.0
    %3087 = vmatpush1.xpose.msra.mxu0 0.0
    %3088 = vmatprep.mubr.f32.mxu0 0.0
    %3089 = vmatmul.mubr.f32.gmra.mrb[0].mxu0 %v3020
    %v3090 = vpop.f32.mrb[0].mxu0
    %v3091 = vadd.f32 0.0, %v3090
    %v3092 = vpop.f32.mrb[0].mxu0
    %3093 = vdwg.mxu0
    %v3094 = vsel %vm347, %v3091, -inf
    %3095 = vmax.xlane.f32.xlu0 %v3094
    %v3096 = vpop.xlane.xlu0 %3095
    %v3097 = vsub.f32 %v3091, %v3096
    %v3098 = vmul.f32 %v3097, 1.442695
    %v3099 = vpow.pop %v3098
    %v3100 = vsel %vm347, %v3099, 0.0
    %3101 = vadd.xlane.f32.xlu0 %v3100
    %v3102 = vpop.xlane.xlu0 %3101
    %3103 = vrot.lane.b32.xlu0 %v2169, 56
    %v3104 = vpop.permute.xlu0 %3103
    %v3107 = vsel %vm347, %v3099, 0
    %3109 = vmatprep.subr.mxu0 0.0
    %3110 = vmatpush1.msra.mxu0 %v3104
    %3111 = vmatprep.subr.mxu0 0.0
    %3112 = vmatpush1.msra.mxu0 0.0
    %3113 = vmatprep.subr.mxu0 0.0
    %3114 = vmatpush1.msra.mxu0 0.0
    %3115 = vmatprep.subr.mxu0 0.0
    %3116 = vmatpush1.msra.mxu0 0.0
    %3117 = vmatprep.subr.mxu0 0.0
    %3118 = vmatpush1.msra.mxu0 0.0
    %3119 = vmatprep.subr.mxu0 0.0
    %3120 = vmatpush1.msra.mxu0 0.0
    %3121 = vmatprep.subr.mxu0 0.0
    %3122 = vmatpush1.msra.mxu0 0.0
    %3123 = vmatprep.subr.mxu0 0.0
    %3124 = vmatpush1.msra.mxu0 0.0
    %3125 = vmatprep.subr.mxu0 0.0
    %3126 = vmatpush1.msra.mxu0 0.0
    %3127 = vmatprep.subr.mxu0 0.0
    %3128 = vmatpush1.msra.mxu0 0.0
    %3129 = vmatprep.subr.mxu0 0.0
    %3130 = vmatpush1.msra.mxu0 0.0
    %3131 = vmatprep.subr.mxu0 0.0
    %3132 = vmatpush1.msra.mxu0 0.0
    %3133 = vmatprep.subr.mxu0 0.0
    %3134 = vmatpush1.msra.mxu0 0.0
    %3135 = vmatprep.subr.mxu0 0.0
    %3136 = vmatpush1.msra.mxu0 0.0
    %3137 = vmatprep.subr.mxu0 0.0
    %3138 = vmatpush1.msra.mxu0 0.0
    %3139 = vmatprep.subr.mxu0 0.0
    %3140 = vmatpush1.msra.mxu0 0.0
    %3141 = vmatprep.subr.mxu0 0.0
    %3142 = vmatpush1.msra.mxu0 0.0
    %3143 = vmatprep.subr.mxu0 0.0
    %3144 = vmatpush1.msra.mxu0 0.0
    %3145 = vmatprep.subr.mxu0 0.0
    %3146 = vmatpush1.msra.mxu0 0.0
    %3147 = vmatprep.subr.mxu0 0.0
    %3148 = vmatpush1.msra.mxu0 0.0
    %3149 = vmatprep.subr.mxu0 0.0
    %3150 = vmatpush1.msra.mxu0 0.0
    %3151 = vmatprep.subr.mxu0 0.0
    %3152 = vmatpush1.msra.mxu0 0.0
    %3153 = vmatprep.subr.mxu0 0.0
    %3154 = vmatpush1.msra.mxu0 0.0
    %3155 = vmatprep.subr.mxu0 0.0
    %3156 = vmatpush1.msra.mxu0 0.0
    %3157 = vmatprep.subr.mxu0 0.0
    %3158 = vmatpush1.msra.mxu0 0.0
    %3159 = vmatprep.subr.mxu0 0.0
    %3160 = vmatpush1.msra.mxu0 0.0
    %3161 = vmatprep.subr.mxu0 0.0
    %3162 = vmatpush1.msra.mxu0 0.0
    %3163 = vmatprep.subr.mxu0 0.0
    %3164 = vmatpush1.msra.mxu0 0.0
    %3165 = vmatprep.subr.mxu0 0.0
    %3166 = vmatpush1.msra.mxu0 0.0
    %3167 = vmatprep.subr.mxu0 0.0
    %3168 = vmatpush1.msra.mxu0 0.0
    %3169 = vmatprep.subr.mxu0 0.0
    %3170 = vmatpush1.msra.mxu0 0.0
    %3171 = vmatprep.subr.mxu0 0.0
    %3172 = vmatpush1.msra.mxu0 0.0
    %3173 = vmatprep.mubr.f32.mxu0 0.0
    %3174 = vmatmul.mubr.f32.gmra.mrb[0].mxu0 %v3107
    %v3175 = vpop.f32.mrb[0].mxu0
    %v3176 = vadd.f32 0.0, %v3175
    %v3177 = vpop.f32.mrb[0].mxu0
    %3178 = vdwg.mxu0
    %v3179 = vrcp.pop %v3102
    %v3180 = vmul.f32 %v3176, %v3179
    %3182 = vrot.lane.b32.xlu0 %v3180, 8
    %v3183 = vpop.permute.xlu0 %3182
    %3185 = vst.msk [vmem:[#allocation2 + $0x8] sm:$0xff] %vm680, %v3183
    %3186 = vrot.lane.b32.xlu0 %v2173, 112
    %v3187 = vpop.permute.xlu0 %3186
    %3188 = vrot.lane.b32.xlu0 %v2169, 80
    %v3189 = vpop.permute.xlu0 %3188
    %v3190 = vsel %vm347, %v3187, 0
    %v3192 = vsel %vm347, %v3189, 0
    %3194 = vmatprep.subr.mxu0 0.0
    %3195 = vmatpush1.xpose.msra.mxu0 %v3192
    %3196 = vmatprep.subr.mxu0 0.0
    %3197 = vmatpush1.xpose.msra.mxu0 0.0
    %3198 = vmatprep.subr.mxu0 0.0
    %3199 = vmatpush1.xpose.msra.mxu0 0.0
    %3200 = vmatprep.subr.mxu0 0.0
    %3201 = vmatpush1.xpose.msra.mxu0 0.0
    %3202 = vmatprep.subr.mxu0 0.0
    %3203 = vmatpush1.xpose.msra.mxu0 0.0
    %3204 = vmatprep.subr.mxu0 0.0
    %3205 = vmatpush1.xpose.msra.mxu0 0.0
    %3206 = vmatprep.subr.mxu0 0.0
    %3207 = vmatpush1.xpose.msra.mxu0 0.0
    %3208 = vmatprep.subr.mxu0 0.0
    %3209 = vmatpush1.xpose.msra.mxu0 0.0
    %3210 = vmatprep.subr.mxu0 0.0
    %3211 = vmatpush1.xpose.msra.mxu0 0.0
    %3212 = vmatprep.subr.mxu0 0.0
    %3213 = vmatpush1.xpose.msra.mxu0 0.0
    %3214 = vmatprep.subr.mxu0 0.0
    %3215 = vmatpush1.xpose.msra.mxu0 0.0
    %3216 = vmatprep.subr.mxu0 0.0
    %3217 = vmatpush1.xpose.msra.mxu0 0.0
    %3218 = vmatprep.subr.mxu0 0.0
    %3219 = vmatpush1.xpose.msra.mxu0 0.0
    %3220 = vmatprep.subr.mxu0 0.0
    %3221 = vmatpush1.xpose.msra.mxu0 0.0
    %3222 = vmatprep.subr.mxu0 0.0
    %3223 = vmatpush1.xpose.msra.mxu0 0.0
    %3224 = vmatprep.subr.mxu0 0.0
    %3225 = vmatpush1.xpose.msra.mxu0 0.0
    %3226 = vmatprep.subr.mxu0 0.0
    %3227 = vmatpush1.xpose.msra.mxu0 0.0
    %3228 = vmatprep.subr.mxu0 0.0
    %3229 = vmatpush1.xpose.msra.mxu0 0.0
    %3230 = vmatprep.subr.mxu0 0.0
    %3231 = vmatpush1.xpose.msra.mxu0 0.0
    %3232 = vmatprep.subr.mxu0 0.0
    %3233 = vmatpush1.xpose.msra.mxu0 0.0
    %3234 = vmatprep.subr.mxu0 0.0
    %3235 = vmatpush1.xpose.msra.mxu0 0.0
    %3236 = vmatprep.subr.mxu0 0.0
    %3237 = vmatpush1.xpose.msra.mxu0 0.0
    %3238 = vmatprep.subr.mxu0 0.0
    %3239 = vmatpush1.xpose.msra.mxu0 0.0
    %3240 = vmatprep.subr.mxu0 0.0
    %3241 = vmatpush1.xpose.msra.mxu0 0.0
    %3242 = vmatprep.subr.mxu0 0.0
    %3243 = vmatpush1.xpose.msra.mxu0 0.0
    %3244 = vmatprep.subr.mxu0 0.0
    %3245 = vmatpush1.xpose.msra.mxu0 0.0
    %3246 = vmatprep.subr.mxu0 0.0
    %3247 = vmatpush1.xpose.msra.mxu0 0.0
    %3248 = vmatprep.subr.mxu0 0.0
    %3249 = vmatpush1.xpose.msra.mxu0 0.0
    %3250 = vmatprep.subr.mxu0 0.0
    %3251 = vmatpush1.xpose.msra.mxu0 0.0
    %3252 = vmatprep.subr.mxu0 0.0
    %3253 = vmatpush1.xpose.msra.mxu0 0.0
    %3254 = vmatprep.subr.mxu0 0.0
    %3255 = vmatpush1.xpose.msra.mxu0 0.0
    %3256 = vmatprep.subr.mxu0 0.0
    %3257 = vmatpush1.xpose.msra.mxu0 0.0
    %3258 = vmatprep.mubr.f32.mxu0 0.0
    %3259 = vmatmul.mubr.f32.gmra.mrb[0].mxu0 %v3190
    %v3260 = vpop.f32.mrb[0].mxu0
    %v3261 = vadd.f32 0.0, %v3260
    %v3262 = vpop.f32.mrb[0].mxu0
    %3263 = vdwg.mxu0
    %v3264 = vsel %vm347, %v3261, -inf
    %3265 = vmax.xlane.f32.xlu0 %v3264
    %v3266 = vpop.xlane.xlu0 %3265
    %v3267 = vsub.f32 %v3261, %v3266
    %v3268 = vmul.f32 %v3267, 1.442695
    %v3269 = vpow.pop %v3268
    %v3270 = vsel %vm347, %v3269, 0.0
    %3271 = vadd.xlane.f32.xlu0 %v3270
    %v3272 = vpop.xlane.xlu0 %3271
    %3273 = vrot.lane.b32.xlu0 %v2169, 48
    %v3274 = vpop.permute.xlu0 %3273
    %v3277 = vsel %vm347, %v3269, 0
    %3279 = vmatprep.subr.mxu0 0.0
    %3280 = vmatpush1.msra.mxu0 %v3274
    %3281 = vmatprep.subr.mxu0 0.0
    %3282 = vmatpush1.msra.mxu0 0.0
    %3283 = vmatprep.subr.mxu0 0.0
    %3284 = vmatpush1.msra.mxu0 0.0
    %3285 = vmatprep.subr.mxu0 0.0
    %3286 = vmatpush1.msra.mxu0 0.0
    %3287 = vmatprep.subr.mxu0 0.0
    %3288 = vmatpush1.msra.mxu0 0.0
    %3289 = vmatprep.subr.mxu0 0.0
    %3290 = vmatpush1.msra.mxu0 0.0
    %3291 = vmatprep.subr.mxu0 0.0
    %3292 = vmatpush1.msra.mxu0 0.0
    %3293 = vmatprep.subr.mxu0 0.0
    %3294 = vmatpush1.msra.mxu0 0.0
    %3295 = vmatprep.subr.mxu0 0.0
    %3296 = vmatpush1.msra.mxu0 0.0
    %3297 = vmatprep.subr.mxu0 0.0
    %3298 = vmatpush1.msra.mxu0 0.0
    %3299 = vmatprep.subr.mxu0 0.0
    %3300 = vmatpush1.msra.mxu0 0.0
    %3301 = vmatprep.subr.mxu0 0.0
    %3302 = vmatpush1.msra.mxu0 0.0
    %3303 = vmatprep.subr.mxu0 0.0
    %3304 = vmatpush1.msra.mxu0 0.0
    %3305 = vmatprep.subr.mxu0 0.0
    %3306 = vmatpush1.msra.mxu0 0.0
    %3307 = vmatprep.subr.mxu0 0.0
    %3308 = vmatpush1.msra.mxu0 0.0
    %3309 = vmatprep.subr.mxu0 0.0
    %3310 = vmatpush1.msra.mxu0 0.0
    %3311 = vmatprep.subr.mxu0 0.0
    %3312 = vmatpush1.msra.mxu0 0.0
    %3313 = vmatprep.subr.mxu0 0.0
    %3314 = vmatpush1.msra.mxu0 0.0
    %3315 = vmatprep.subr.mxu0 0.0
    %3316 = vmatpush1.msra.mxu0 0.0
    %3317 = vmatprep.subr.mxu0 0.0
    %3318 = vmatpush1.msra.mxu0 0.0
    %3319 = vmatprep.subr.mxu0 0.0
    %3320 = vmatpush1.msra.mxu0 0.0
    %3321 = vmatprep.subr.mxu0 0.0
    %3322 = vmatpush1.msra.mxu0 0.0
    %3323 = vmatprep.subr.mxu0 0.0
    %3324 = vmatpush1.msra.mxu0 0.0
    %3325 = vmatprep.subr.mxu0 0.0
    %3326 = vmatpush1.msra.mxu0 0.0
    %3327 = vmatprep.subr.mxu0 0.0
    %3328 = vmatpush1.msra.mxu0 0.0
    %3329 = vmatprep.subr.mxu0 0.0
    %3330 = vmatpush1.msra.mxu0 0.0
    %3331 = vmatprep.subr.mxu0 0.0
    %3332 = vmatpush1.msra.mxu0 0.0
    %3333 = vmatprep.subr.mxu0 0.0
    %3334 = vmatpush1.msra.mxu0 0.0
    %3335 = vmatprep.subr.mxu0 0.0
    %3336 = vmatpush1.msra.mxu0 0.0
    %3337 = vmatprep.subr.mxu0 0.0
    %3338 = vmatpush1.msra.mxu0 0.0
    %3339 = vmatprep.subr.mxu0 0.0
    %3340 = vmatpush1.msra.mxu0 0.0
    %3341 = vmatprep.subr.mxu0 0.0
    %3342 = vmatpush1.msra.mxu0 0.0
    %3343 = vmatprep.mubr.f32.mxu0 0.0
    %3344 = vmatmul.mubr.f32.gmra.mrb[0].mxu0 %v3277
    %v3345 = vpop.f32.mrb[0].mxu0
    %v3346 = vadd.f32 0.0, %v3345
    %v3347 = vpop.f32.mrb[0].mxu0
    %3348 = vdwg.mxu0
    %v3349 = vrcp.pop %v3272
    %v3350 = vmul.f32 %v3346, %v3349
    %3352 = vrot.lane.b32.xlu0 %v3350, 16
    %v3353 = vpop.permute.xlu0 %3352
    %3355 = vst.msk [vmem:[#allocation2 + $0x8] sm:$0xff] %vm851, %v3353
    %3356 = vrot.lane.b32.xlu0 %v2173, 104
    %v3357 = vpop.permute.xlu0 %3356
    %3358 = vrot.lane.b32.xlu0 %v2169, 72
    %v3359 = vpop.permute.xlu0 %3358
    %v3360 = vsel %vm347, %v3357, 0
    %v3362 = vsel %vm347, %v3359, 0
    %3364 = vmatprep.subr.mxu0 0.0
    %3365 = vmatpush1.xpose.msra.mxu0 %v3362
    %3366 = vmatprep.subr.mxu0 0.0
    %3367 = vmatpush1.xpose.msra.mxu0 0.0
    %3368 = vmatprep.subr.mxu0 0.0
    %3369 = vmatpush1.xpose.msra.mxu0 0.0
    %3370 = vmatprep.subr.mxu0 0.0
    %3371 = vmatpush1.xpose.msra.mxu0 0.0
    %3372 = vmatprep.subr.mxu0 0.0
    %3373 = vmatpush1.xpose.msra.mxu0 0.0
    %3374 = vmatprep.subr.mxu0 0.0
    %3375 = vmatpush1.xpose.msra.mxu0 0.0
    %3376 = vmatprep.subr.mxu0 0.0
    %3377 = vmatpush1.xpose.msra.mxu0 0.0
    %3378 = vmatprep.subr.mxu0 0.0
    %3379 = vmatpush1.xpose.msra.mxu0 0.0
    %3380 = vmatprep.subr.mxu0 0.0
    %3381 = vmatpush1.xpose.msra.mxu0 0.0
    %3382 = vmatprep.subr.mxu0 0.0
    %3383 = vmatpush1.xpose.msra.mxu0 0.0
    %3384 = vmatprep.subr.mxu0 0.0
    %3385 = vmatpush1.xpose.msra.mxu0 0.0
    %3386 = vmatprep.subr.mxu0 0.0
    %3387 = vmatpush1.xpose.msra.mxu0 0.0
    %3388 = vmatprep.subr.mxu0 0.0
    %3389 = vmatpush1.xpose.msra.mxu0 0.0
    %3390 = vmatprep.subr.mxu0 0.0
    %3391 = vmatpush1.xpose.msra.mxu0 0.0
    %3392 = vmatprep.subr.mxu0 0.0
    %3393 = vmatpush1.xpose.msra.mxu0 0.0
    %3394 = vmatprep.subr.mxu0 0.0
    %3395 = vmatpush1.xpose.msra.mxu0 0.0
    %3396 = vmatprep.subr.mxu0 0.0
    %3397 = vmatpush1.xpose.msra.mxu0 0.0
    %3398 = vmatprep.subr.mxu0 0.0
    %3399 = vmatpush1.xpose.msra.mxu0 0.0
    %3400 = vmatprep.subr.mxu0 0.0
    %3401 = vmatpush1.xpose.msra.mxu0 0.0
    %3402 = vmatprep.subr.mxu0 0.0
    %3403 = vmatpush1.xpose.msra.mxu0 0.0
    %3404 = vmatprep.subr.mxu0 0.0
    %3405 = vmatpush1.xpose.msra.mxu0 0.0
    %3406 = vmatprep.subr.mxu0 0.0
    %3407 = vmatpush1.xpose.msra.mxu0 0.0
    %3408 = vmatprep.subr.mxu0 0.0
    %3409 = vmatpush1.xpose.msra.mxu0 0.0
    %3410 = vmatprep.subr.mxu0 0.0
    %3411 = vmatpush1.xpose.msra.mxu0 0.0
    %3412 = vmatprep.subr.mxu0 0.0
    %3413 = vmatpush1.xpose.msra.mxu0 0.0
    %3414 = vmatprep.subr.mxu0 0.0
    %3415 = vmatpush1.xpose.msra.mxu0 0.0
    %3416 = vmatprep.subr.mxu0 0.0
    %3417 = vmatpush1.xpose.msra.mxu0 0.0
    %3418 = vmatprep.subr.mxu0 0.0
    %3419 = vmatpush1.xpose.msra.mxu0 0.0
    %3420 = vmatprep.subr.mxu0 0.0
    %3421 = vmatpush1.xpose.msra.mxu0 0.0
    %3422 = vmatprep.subr.mxu0 0.0
    %3423 = vmatpush1.xpose.msra.mxu0 0.0
    %3424 = vmatprep.subr.mxu0 0.0
    %3425 = vmatpush1.xpose.msra.mxu0 0.0
    %3426 = vmatprep.subr.mxu0 0.0
    %3427 = vmatpush1.xpose.msra.mxu0 0.0
    %3428 = vmatprep.mubr.f32.mxu0 0.0
    %3429 = vmatmul.mubr.f32.gmra.mrb[0].mxu0 %v3360
    %v3430 = vpop.f32.mrb[0].mxu0
    %v3431 = vadd.f32 0.0, %v3430
    %v3432 = vpop.f32.mrb[0].mxu0
    %3433 = vdwg.mxu0
    %v3434 = vsel %vm347, %v3431, -inf
    %3435 = vmax.xlane.f32.xlu0 %v3434
    %v3436 = vpop.xlane.xlu0 %3435
    %v3437 = vsub.f32 %v3431, %v3436
    %v3438 = vmul.f32 %v3437, 1.442695
    %v3439 = vpow.pop %v3438
    %v3440 = vsel %vm347, %v3439, 0.0
    %3441 = vadd.xlane.f32.xlu0 %v3440
    %v3442 = vpop.xlane.xlu0 %3441
    %3443 = vrot.lane.b32.xlu0 %v2169, 40
    %v3444 = vpop.permute.xlu0 %3443
    %v3447 = vsel %vm347, %v3439, 0
    %3449 = vmatprep.subr.mxu0 0.0
    %3450 = vmatpush1.msra.mxu0 %v3444
    %3451 = vmatprep.subr.mxu0 0.0
    %3452 = vmatpush1.msra.mxu0 0.0
    %3453 = vmatprep.subr.mxu0 0.0
    %3454 = vmatpush1.msra.mxu0 0.0
    %3455 = vmatprep.subr.mxu0 0.0
    %3456 = vmatpush1.msra.mxu0 0.0
    %3457 = vmatprep.subr.mxu0 0.0
    %3458 = vmatpush1.msra.mxu0 0.0
    %3459 = vmatprep.subr.mxu0 0.0
    %3460 = vmatpush1.msra.mxu0 0.0
    %3461 = vmatprep.subr.mxu0 0.0
    %3462 = vmatpush1.msra.mxu0 0.0
    %3463 = vmatprep.subr.mxu0 0.0
    %3464 = vmatpush1.msra.mxu0 0.0
    %3465 = vmatprep.subr.mxu0 0.0
    %3466 = vmatpush1.msra.mxu0 0.0
    %3467 = vmatprep.subr.mxu0 0.0
    %3468 = vmatpush1.msra.mxu0 0.0
    %3469 = vmatprep.subr.mxu0 0.0
    %3470 = vmatpush1.msra.mxu0 0.0
    %3471 = vmatprep.subr.mxu0 0.0
    %3472 = vmatpush1.msra.mxu0 0.0
    %3473 = vmatprep.subr.mxu0 0.0
    %3474 = vmatpush1.msra.mxu0 0.0
    %3475 = vmatprep.subr.mxu0 0.0
    %3476 = vmatpush1.msra.mxu0 0.0
    %3477 = vmatprep.subr.mxu0 0.0
    %3478 = vmatpush1.msra.mxu0 0.0
    %3479 = vmatprep.subr.mxu0 0.0
    %3480 = vmatpush1.msra.mxu0 0.0
    %3481 = vmatprep.subr.mxu0 0.0
    %3482 = vmatpush1.msra.mxu0 0.0
    %3483 = vmatprep.subr.mxu0 0.0
    %3484 = vmatpush1.msra.mxu0 0.0
    %3485 = vmatprep.subr.mxu0 0.0
    %3486 = vmatpush1.msra.mxu0 0.0
    %3487 = vmatprep.subr.mxu0 0.0
    %3488 = vmatpush1.msra.mxu0 0.0
    %3489 = vmatprep.subr.mxu0 0.0
    %3490 = vmatpush1.msra.mxu0 0.0
    %3491 = vmatprep.subr.mxu0 0.0
    %3492 = vmatpush1.msra.mxu0 0.0
    %3493 = vmatprep.subr.mxu0 0.0
    %3494 = vmatpush1.msra.mxu0 0.0
    %3495 = vmatprep.subr.mxu0 0.0
    %3496 = vmatpush1.msra.mxu0 0.0
    %3497 = vmatprep.subr.mxu0 0.0
    %3498 = vmatpush1.msra.mxu0 0.0
    %3499 = vmatprep.subr.mxu0 0.0
    %3500 = vmatpush1.msra.mxu0 0.0
    %3501 = vmatprep.subr.mxu0 0.0
    %3502 = vmatpush1.msra.mxu0 0.0
    %3503 = vmatprep.subr.mxu0 0.0
    %3504 = vmatpush1.msra.mxu0 0.0
    %3505 = vmatprep.subr.mxu0 0.0
    %3506 = vmatpush1.msra.mxu0 0.0
    %3507 = vmatprep.subr.mxu0 0.0
    %3508 = vmatpush1.msra.mxu0 0.0
    %3509 = vmatprep.subr.mxu0 0.0
    %3510 = vmatpush1.msra.mxu0 0.0
    %3511 = vmatprep.subr.mxu0 0.0
    %3512 = vmatpush1.msra.mxu0 0.0
    %3513 = vmatprep.mubr.f32.mxu0 0.0
    %3514 = vmatmul.mubr.f32.gmra.mrb[0].mxu0 %v3447
    %v3515 = vpop.f32.mrb[0].mxu0
    %v3516 = vadd.f32 0.0, %v3515
    %v3517 = vpop.f32.mrb[0].mxu0
    %3518 = vdwg.mxu0
    %v3519 = vrcp.pop %v3442
    %v3520 = vmul.f32 %v3516, %v3519
    %3522 = vrot.lane.b32.xlu0 %v3520, 24
    %v3523 = vpop.permute.xlu0 %3522
    %3525 = vst.msk [vmem:[#allocation2 + $0x8] sm:$0xff] %vm1022, %v3523
    %v3526 = vld [vmem:[#allocation2] sm:$0xff]
    %v3527 = vld [vmem:[#allocation2 + $0x8] sm:$0xff]
    %s3528 = scalar_lea.vmem %s6, 32
    %v3529 = vld [vmem:[%s3528] sm:$0xff]
    %v3530 = vld [vmem:[%s3528 + $0x8] sm:$0xff]
    %v3531 = vld [vmem:[%s3528 + $0x10] sm:$0xff]
    %v3532 = vld [vmem:[%s3528 + $0x18] sm:$0xff]
    %s3533 = scalar_lea.vmem [#allocation8], 1
    %v3534 = vld [vmem:[%s3533] sm:$0x1]
    %v3536 = vlaneseq
    %v3537 = vshrl.u32 %v3536, 7
    %v3538 = vsub.s32 0, %v3537
    %v3539 = vrot.slane %v3534, %v3538
    %v3542 = vsel %vm260, %v3526, 0
    %v3545 = vsel %vm260, %v3527, 0
    %3547 = vmatprep.subr.mxu0 0.0
    %3548 = vmatpush1.msra.mxu0 %v3529
    %3549 = vmatprep.subr.mxu0 0.0
    %3550 = vmatpush1.msra.mxu0 %v3530
    %3551 = vmatprep.subr.mxu0 0.0
    %3552 = vmatpush1.msra.mxu0 %v3531
    %3553 = vmatprep.subr.mxu0 0.0
    %3554 = vmatpush1.msra.mxu0 %v3532
    %3555 = vmatprep.subr.mxu0 0.0
    %3556 = vmatpush1.msra.mxu0 0.0
    %3557 = vmatprep.subr.mxu0 0.0
    %3558 = vmatpush1.msra.mxu0 0.0
    %3559 = vmatprep.subr.mxu0 0.0
    %3560 = vmatpush1.msra.mxu0 0.0
    %3561 = vmatprep.subr.mxu0 0.0
    %3562 = vmatpush1.msra.mxu0 0.0
    %3563 = vmatprep.subr.mxu0 0.0
    %3564 = vmatpush1.msra.mxu0 0.0
    %3565 = vmatprep.subr.mxu0 0.0
    %3566 = vmatpush1.msra.mxu0 0.0
    %3567 = vmatprep.subr.mxu0 0.0
    %3568 = vmatpush1.msra.mxu0 0.0
    %3569 = vmatprep.subr.mxu0 0.0
    %3570 = vmatpush1.msra.mxu0 0.0
    %3571 = vmatprep.subr.mxu0 0.0
    %3572 = vmatpush1.msra.mxu0 0.0
    %3573 = vmatprep.subr.mxu0 0.0
    %3574 = vmatpush1.msra.mxu0 0.0
    %3575 = vmatprep.subr.mxu0 0.0
    %3576 = vmatpush1.msra.mxu0 0.0
    %3577 = vmatprep.subr.mxu0 0.0
    %3578 = vmatpush1.msra.mxu0 0.0
    %3579 = vmatprep.subr.mxu0 0.0
    %3580 = vmatpush1.msra.mxu0 0.0
    %3581 = vmatprep.subr.mxu0 0.0
    %3582 = vmatpush1.msra.mxu0 0.0
    %3583 = vmatprep.subr.mxu0 0.0
    %3584 = vmatpush1.msra.mxu0 0.0
    %3585 = vmatprep.subr.mxu0 0.0
    %3586 = vmatpush1.msra.mxu0 0.0
    %3587 = vmatprep.subr.mxu0 0.0
    %3588 = vmatpush1.msra.mxu0 0.0
    %3589 = vmatprep.subr.mxu0 0.0
    %3590 = vmatpush1.msra.mxu0 0.0
    %3591 = vmatprep.subr.mxu0 0.0
    %3592 = vmatpush1.msra.mxu0 0.0
    %3593 = vmatprep.subr.mxu0 0.0
    %3594 = vmatpush1.msra.mxu0 0.0
    %3595 = vmatprep.subr.mxu0 0.0
    %3596 = vmatpush1.msra.mxu0 0.0
    %3597 = vmatprep.subr.mxu0 0.0
    %3598 = vmatpush1.msra.mxu0 0.0
    %3599 = vmatprep.subr.mxu0 0.0
    %3600 = vmatpush1.msra.mxu0 0.0
    %3601 = vmatprep.subr.mxu0 0.0
    %3602 = vmatpush1.msra.mxu0 0.0
    %3603 = vmatprep.subr.mxu0 0.0
    %3604 = vmatpush1.msra.mxu0 0.0
    %3605 = vmatprep.subr.mxu0 0.0
    %3606 = vmatpush1.msra.mxu0 0.0
    %3607 = vmatprep.subr.mxu0 0.0
    %3608 = vmatpush1.msra.mxu0 0.0
    %3609 = vmatprep.subr.mxu0 0.0
    %3610 = vmatpush1.msra.mxu0 0.0
    %3611 = vmatprep.mubr.f32.mxu0 0.0
    %3612 = vmatmul.mubr.f32.gmra.mrb[0].mxu0 %v3542
    %v3613 = vpop.f32.mrb[0].mxu0
    %v3614 = vadd.f32 %v3539, %v3613
    %v3615 = vpop.f32.mrb[0].mxu0
    %3616 = vmatprep.mubr.f32.mxu0 0.0
    %3617 = vmatmul.mubr.f32.gmra.mrb[0].mxu0 %v3545
    %v3618 = vpop.f32.mrb[0].mxu0
    %v3619 = vadd.f32 %v3539, %v3618
    %v3620 = vpop.f32.mrb[0].mxu0
    %3621 = vdwg.mxu0
    %v3622 = vadd.f32 %v2076, %v3614
    %v3623 = vadd.f32 %v2077, %v3619
    %v3624 = vsel %vm260, %v3622, 0.0
    %3625 = vadd.xlane.f32.xlu0 %v3624
    %v3626 = vpop.xlane.xlu0 %3625
    %v3627 = vsel %vm260, %v3623, 0.0
    %3628 = vadd.xlane.f32.xlu0 %v3627
    %v3629 = vpop.xlane.xlu0 %3628
    %v3630 = vmul.f32 %v3626, %v1802
    %v3631 = vmul.f32 %v3629, %v1802
    %v3632 = vsub.f32 %v3622, %v3630
    %v3633 = vsub.f32 %v3623, %v3631
    %v3634 = vmul.f32 %v3632, %v3632
    %v3635 = vmul.f32 %v3633, %v3633
    %v3636 = vsel %vm260, %v3634, 0.0
    %3637 = vadd.xlane.f32.xlu0 %v3636
    %v3638 = vpop.xlane.xlu0 %3637
    %v3639 = vsel %vm260, %v3635, 0.0
    %3640 = vadd.xlane.f32.xlu0 %v3639
    %v3641 = vpop.xlane.xlu0 %3640
    %v3642 = vmul.f32 %v3638, %v1802
    %v3643 = vmul.f32 %v3641, %v1802
    %v3644 = vadd.f32 %v3642, 1e-05
    %v3645 = vadd.f32 %v3643, 1e-05
    %v3646 = vrsqrt.pop %v3644
    %v3647 = vrsqrt.pop %v3645
    %v3648 = vmul.f32 %v3632, %v3646
    %v3649 = vmul.f32 %v3633, %v3647
    %s3650 = scalar_lea.vmem %s8, 1
    %v3651 = vld [vmem:[%s3650] sm:$0x1]
    %v3653 = vlaneseq
    %v3654 = vshrl.u32 %v3653, 7
    %v3655 = vsub.s32 0, %v3654
    %v3656 = vrot.slane %v3651, %v3655
    %v3658 = vmul.f32 %v3648, %v3656
    %v3659 = vmul.f32 %v3649, %v3656
    %s3660 = scalar_lea.vmem [#allocation9], 1
    %v3661 = vld [vmem:[%s3660] sm:$0x1]
    %v3663 = vlaneseq
    %v3664 = vshrl.u32 %v3663, 7
    %v3665 = vsub.s32 0, %v3664
    %v3666 = vrot.slane %v3661, %v3665
    %v3668 = vadd.f32 %v3658, %v3666
    %v3669 = vadd.f32 %v3659, %v3666
    %s3670 = scalar_lea.vmem %s10, 32
    %v3671 = vld [vmem:[%s3670] sm:$0xff]
    %v3672 = vld [vmem:[%s3670 + $0x8] sm:$0xff]
    %v3673 = vld [vmem:[%s3670 + $0x10] sm:$0xff]
    %v3674 = vld [vmem:[%s3670 + $0x18] sm:$0xff]
    %s3675 = scalar_lea.vmem [#allocation11], 1
    %v3676 = vld [vmem:[%s3675] sm:$0x1]
    %v3678 = vlaneseq
    %v3679 = vshrl.u32 %v3678, 7
    %v3680 = vsub.s32 0, %v3679
    %v3681 = vrot.slane %v3676, %v3680
    %v3684 = vsel %vm260, %v3668, 0
    %v3687 = vsel %vm260, %v3669, 0
    %3689 = vmatprep.subr.mxu0 0.0
    %3690 = vmatpush1.msra.mxu0 %v3671
    %3691 = vmatprep.subr.mxu0 0.0
    %3692 = vmatpush1.msra.mxu0 %v3672
    %3693 = vmatprep.subr.mxu0 0.0
    %3694 = vmatpush1.msra.mxu0 %v3673
    %3695 = vmatprep.subr.mxu0 0.0
    %3696 = vmatpush1.msra.mxu0 %v3674
    %3697 = vmatprep.subr.mxu0 0.0
    %3698 = vmatpush1.msra.mxu0 0.0
    %3699 = vmatprep.subr.mxu0 0.0
    %3700 = vmatpush1.msra.mxu0 0.0
    %3701 = vmatprep.subr.mxu0 0.0
    %3702 = vmatpush1.msra.mxu0 0.0
    %3703 = vmatprep.subr.mxu0 0.0
    %3704 = vmatpush1.msra.mxu0 0.0
    %3705 = vmatprep.subr.mxu0 0.0
    %3706 = vmatpush1.msra.mxu0 0.0
    %3707 = vmatprep.subr.mxu0 0.0
    %3708 = vmatpush1.msra.mxu0 0.0
    %3709 = vmatprep.subr.mxu0 0.0
    %3710 = vmatpush1.msra.mxu0 0.0
    %3711 = vmatprep.subr.mxu0 0.0
    %3712 = vmatpush1.msra.mxu0 0.0
    %3713 = vmatprep.subr.mxu0 0.0
    %3714 = vmatpush1.msra.mxu0 0.0
    %3715 = vmatprep.subr.mxu0 0.0
    %3716 = vmatpush1.msra.mxu0 0.0
    %3717 = vmatprep.subr.mxu0 0.0
    %3718 = vmatpush1.msra.mxu0 0.0
    %3719 = vmatprep.subr.mxu0 0.0
    %3720 = vmatpush1.msra.mxu0 0.0
    %3721 = vmatprep.subr.mxu0 0.0
    %3722 = vmatpush1.msra.mxu0 0.0
    %3723 = vmatprep.subr.mxu0 0.0
    %3724 = vmatpush1.msra.mxu0 0.0
    %3725 = vmatprep.subr.mxu0 0.0
    %3726 = vmatpush1.msra.mxu0 0.0
    %3727 = vmatprep.subr.mxu0 0.0
    %3728 = vmatpush1.msra.mxu0 0.0
    %3729 = vmatprep.subr.mxu0 0.0
    %3730 = vmatpush1.msra.mxu0 0.0
    %3731 = vmatprep.subr.mxu0 0.0
    %3732 = vmatpush1.msra.mxu0 0.0
    %3733 = vmatprep.subr.mxu0 0.0
    %3734 = vmatpush1.msra.mxu0 0.0
    %3735 = vmatprep.subr.mxu0 0.0
    %3736 = vmatpush1.msra.mxu0 0.0
    %3737 = vmatprep.subr.mxu0 0.0
    %3738 = vmatpush1.msra.mxu0 0.0
    %3739 = vmatprep.subr.mxu0 0.0
    %3740 = vmatpush1.msra.mxu0 0.0
    %3741 = vmatprep.subr.mxu0 0.0
    %3742 = vmatpush1.msra.mxu0 0.0
    %3743 = vmatprep.subr.mxu0 0.0
    %3744 = vmatpush1.msra.mxu0 0.0
    %3745 = vmatprep.subr.mxu0 0.0
    %3746 = vmatpush1.msra.mxu0 0.0
    %3747 = vmatprep.subr.mxu0 0.0
    %3748 = vmatpush1.msra.mxu0 0.0
    %3749 = vmatprep.subr.mxu0 0.0
    %3750 = vmatpush1.msra.mxu0 0.0
    %3751 = vmatprep.subr.mxu0 0.0
    %3752 = vmatpush1.msra.mxu0 0.0
    %3753 = vmatprep.mubr.f32.mxu0 0.0
    %3754 = vmatmul.mubr.f32.gmra.mrb[0].mxu0 %v3684
    %v3755 = vpop.f32.mrb[0].mxu0
    %v3756 = vadd.f32 %v3681, %v3755
    %v3757 = vpop.f32.mrb[0].mxu0
    %3758 = vmatprep.mubr.f32.mxu0 0.0
    %3759 = vmatmul.mubr.f32.gmra.mrb[0].mxu0 %v3687
    %v3760 = vpop.f32.mrb[0].mxu0
    %v3761 = vadd.f32 %v3681, %v3760
    %v3762 = vpop.f32.mrb[0].mxu0
    %3763 = vdwg.mxu0
    %v3764 = vmax.f32 %v3756, 0.0
    %v3765 = vmax.f32 %v3761, 0.0
    %s3766 = scalar_lea.vmem %s12, 64
    %v3767 = vld [vmem:[%s3766] sm:$0xff]
    %v3768 = vld [vmem:[%s3766 + $0x8] sm:$0xff]
    %v3769 = vld [vmem:[%s3766 + $0x10] sm:$0xff]
    %v3770 = vld [vmem:[%s3766 + $0x18] sm:$0xff]
    %v3771 = vld [vmem:[%s3766 + $0x20] sm:$0xff]
    %v3772 = vld [vmem:[%s3766 + $0x28] sm:$0xff]
    %v3773 = vld [vmem:[%s3766 + $0x30] sm:$0xff]
    %v3774 = vld [vmem:[%s3766 + $0x38] sm:$0xff]
    %s3775 = scalar_lea.vmem [#allocation12], 1
    %v3776 = vld [vmem:[%s3775] sm:$0x1]
    %v3778 = vlaneseq
    %v3779 = vshrl.u32 %v3778, 7
    %v3780 = vsub.s32 0, %v3779
    %v3781 = vrot.slane %v3776, %v3780
    %v3784 = vsel %vm1950, %v3764, 0
    %v3787 = vsel %vm1950, %v3765, 0
    %3789 = vmatprep.subr.mxu0 0.0
    %3790 = vmatpush1.msra.mxu0 %v3767
    %3791 = vmatprep.subr.mxu0 0.0
    %3792 = vmatpush1.msra.mxu0 %v3768
    %3793 = vmatprep.subr.mxu0 0.0
    %3794 = vmatpush1.msra.mxu0 %v3769
    %3795 = vmatprep.subr.mxu0 0.0
    %3796 = vmatpush1.msra.mxu0 %v3770
    %3797 = vmatprep.subr.mxu0 0.0
    %3798 = vmatpush1.msra.mxu0 %v3771
    %3799 = vmatprep.subr.mxu0 0.0
    %3800 = vmatpush1.msra.mxu0 %v3772
    %3801 = vmatprep.subr.mxu0 0.0
    %3802 = vmatpush1.msra.mxu0 %v3773
    %3803 = vmatprep.subr.mxu0 0.0
    %3804 = vmatpush1.msra.mxu0 %v3774
    %3805 = vmatprep.subr.mxu0 0.0
    %3806 = vmatpush1.msra.mxu0 0.0
    %3807 = vmatprep.subr.mxu0 0.0
    %3808 = vmatpush1.msra.mxu0 0.0
    %3809 = vmatprep.subr.mxu0 0.0
    %3810 = vmatpush1.msra.mxu0 0.0
    %3811 = vmatprep.subr.mxu0 0.0
    %3812 = vmatpush1.msra.mxu0 0.0
    %3813 = vmatprep.subr.mxu0 0.0
    %3814 = vmatpush1.msra.mxu0 0.0
    %3815 = vmatprep.subr.mxu0 0.0
    %3816 = vmatpush1.msra.mxu0 0.0
    %3817 = vmatprep.subr.mxu0 0.0
    %3818 = vmatpush1.msra.mxu0 0.0
    %3819 = vmatprep.subr.mxu0 0.0
    %3820 = vmatpush1.msra.mxu0 0.0
    %3821 = vmatprep.subr.mxu0 0.0
    %3822 = vmatpush1.msra.mxu0 0.0
    %3823 = vmatprep.subr.mxu0 0.0
    %3824 = vmatpush1.msra.mxu0 0.0
    %3825 = vmatprep.subr.mxu0 0.0
    %3826 = vmatpush1.msra.mxu0 0.0
    %3827 = vmatprep.subr.mxu0 0.0
    %3828 = vmatpush1.msra.mxu0 0.0
    %3829 = vmatprep.subr.mxu0 0.0
    %3830 = vmatpush1.msra.mxu0 0.0
    %3831 = vmatprep.subr.mxu0 0.0
    %3832 = vmatpush1.msra.mxu0 0.0
    %3833 = vmatprep.subr.mxu0 0.0
    %3834 = vmatpush1.msra.mxu0 0.0
    %3835 = vmatprep.subr.mxu0 0.0
    %3836 = vmatpush1.msra.mxu0 0.0
    %3837 = vmatprep.subr.mxu0 0.0
    %3838 = vmatpush1.msra.mxu0 0.0
    %3839 = vmatprep.subr.mxu0 0.0
    %3840 = vmatpush1.msra.mxu0 0.0
    %3841 = vmatprep.subr.mxu0 0.0
    %3842 = vmatpush1.msra.mxu0 0.0
    %3843 = vmatprep.subr.mxu0 0.0
    %3844 = vmatpush1.msra.mxu0 0.0
    %3845 = vmatprep.subr.mxu0 0.0
    %3846 = vmatpush1.msra.mxu0 0.0
    %3847 = vmatprep.subr.mxu0 0.0
    %3848 = vmatpush1.msra.mxu0 0.0
    %3849 = vmatprep.subr.mxu0 0.0
    %3850 = vmatpush1.msra.mxu0 0.0
    %3851 = vmatprep.subr.mxu0 0.0
    %3852 = vmatpush1.msra.mxu0 0.0
    %3853 = vmatprep.mubr.f32.mxu0 0.0
    %3854 = vmatmul.mubr.f32.gmra.mrb[0].mxu0 %v3784
    %v3855 = vpop.f32.mrb[0].mxu0
    %v3856 = vadd.f32 %v3781, %v3855
    %v3857 = vpop.f32.mrb[0].mxu0
    %3858 = vmatprep.mubr.f32.mxu0 0.0
    %3859 = vmatmul.mubr.f32.gmra.mrb[0].mxu0 %v3787
    %v3860 = vpop.f32.mrb[0].mxu0
    %v3861 = vadd.f32 %v3781, %v3860
    %v3862 = vpop.f32.mrb[0].mxu0
    %3863 = vdwg.mxu0
    %v3864 = vadd.f32 %v3668, %v3856
    %v3865 = vadd.f32 %v3669, %v3861
    %v3866 = vsel %vm260, %v3864, 0.0
    %3867 = vadd.xlane.f32.xlu0 %v3866
    %v3868 = vpop.xlane.xlu0 %3867
    %v3869 = vsel %vm260, %v3865, 0.0
    %3870 = vadd.xlane.f32.xlu0 %v3869
    %v3871 = vpop.xlane.xlu0 %3870
    %v3872 = vmul.f32 %v3868, %v1802
    %v3873 = vmul.f32 %v3871, %v1802
    %v3874 = vsub.f32 %v3864, %v3872
    %v3875 = vsub.f32 %v3865, %v3873
    %v3876 = vmul.f32 %v3874, %v3874
    %v3877 = vmul.f32 %v3875, %v3875
    %v3878 = vsel %vm260, %v3876, 0.0
    %3879 = vadd.xlane.f32.xlu0 %v3878
    %v3880 = vpop.xlane.xlu0 %3879
    %v3881 = vsel %vm260, %v3877, 0.0
    %3882 = vadd.xlane.f32.xlu0 %v3881
    %v3883 = vpop.xlane.xlu0 %3882
    %v3884 = vmul.f32 %v3880, %v1802
    %v3885 = vmul.f32 %v3883, %v1802
    %v3886 = vadd.f32 %v3884, 1e-05
    %v3887 = vadd.f32 %v3885, 1e-05
    %v3888 = vrsqrt.pop %v3886
    %v3889 = vrsqrt.pop %v3887
    %v3890 = vmul.f32 %v3874, %v3888
    %v3891 = vmul.f32 %v3875, %v3889
    %s3892 = scalar_lea.vmem %s14, 1
    %v3893 = vld [vmem:[%s3892] sm:$0x1]
    %v3895 = vlaneseq
    %v3896 = vshrl.u32 %v3895, 7
    %v3897 = vsub.s32 0, %v3896
    %v3898 = vrot.slane %v3893, %v3897
    %v3900 = vmul.f32 %v3890, %v3898
    %v3901 = vmul.f32 %v3891, %v3898
    %s3902 = scalar_lea.vmem %s15, 1
    %v3903 = vld [vmem:[%s3902] sm:$0x1]
    %v3905 = vlaneseq
    %v3906 = vshrl.u32 %v3905, 7
    %v3907 = vsub.s32 0, %v3906
    %v3908 = vrot.slane %v3903, %v3907
    %v3910 = vadd.f32 %v3900, %v3908
    %v3911 = vadd.f32 %v3901, %v3908
    %v3913 = vrot.slane %v3911, 7
    %vm3915 = vcmask 1040384
    %v3916 = vsel %vm3915, %v3910, %v3913
    %v3918 = vrot.slane %v3910, 1
    %v3920 = vsel %vm3915, %v3918, %v3911
    %v3921 = vrot.slane %v3910, 2
    %v3923 = vrot.slane %v3911, 1
    %v3925 = vsel %vm3915, %v3921, %v3923
    %v3926 = vrot.slane %v3910, 3
    %v3928 = vrot.slane %v3911, 2
    %v3930 = vsel %vm3915, %v3926, %v3928
    %v3931 = vrot.slane %v3910, 4
    %v3933 = vrot.slane %v3911, 3
    %v3935 = vsel %vm3915, %v3931, %v3933
    %v3936 = vrot.slane %v3910, 5
    %v3938 = vrot.slane %v3911, 4
    %v3940 = vsel %vm3915, %v3936, %v3938
    %v3941 = vrot.slane %v3910, 6
    %v3943 = vrot.slane %v3911, 5
    %v3945 = vsel %vm3915, %v3941, %v3943
    %v3946 = vrot.slane %v3910, 7
    %v3948 = vrot.slane %v3911, 6
    %v3950 = vsel %vm3915, %v3946, %v3948
    %3952 = vrot.lane.b32.xlu0 %v3920, 32
    %v3953 = vpop.permute.xlu0 %3952
    %3956 = vrot.lane.b32.xlu0 %v3925, 64
    %v3957 = vpop.permute.xlu0 %3956
    %3960 = vrot.lane.b32.xlu0 %v3930, 96
    %v3961 = vpop.permute.xlu0 %3960
    %3964 = vrot.lane.b32.xlu0 %v3940, 32
    %v3965 = vpop.permute.xlu0 %3964
    %3968 = vrot.lane.b32.xlu0 %v3945, 64
    %v3969 = vpop.permute.xlu0 %3968
    %3972 = vrot.lane.b32.xlu0 %v3950, 96
    %v3973 = vpop.permute.xlu0 %3972
    %v3975 = vsel %vm260, %v3916, %v3953
    %v3976 = vsel %vm1950, %v3975, %v3957
    %vm3977 = vcmask 785408
    %v3978 = vsel %vm3977, %v3976, %v3961
    %v3979 = vsel %vm260, %v3935, %v3965
    %v3980 = vsel %vm1950, %v3979, %v3969
    %v3981 = vsel %vm3977, %v3980, %v3973
    %v3982 = vld [vmem:[#allocation14] sm:$0xff]
    %v3983 = vld [vmem:[#allocation14 + $0x8] sm:$0xff]
    %v3984 = vld [vmem:[#allocation14 + $0x10] sm:$0xff]
    %v3985 = vld [vmem:[#allocation14 + $0x18] sm:$0xff]
    %v3986 = vld [vmem:[#allocation14 + $0x20] sm:$0xff]
    %v3987 = vld [vmem:[#allocation14 + $0x28] sm:$0xff]
    %v3988 = vld [vmem:[#allocation14 + $0x30] sm:$0xff]
    %v3989 = vld [vmem:[#allocation14 + $0x38] sm:$0xff]
    %v3990 = vld [vmem:[#allocation14 + $0x40] sm:$0xff]
    %v3991 = vld [vmem:[#allocation14 + $0x48] sm:$0xff]
    %v3992 = vld [vmem:[#allocation14 + $0x50] sm:$0xff]
    %v3993 = vld [vmem:[#allocation14 + $0x58] sm:$0xff]
    %v3994 = vld [vmem:[#allocation14 + $0x60] sm:$0xff]
    %v3995 = vld [vmem:[#allocation14 + $0x68] sm:$0xff]
    %v3996 = vld [vmem:[#allocation14 + $0x70] sm:$0xff]
    %v3997 = vld [vmem:[#allocation14 + $0x78] sm:$0xff]
    %v3998 = vld [vmem:[#allocation14 + $0x80] sm:$0xff]
    %v3999 = vld [vmem:[#allocation14 + $0x88] sm:$0xff]
    %v4000 = vld [vmem:[#allocation14 + $0x90] sm:$0xff]
    %v4001 = vld [vmem:[#allocation14 + $0x98] sm:$0xff]
    %v4002 = vld [vmem:[#allocation14 + $0xa0] sm:$0xff]
    %v4003 = vld [vmem:[#allocation14 + $0xa8] sm:$0xff]
    %v4004 = vld [vmem:[#allocation14 + $0xb0] sm:$0xff]
    %v4005 = vld [vmem:[#allocation14 + $0xb8] sm:$0xff]
    %v4006 = vld [vmem:[#allocation14 + $0xc0] sm:$0xff]
    %v4007 = vld [vmem:[#allocation14 + $0xc8] sm:$0xff]
    %v4008 = vld [vmem:[#allocation14 + $0xd0] sm:$0xff]
    %v4009 = vld [vmem:[#allocation14 + $0xd8] sm:$0xff]
    %v4010 = vld [vmem:[#allocation14 + $0xe0] sm:$0xff]
    %v4011 = vld [vmem:[#allocation14 + $0xe8] sm:$0xff]
    %v4012 = vld [vmem:[#allocation14 + $0xf0] sm:$0xff]
    %v4013 = vld [vmem:[#allocation14 + $0xf8] sm:$0xff]
    %v4014 = vld [vmem:[%s17] sm:$0x1]
    %v4016 = vlaneseq
    %v4017 = vshrl.u32 %v4016, 7
    %v4018 = vsub.s32 0, %v4017
    %v4019 = vrot.slane %v4014, %v4018
    %4021 = vmatprep.subr.mxu0 0.0
    %4022 = vmatpush1.msra.mxu0 %v3982
    %4023 = vmatprep.subr.mxu0 0.0
    %4024 = vmatpush1.msra.mxu0 %v3983
    %4025 = vmatprep.subr.mxu0 0.0
    %4026 = vmatpush1.msra.mxu0 %v3984
    %4027 = vmatprep.subr.mxu0 0.0
    %4028 = vmatpush1.msra.mxu0 %v3985
    %4029 = vmatprep.subr.mxu0 0.0
    %4030 = vmatpush1.msra.mxu0 %v3986
    %4031 = vmatprep.subr.mxu0 0.0
    %4032 = vmatpush1.msra.mxu0 %v3987
    %4033 = vmatprep.subr.mxu0 0.0
    %4034 = vmatpush1.msra.mxu0 %v3988
    %4035 = vmatprep.subr.mxu0 0.0
    %4036 = vmatpush1.msra.mxu0 %v3989
    %4037 = vmatprep.subr.mxu0 0.0
    %4038 = vmatpush1.msra.mxu0 %v3990
    %4039 = vmatprep.subr.mxu0 0.0
    %4040 = vmatpush1.msra.mxu0 %v3991
    %4041 = vmatprep.subr.mxu0 0.0
    %4042 = vmatpush1.msra.mxu0 %v3992
    %4043 = vmatprep.subr.mxu0 0.0
    %4044 = vmatpush1.msra.mxu0 %v3993
    %4045 = vmatprep.subr.mxu0 0.0
    %4046 = vmatpush1.msra.mxu0 %v3994
    %4047 = vmatprep.subr.mxu0 0.0
    %4048 = vmatpush1.msra.mxu0 %v3995
    %4049 = vmatprep.subr.mxu0 0.0
    %4050 = vmatpush1.msra.mxu0 %v3996
    %4051 = vmatprep.subr.mxu0 0.0
    %4052 = vmatpush1.msra.mxu0 %v3997
    %4053 = vmatprep.subr.mxu0 0.0
    %4054 = vmatpush1.msra.mxu0 %v3998
    %4055 = vmatprep.subr.mxu0 0.0
    %4056 = vmatpush1.msra.mxu0 %v3999
    %4057 = vmatprep.subr.mxu0 0.0
    %4058 = vmatpush1.msra.mxu0 %v4000
    %4059 = vmatprep.subr.mxu0 0.0
    %4060 = vmatpush1.msra.mxu0 %v4001
    %4061 = vmatprep.subr.mxu0 0.0
    %4062 = vmatpush1.msra.mxu0 %v4002
    %4063 = vmatprep.subr.mxu0 0.0
    %4064 = vmatpush1.msra.mxu0 %v4003
    %4065 = vmatprep.subr.mxu0 0.0
    %4066 = vmatpush1.msra.mxu0 %v4004
    %4067 = vmatprep.subr.mxu0 0.0
    %4068 = vmatpush1.msra.mxu0 %v4005
    %4069 = vmatprep.subr.mxu0 0.0
    %4070 = vmatpush1.msra.mxu0 %v4006
    %4071 = vmatprep.subr.mxu0 0.0
    %4072 = vmatpush1.msra.mxu0 %v4007
    %4073 = vmatprep.subr.mxu0 0.0
    %4074 = vmatpush1.msra.mxu0 %v4008
    %4075 = vmatprep.subr.mxu0 0.0
    %4076 = vmatpush1.msra.mxu0 %v4009
    %4077 = vmatprep.subr.mxu0 0.0
    %4078 = vmatpush1.msra.mxu0 %v4010
    %4079 = vmatprep.subr.mxu0 0.0
    %4080 = vmatpush1.msra.mxu0 %v4011
    %4081 = vmatprep.subr.mxu0 0.0
    %4082 = vmatpush1.msra.mxu0 %v4012
    %4083 = vmatprep.subr.mxu0 0.0
    %4084 = vmatpush1.msra.mxu0 %v4013
    %4085 = vmatprep.mubr.f32.mxu0 %v3981
    %4086 = vmatmul.mubr.f32.gmra.mrb[0].mxu0 %v3978
    %v4087 = vpop.f32.mrb[0].mxu0
    %v4088 = vadd.f32 %v4019, %v4087
    %v4089 = vpop.f32.mrb[0].mxu0
    %4090 = vdwg.mxu0
    %4091 = vst [vmem:[#allocation15] sm:$0x3] %v4088
    // Predicated region
    $region102: #{finetune_forward.1} parent=1 // pred_check
      _
    $region103: #{finetune_forward.1} parent=1 // pred_check_branch
      %4093 = sbr.rel (0) target = $region105
    $region104: #{finetune_forward.1} parent=1 // pred_region
      %s4095 = ssub.s32 32, 32
      %4096 = vsyncadd [#allocation5], %s4095
      %s4098 = sshll.u32 [#allocation15], 4
      %s4099 = int_to_ptr.vmem [resolvable:$true] %s4098
      %4101 = dma.vmem_to_hbm [thread:$0]  %s4099, 32, %s18, [#allocation5]
    $region105: #{finetune_forward.1} parent=1 // pred_fallthru
      _
    // Predicated region
    $region106: #{finetune_forward.1} parent=1 // pred_check
      _
    $region107: #{finetune_forward.1} parent=1 // pred_check_branch
      %4103 = sbr.rel (0) target = $region109
    $region108: #{finetune_forward.1} parent=1 // pred_region
      %4104 = dma.done [#allocation5], 32
    $region109: #{finetune_forward.1} parent=1 // pred_fallthru
      _
    %4105 = vsyncpa [#allocation4], 1
    %4106 = vsyncpa [#allocation7], 1
    %4107 = vsyncpa [#allocation10], 1
    %4108 = vsyncpa [#allocation13], 1
    %4109 = vsyncpa [#allocation5], 1

</llo_original>
